<compile_context>
chip_gen: v7x
topology: tpu7x:2x2x1
jax: 0.10.0
libtpu: 0.0.40
codegen_flags: <defaults>
</compile_context>

<pallas_src>
import functools

import numpy as np
import jax
import jax.numpy as jnp
from jax.experimental import pallas as pl
from jax.experimental.pallas import tpu as pltpu


# ----------------------------- small deterministic config ----------------------------------
CONFIG = dict(
    max_dna_len=16,
    allowed_chars="ACGTN",   # 5 chars
    seq_kmer=4,              # n_src_vocab = 5 * 4 = 20
    dmodel=32,
    encoder_heads=2,
    encoder_layers=2,
    pre_layers=2,
    dff=64,
    encoder_dropout=0.1,     # eval mode -> identity
)
FF_KERNEL_SIZES = (9, 1)     # FastSpeech PositionwiseFeedForward conv kernel sizes
LN_EPS = 1e-5


# ----------------------------- sinusoid table (glue, deterministic) ------------------------
def get_sinusoid_encoding_table(n_position, d_hid):
    pos = np.arange(n_position, dtype=np.float64)[:, None]
    hid = np.arange(d_hid, dtype=np.int64)[None, :]
    angle = pos / np.power(10000.0, 2.0 * (hid // 2) / float(d_hid))
    table = np.zeros((n_position, d_hid), dtype=np.float64)
    table[:, 0::2] = np.sin(angle[:, 0::2])
    table[:, 1::2] = np.cos(angle[:, 1::2])
    return jnp.asarray(table, dtype=jnp.float32)


# ----------------------------- fused encoder kernel ----------------------------------------
def _layer_norm(y, g, b, eps):
    mu = jnp.mean(y, axis=-1, keepdims=True)
    var = jnp.mean((y - mu) ** 2, axis=-1, keepdims=True)
    return (y - mu) * jax.lax.rsqrt(var + eps) * g + b


def _encoder_kernel(*refs, batch, seq_len, n_pre, n_layers, n_head, d_k, d_v,
                    ksize, eps, data_off, region):
    # ---- parse refs: [inputs..., outputs..., scratch] ----
    it = iter(refs)
    src_ref = next(it)                                  # (B*L, V)
    pe_ref = next(it)                                   # (B*L, D)  (pre-tiled)
    emb_w = next(it); emb_b = next(it)
    pre = [(next(it), next(it)) for _ in range(n_pre)]
    layers = []
    for _ in range(n_layers):
        layers.append(dict(
            wqkv=next(it), bqkv=next(it), wo=next(it), bo=next(it),
            ln1_g=next(it), ln1_b=next(it),
            w1=next(it), b1=next(it), w2=next(it), b2=next(it),
            ln2_g=next(it), ln2_b=next(it)))
    pre_out_ref = next(it)                              # (B*L, D)
    enc_out_ref = next(it)                              # (B*L, D)
    xp_ref = next(it)                                   # (B*region, D) conv-padding scratch

    B, L = batch, seq_len
    D = emb_w.shape[1]
    dqk = n_head * d_k
    pad = (ksize - 1) // 2

    # Zero the conv scratch once; padding rows are never written again.
    xp_ref[...] = jnp.zeros_like(xp_ref)

    # ----- src_emb + ReLU, then pre-net stack (all batches at once, stays in vregs) -----
    x = jnp.dot(src_ref[...], emb_w[...], preferred_element_type=jnp.float32) + emb_b[...]
    x = jnp.maximum(x, 0.0)
    for w, b in pre:
        x = jnp.dot(x, w[...], preferred_element_type=jnp.float32) + b[...]
        x = jnp.maximum(x, 0.0)
    pre_out_ref[...] = x                                # returned `src_seq` (pre-net output)

    # ----- positional encoding (folded in; pe pre-tiled to (B*L, D)) -----
    h = x + pe_ref[...]

    inv_temp = 1.0 / float(np.sqrt(d_k))

    for lyr in layers:
        # ---------------- multi-head self-attention (fused QKV projection) ----------------
        qkv = jnp.dot(h, lyr["wqkv"][...], preferred_element_type=jnp.float32) + lyr["bqkv"][...]
        ctx_rows = []
        for b in range(B):                              # B, n_head are static -> unrolled
            rs = slice(b * L, (b + 1) * L)
            heads = []
            for hh in range(n_head):
                qh = qkv[rs, hh * d_k:(hh + 1) * d_k]
                kh = qkv[rs, dqk + hh * d_k: dqk + (hh + 1) * d_k]
                vh = qkv[rs, 2 * dqk + hh * d_v: 2 * dqk + (hh + 1) * d_v]
                s = jnp.dot(qh, kh.T, preferred_element_type=jnp.float32) * inv_temp
                s = s - jnp.max(s, axis=-1, keepdims=True)
                e = jnp.exp(s)
                attn = e * pl.reciprocal(jnp.sum(e, axis=-1, keepdims=True), approx=True)
                heads.append(jnp.dot(attn, vh, preferred_element_type=jnp.float32))
            ctx_rows.append(jnp.concatenate(heads, axis=-1))
        ctx = jnp.concatenate(ctx_rows, axis=0)         # (B*L, n_head*d_v)
        out = jnp.dot(ctx, lyr["wo"][...], preferred_element_type=jnp.float32) + lyr["bo"][...]
        h = _layer_norm(out + h, lyr["ln1_g"][...], lyr["ln1_b"][...], eps)

        # -------- position-wise FFN: Conv1d(k=9, 'same') as im2col matmul, ReLU, k=1 conv --------
        # write data rows into the zero-padded scratch at an 8-aligned sublane offset
        for b in range(B):
            base = b * region
            xp_ref[base + data_off: base + data_off + L, :] = h[b * L:(b + 1) * L, :]
        # im2col: (B*L, ksize*D) built from static shifted slices of the scratch
        im_rows = []
        for b in range(B):
            start0 = b * region + data_off - pad
            cols = [xp_ref[start0 + k: start0 + k + L, :] for k in range(ksize)]
            im_rows.append(jnp.concatenate(cols, axis=-1))
        im = jnp.concatenate(im_rows, axis=0)           # (B*L, ksize*D)
        h1 = jnp.dot(im, lyr["w1"][...], preferred_element_type=jnp.float32) + lyr["b1"][...]
        h1 = jnp.maximum(h1, 0.0)                       # ReLU
        y = jnp.dot(h1, lyr["w2"][...], preferred_element_type=jnp.float32) + lyr["b2"][...]
        h = _layer_norm(y + h, lyr["ln2_g"][...], lyr["ln2_b"][...], eps)

    enc_out_ref[...] = h


# ----------------------------- parameter init (deterministic, synthetic) -------------------
def init_params(key, cfg):
    V = len(cfg["allowed_chars"]) * cfg["seq_kmer"]
    D = cfg["dmodel"]
    H = cfg["encoder_heads"]
    dk = dv = D // H
    dff = cfg["dff"]
    keys = iter(jax.random.split(key, 64))

    def lin(fan_in, fan_out):
        bound = 1.0 / np.sqrt(fan_in)
        w = jax.random.uniform(next(keys), (fan_in, fan_out), jnp.float32, -bound, bound)
        b = jax.random.uniform(next(keys), (1, fan_out), jnp.float32, -bound, bound)
        return w, b

    params = {"emb": lin(V, D), "pre": [lin(D, D) for _ in range(cfg["pre_layers"])]}
    k1, _k2 = FF_KERNEL_SIZES
    layers = []
    for _ in range(cfg["encoder_layers"]):
        lyr = {}
        lyr["wq"], lyr["bq"] = lin(D, H * dk)
        lyr["wk"], lyr["bk"] = lin(D, H * dk)
        lyr["wv"], lyr["bv"] = lin(D, H * dv)
        lyr["wo"], lyr["bo"] = lin(H * dv, D)
        lyr["ln1_g"] = jnp.ones((1, D), jnp.float32)
        lyr["ln1_b"] = jnp.zeros((1, D), jnp.float32)
        cb1 = 1.0 / np.sqrt(D * k1)
        lyr["w1"] = jax.random.uniform(next(keys), (k1, D, dff), jnp.float32, -cb1, cb1)
        lyr["b1"] = jax.random.uniform(next(keys), (1, dff), jnp.float32, -cb1, cb1)
        cb2 = 1.0 / np.sqrt(dff * 1)
        lyr["w2"] = jax.random.uniform(next(keys), (dff, D), jnp.float32, -cb2, cb2)
        lyr["b2"] = jax.random.uniform(next(keys), (1, D), jnp.float32, -cb2, cb2)
        lyr["ln2_g"] = jnp.ones((1, D), jnp.float32)
        lyr["ln2_b"] = jnp.zeros((1, D), jnp.float32)
        layers.append(lyr)
    params["layers"] = layers
    return params


# ----------------------------- Encoder forward (single fused pallas_call) ------------------
def encoder_forward(src_seq, params):
    B, L, V = src_seq.shape
    D = CONFIG["dmodel"]
    H = CONFIG["encoder_heads"]
    dk = dv = D // H
    dff = CONFIG["dff"]
    k1 = FF_KERNEL_SIZES[0]

    pe = get_sinusoid_encoding_table(L, D)        # recomputed per forward, as in torch code
    pe_tiled = jnp.tile(pe, (B, 1))               # (B*L, D)

    # Flatten / fuse weights wrapper-side (cheap XLA ops, done once per jit call).
    args = [src_seq.reshape(B * L, V), pe_tiled, params["emb"][0], params["emb"][1]]
    for w, b in params["pre"]:
        args += [w, b]
    for lyr in params["layers"]:
        wqkv = jnp.concatenate([lyr["wq"], lyr["wk"], lyr["wv"]], axis=1)   # (D, 3D)
        bqkv = jnp.concatenate([lyr["bq"], lyr["bk"], lyr["bv"]], axis=1)   # (1, 3D)
        w1_flat = lyr["w1"].reshape(k1 * D, dff)                            # (9*D, dff) im2col
        args += [wqkv, bqkv, lyr["wo"], lyr["bo"], lyr["ln1_g"], lyr["ln1_b"],
                 w1_flat, lyr["b1"], lyr["w2"], lyr["b2"], lyr["ln2_g"], lyr["ln2_b"]]

    pad = (k1 - 1) // 2
    data_off = ((pad + 7) // 8) * 8               # 8-sublane-aligned data offset in the scratch
    region = 2 * data_off + L                     # per-batch rows in the conv scratch

    kern = functools.partial(
        _encoder_kernel, batch=B, seq_len=L,
        n_pre=len(params["pre"]), n_layers=len(params["layers"]),
        n_head=H, d_k=dk, d_v=dv, ksize=k1, eps=LN_EPS,
        data_off=data_off, region=region)

    pre_out, enc_out = pl.pallas_call(
        kern,
        out_shape=(jax.ShapeDtypeStruct((B * L, D), jnp.float32),
                   jax.ShapeDtypeStruct((B * L, D), jnp.float32)),
        scratch_shapes=[pltpu.VMEM((B * region, D), jnp.float32)],
    )(*args)

    return enc_out.reshape(B, L, D), pre_out.reshape(B, L, D)


# ----------------------------- main ----------------------------------------------------------
if __name__ == "__main__":
    key = jax.random.PRNGKey(0)
    k_in, k_par = jax.random.split(key)

    n_vocab = len(CONFIG["allowed_chars"]) * CONFIG["seq_kmer"]   # 20
    B, L = 2, CONFIG["max_dna_len"]                               # 2, 16
    src_seq = jax.random.normal(k_in, (B, L, n_vocab), jnp.float32)
    params = init_params(k_par, CONFIG)

    enc_out, pre_out = jax.jit(encoder_forward)(src_seq, params)
    jax.block_until_ready((enc_out, pre_out))

    assert enc_out.shape == (B, L, CONFIG["dmodel"])
    assert pre_out.shape == (B, L, CONFIG["dmodel"])
    assert enc_out.dtype == jnp.float32 and pre_out.dtype == jnp.float32
    assert bool(jnp.all(jnp.isfinite(enc_out))) and bool(jnp.all(jnp.isfinite(pre_out)))
    print("KERNEL_OK")
</pallas_src>

<mosaic_0001>
module attributes {stable_mosaic.version = 11 : i64} {
  func.func @_encoder_kernel(%arg0: memref<32x20xf32, #tpu.memory_space<vmem>>, %arg1: memref<32x32xf32, #tpu.memory_space<vmem>>, %arg2: memref<20x32xf32, #tpu.memory_space<vmem>>, %arg3: memref<1x32xf32, #tpu.memory_space<vmem>>, %arg4: memref<32x32xf32, #tpu.memory_space<vmem>>, %arg5: memref<1x32xf32, #tpu.memory_space<vmem>>, %arg6: memref<32x32xf32, #tpu.memory_space<vmem>>, %arg7: memref<1x32xf32, #tpu.memory_space<vmem>>, %arg8: memref<32x96xf32, #tpu.memory_space<vmem>>, %arg9: memref<1x96xf32, #tpu.memory_space<vmem>>, %arg10: memref<32x32xf32, #tpu.memory_space<vmem>>, %arg11: memref<1x32xf32, #tpu.memory_space<vmem>>, %arg12: memref<1x32xf32, #tpu.memory_space<vmem>>, %arg13: memref<1x32xf32, #tpu.memory_space<vmem>>, %arg14: memref<288x64xf32, #tpu.memory_space<vmem>>, %arg15: memref<1x64xf32, #tpu.memory_space<vmem>>, %arg16: memref<64x32xf32, #tpu.memory_space<vmem>>, %arg17: memref<1x32xf32, #tpu.memory_space<vmem>>, %arg18: memref<1x32xf32, #tpu.memory_space<vmem>>, %arg19: memref<1x32xf32, #tpu.memory_space<vmem>>, %arg20: memref<32x96xf32, #tpu.memory_space<vmem>>, %arg21: memref<1x96xf32, #tpu.memory_space<vmem>>, %arg22: memref<32x32xf32, #tpu.memory_space<vmem>>, %arg23: memref<1x32xf32, #tpu.memory_space<vmem>>, %arg24: memref<1x32xf32, #tpu.memory_space<vmem>>, %arg25: memref<1x32xf32, #tpu.memory_space<vmem>>, %arg26: memref<288x64xf32, #tpu.memory_space<vmem>>, %arg27: memref<1x64xf32, #tpu.memory_space<vmem>>, %arg28: memref<64x32xf32, #tpu.memory_space<vmem>>, %arg29: memref<1x32xf32, #tpu.memory_space<vmem>>, %arg30: memref<1x32xf32, #tpu.memory_space<vmem>>, %arg31: memref<1x32xf32, #tpu.memory_space<vmem>>, %arg32: memref<32x32xf32, #tpu.memory_space<vmem>>, %arg33: memref<32x32xf32, #tpu.memory_space<vmem>>, %arg34: memref<64x32xf32, #tpu.memory_space<vmem>>) attributes {dimension_semantics = [], scalar_prefetch = 0 : i64, scratch_operands = 1 : i64, tpu.core_type = #tpu.core_type<tc>} {
    %cst = arith.constant 0.000000e+00 : f32
    %0 = vector.broadcast %cst : f32 to vector<64x32xf32>
    %c0 = arith.constant 0 : index
    %c0_0 = arith.constant 0 : index
    %1 = vector.load %arg34[%c0, %c0_0] : memref<64x32xf32, #tpu.memory_space<vmem>>, vector<64x32xf32>
    tpu.vector_store %arg34[%c0, %c0_0], %0 {strides = array<i32>} : memref<64x32xf32, #tpu.memory_space<vmem>>, vector<64x32xf32>,
    %c0_1 = arith.constant 0 : index
    %c0_2 = arith.constant 0 : index
    %2 = vector.load %arg0[%c0_1, %c0_2] : memref<32x20xf32, #tpu.memory_space<vmem>>, vector<32x20xf32>
    %c0_3 = arith.constant 0 : index
    %c0_4 = arith.constant 0 : index
    %3 = vector.load %arg2[%c0_3, %c0_4] : memref<20x32xf32, #tpu.memory_space<vmem>>, vector<20x32xf32>
    %cst_5 = arith.constant dense<0.000000e+00> : vector<32x32xf32>
    %4 = tpu.matmul %2, %3, %cst_5 {dimension_numbers = #tpu.dot_dimension_numbers<[1], [0], [0], [1], [0, 0, 1, 1], [], []>} : vector<32x20xf32>, vector<20x32xf32>, vector<32x32xf32> -> vector<32x32xf32>
    %c0_6 = arith.constant 0 : index
    %c0_7 = arith.constant 0 : index
    %5 = vector.load %arg3[%c0_6, %c0_7] : memref<1x32xf32, #tpu.memory_space<vmem>>, vector<1x32xf32>
    %6 = vector.broadcast %5 : vector<1x32xf32> to vector<32x32xf32>
    %7 = arith.addf %4, %6 : vector<32x32xf32>
    %cst_8 = arith.constant 0.000000e+00 : f32
    %8 = vector.broadcast %cst_8 : f32 to vector<32x32xf32>
    %9 = arith.maximumf %7, %8 : vector<32x32xf32>
    %c0_9 = arith.constant 0 : index
    %c0_10 = arith.constant 0 : index
    %10 = vector.load %arg4[%c0_9, %c0_10] : memref<32x32xf32, #tpu.memory_space<vmem>>, vector<32x32xf32>
    %cst_11 = arith.constant dense<0.000000e+00> : vector<32x32xf32>
    %11 = tpu.matmul %9, %10, %cst_11 {dimension_numbers = #tpu.dot_dimension_numbers<[1], [0], [0], [1], [0, 0, 1, 1], [], []>} : vector<32x32xf32>, vector<32x32xf32>, vector<32x32xf32> -> vector<32x32xf32>
    %c0_12 = arith.constant 0 : index
    %c0_13 = arith.constant 0 : index
    %12 = vector.load %arg5[%c0_12, %c0_13] : memref<1x32xf32, #tpu.memory_space<vmem>>, vector<1x32xf32>
    %13 = vector.broadcast %12 : vector<1x32xf32> to vector<32x32xf32>
    %14 = arith.addf %11, %13 : vector<32x32xf32>
    %cst_14 = arith.constant 0.000000e+00 : f32
    %15 = vector.broadcast %cst_14 : f32 to vector<32x32xf32>
    %16 = arith.maximumf %14, %15 : vector<32x32xf32>
    %c0_15 = arith.constant 0 : index
    %c0_16 = arith.constant 0 : index
    %17 = vector.load %arg6[%c0_15, %c0_16] : memref<32x32xf32, #tpu.memory_space<vmem>>, vector<32x32xf32>
    %cst_17 = arith.constant dense<0.000000e+00> : vector<32x32xf32>
    %18 = tpu.matmul %16, %17, %cst_17 {dimension_numbers = #tpu.dot_dimension_numbers<[1], [0], [0], [1], [0, 0, 1, 1], [], []>} : vector<32x32xf32>, vector<32x32xf32>, vector<32x32xf32> -> vector<32x32xf32>
    %c0_18 = arith.constant 0 : index
    %c0_19 = arith.constant 0 : index
    %19 = vector.load %arg7[%c0_18, %c0_19] : memref<1x32xf32, #tpu.memory_space<vmem>>, vector<1x32xf32>
    %20 = vector.broadcast %19 : vector<1x32xf32> to vector<32x32xf32>
    %21 = arith.addf %18, %20 : vector<32x32xf32>
    %cst_20 = arith.constant 0.000000e+00 : f32
    %22 = vector.broadcast %cst_20 : f32 to vector<32x32xf32>
    %23 = arith.maximumf %21, %22 : vector<32x32xf32>
    %c0_21 = arith.constant 0 : index
    %c0_22 = arith.constant 0 : index
    %24 = vector.load %arg32[%c0_21, %c0_22] : memref<32x32xf32, #tpu.memory_space<vmem>>, vector<32x32xf32>
    tpu.vector_store %arg32[%c0_21, %c0_22], %23 {strides = array<i32>} : memref<32x32xf32, #tpu.memory_space<vmem>>, vector<32x32xf32>,
    %c0_23 = arith.constant 0 : index
    %c0_24 = arith.constant 0 : index
    %25 = vector.load %arg1[%c0_23, %c0_24] : memref<32x32xf32, #tpu.memory_space<vmem>>, vector<32x32xf32>
    %26 = arith.addf %23, %25 : vector<32x32xf32>
    %c0_25 = arith.constant 0 : index
    %c0_26 = arith.constant 0 : index
    %27 = vector.load %arg8[%c0_25, %c0_26] : memref<32x96xf32, #tpu.memory_space<vmem>>, vector<32x96xf32>
    %cst_27 = arith.constant dense<0.000000e+00> : vector<32x96xf32>
    %28 = tpu.matmul %26, %27, %cst_27 {dimension_numbers = #tpu.dot_dimension_numbers<[1], [0], [0], [1], [0, 0, 1, 1], [], []>} : vector<32x32xf32>, vector<32x96xf32>, vector<32x96xf32> -> vector<32x96xf32>
    %c0_28 = arith.constant 0 : index
    %c0_29 = arith.constant 0 : index
    %29 = vector.load %arg9[%c0_28, %c0_29] : memref<1x96xf32, #tpu.memory_space<vmem>>, vector<1x96xf32>
    %30 = vector.broadcast %29 : vector<1x96xf32> to vector<32x96xf32>
    %31 = arith.addf %28, %30 : vector<32x96xf32>
    %32 = vector.extract_strided_slice %31 {offsets = [0, 0], sizes = [16, 16], strides = [1, 1]} : vector<32x96xf32> to vector<16x16xf32>
    %33 = vector.extract_strided_slice %31 {offsets = [0, 32], sizes = [16, 16], strides = [1, 1]} : vector<32x96xf32> to vector<16x16xf32>
    %34 = vector.extract_strided_slice %31 {offsets = [0, 64], sizes = [16, 16], strides = [1, 1]} : vector<32x96xf32> to vector<16x16xf32>
    %35 = tpu.transpose %33, [1, 0] : vector<16x16xf32> -> vector<16x16xf32>
    %cst_30 = arith.constant dense<0.000000e+00> : vector<16x16xf32>
    %36 = tpu.matmul %32, %35, %cst_30 {dimension_numbers = #tpu.dot_dimension_numbers<[1], [0], [0], [1], [0, 0, 1, 1], [], []>} : vector<16x16xf32>, vector<16x16xf32>, vector<16x16xf32> -> vector<16x16xf32>
    %cst_31 = arith.constant 2.500000e-01 : f32
    %37 = vector.broadcast %cst_31 : f32 to vector<16x16xf32>
    %38 = arith.mulf %36, %37 : vector<16x16xf32>
    %cst_32 = arith.constant dense<0xFF800000> : vector<16xf32>
    %39 = vector.multi_reduction <maximumf>, %38, %cst_32 [1] : vector<16x16xf32> to vector<16xf32>
    %40 = vector.shape_cast %39 : vector<16xf32> to vector<16x1xf32>
    %41 = vector.broadcast %40 : vector<16x1xf32> to vector<16x16xf32>
    %42 = arith.subf %38, %41 : vector<16x16xf32>
    %43 = math.exp %42 : vector<16x16xf32>
    %cst_33 = arith.constant dense<0.000000e+00> : vector<16xf32>
    %44 = vector.multi_reduction <add>, %43, %cst_33 [1] : vector<16x16xf32> to vector<16xf32>
    %45 = vector.shape_cast %44 : vector<16xf32> to vector<16x1xf32>
    %46 = tpu.reciprocal %45 {approx = true} : vector<16x1xf32> -> vector<16x1xf32>
    %47 = vector.broadcast %46 : vector<16x1xf32> to vector<16x16xf32>
    %48 = arith.mulf %43, %47 : vector<16x16xf32>
    %cst_34 = arith.constant dense<0.000000e+00> : vector<16x16xf32>
    %49 = tpu.matmul %48, %34, %cst_34 {dimension_numbers = #tpu.dot_dimension_numbers<[1], [0], [0], [1], [0, 0, 1, 1], [], []>} : vector<16x16xf32>, vector<16x16xf32>, vector<16x16xf32> -> vector<16x16xf32>
    %50 = vector.extract_strided_slice %31 {offsets = [0, 16], sizes = [16, 16], strides = [1, 1]} : vector<32x96xf32> to vector<16x16xf32>
    %51 = vector.extract_strided_slice %31 {offsets = [0, 48], sizes = [16, 16], strides = [1, 1]} : vector<32x96xf32> to vector<16x16xf32>
    %52 = vector.extract_strided_slice %31 {offsets = [0, 80], sizes = [16, 16], strides = [1, 1]} : vector<32x96xf32> to vector<16x16xf32>
    %53 = tpu.transpose %51, [1, 0] : vector<16x16xf32> -> vector<16x16xf32>
    %cst_35 = arith.constant dense<0.000000e+00> : vector<16x16xf32>
    %54 = tpu.matmul %50, %53, %cst_35 {dimension_numbers = #tpu.dot_dimension_numbers<[1], [0], [0], [1], [0, 0, 1, 1], [], []>} : vector<16x16xf32>, vector<16x16xf32>, vector<16x16xf32> -> vector<16x16xf32>
    %cst_36 = arith.constant 2.500000e-01 : f32
    %55 = vector.broadcast %cst_36 : f32 to vector<16x16xf32>
    %56 = arith.mulf %54, %55 : vector<16x16xf32>
    %cst_37 = arith.constant dense<0xFF800000> : vector<16xf32>
    %57 = vector.multi_reduction <maximumf>, %56, %cst_37 [1] : vector<16x16xf32> to vector<16xf32>
    %58 = vector.shape_cast %57 : vector<16xf32> to vector<16x1xf32>
    %59 = vector.broadcast %58 : vector<16x1xf32> to vector<16x16xf32>
    %60 = arith.subf %56, %59 : vector<16x16xf32>
    %61 = math.exp %60 : vector<16x16xf32>
    %cst_38 = arith.constant dense<0.000000e+00> : vector<16xf32>
    %62 = vector.multi_reduction <add>, %61, %cst_38 [1] : vector<16x16xf32> to vector<16xf32>
    %63 = vector.shape_cast %62 : vector<16xf32> to vector<16x1xf32>
    %64 = tpu.reciprocal %63 {approx = true} : vector<16x1xf32> -> vector<16x1xf32>
    %65 = vector.broadcast %64 : vector<16x1xf32> to vector<16x16xf32>
    %66 = arith.mulf %61, %65 : vector<16x16xf32>
    %cst_39 = arith.constant dense<0.000000e+00> : vector<16x16xf32>
    %67 = tpu.matmul %66, %52, %cst_39 {dimension_numbers = #tpu.dot_dimension_numbers<[1], [0], [0], [1], [0, 0, 1, 1], [], []>} : vector<16x16xf32>, vector<16x16xf32>, vector<16x16xf32> -> vector<16x16xf32>
    %68 = tpu.concatenate %49, %67 in 1 : vector<16x16xf32>, vector<16x16xf32> -> vector<16x32xf32>
    %69 = vector.extract_strided_slice %31 {offsets = [16, 0], sizes = [16, 16], strides = [1, 1]} : vector<32x96xf32> to vector<16x16xf32>
    %70 = vector.extract_strided_slice %31 {offsets = [16, 32], sizes = [16, 16], strides = [1, 1]} : vector<32x96xf32> to vector<16x16xf32>
    %71 = vector.extract_strided_slice %31 {offsets = [16, 64], sizes = [16, 16], strides = [1, 1]} : vector<32x96xf32> to vector<16x16xf32>
    %72 = tpu.transpose %70, [1, 0] : vector<16x16xf32> -> vector<16x16xf32>
    %cst_40 = arith.constant dense<0.000000e+00> : vector<16x16xf32>
    %73 = tpu.matmul %69, %72, %cst_40 {dimension_numbers = #tpu.dot_dimension_numbers<[1], [0], [0], [1], [0, 0, 1, 1], [], []>} : vector<16x16xf32>, vector<16x16xf32>, vector<16x16xf32> -> vector<16x16xf32>
    %cst_41 = arith.constant 2.500000e-01 : f32
    %74 = vector.broadcast %cst_41 : f32 to vector<16x16xf32>
    %75 = arith.mulf %73, %74 : vector<16x16xf32>
    %cst_42 = arith.constant dense<0xFF800000> : vector<16xf32>
    %76 = vector.multi_reduction <maximumf>, %75, %cst_42 [1] : vector<16x16xf32> to vector<16xf32>
    %77 = vector.shape_cast %76 : vector<16xf32> to vector<16x1xf32>
    %78 = vector.broadcast %77 : vector<16x1xf32> to vector<16x16xf32>
    %79 = arith.subf %75, %78 : vector<16x16xf32>
    %80 = math.exp %79 : vector<16x16xf32>
    %cst_43 = arith.constant dense<0.000000e+00> : vector<16xf32>
    %81 = vector.multi_reduction <add>, %80, %cst_43 [1] : vector<16x16xf32> to vector<16xf32>
    %82 = vector.shape_cast %81 : vector<16xf32> to vector<16x1xf32>
    %83 = tpu.reciprocal %82 {approx = true} : vector<16x1xf32> -> vector<16x1xf32>
    %84 = vector.broadcast %83 : vector<16x1xf32> to vector<16x16xf32>
    %85 = arith.mulf %80, %84 : vector<16x16xf32>
    %cst_44 = arith.constant dense<0.000000e+00> : vector<16x16xf32>
    %86 = tpu.matmul %85, %71, %cst_44 {dimension_numbers = #tpu.dot_dimension_numbers<[1], [0], [0], [1], [0, 0, 1, 1], [], []>} : vector<16x16xf32>, vector<16x16xf32>, vector<16x16xf32> -> vector<16x16xf32>
    %87 = vector.extract_strided_slice %31 {offsets = [16, 16], sizes = [16, 16], strides = [1, 1]} : vector<32x96xf32> to vector<16x16xf32>
    %88 = vector.extract_strided_slice %31 {offsets = [16, 48], sizes = [16, 16], strides = [1, 1]} : vector<32x96xf32> to vector<16x16xf32>
    %89 = vector.extract_strided_slice %31 {offsets = [16, 80], sizes = [16, 16], strides = [1, 1]} : vector<32x96xf32> to vector<16x16xf32>
    %90 = tpu.transpose %88, [1, 0] : vector<16x16xf32> -> vector<16x16xf32>
    %cst_45 = arith.constant dense<0.000000e+00> : vector<16x16xf32>
    %91 = tpu.matmul %87, %90, %cst_45 {dimension_numbers = #tpu.dot_dimension_numbers<[1], [0], [0], [1], [0, 0, 1, 1], [], []>} : vector<16x16xf32>, vector<16x16xf32>, vector<16x16xf32> -> vector<16x16xf32>
    %cst_46 = arith.constant 2.500000e-01 : f32
    %92 = vector.broadcast %cst_46 : f32 to vector<16x16xf32>
    %93 = arith.mulf %91, %92 : vector<16x16xf32>
    %cst_47 = arith.constant dense<0xFF800000> : vector<16xf32>
    %94 = vector.multi_reduction <maximumf>, %93, %cst_47 [1] : vector<16x16xf32> to vector<16xf32>
    %95 = vector.shape_cast %94 : vector<16xf32> to vector<16x1xf32>
    %96 = vector.broadcast %95 : vector<16x1xf32> to vector<16x16xf32>
    %97 = arith.subf %93, %96 : vector<16x16xf32>
    %98 = math.exp %97 : vector<16x16xf32>
    %cst_48 = arith.constant dense<0.000000e+00> : vector<16xf32>
    %99 = vector.multi_reduction <add>, %98, %cst_48 [1] : vector<16x16xf32> to vector<16xf32>
    %100 = vector.shape_cast %99 : vector<16xf32> to vector<16x1xf32>
    %101 = tpu.reciprocal %100 {approx = true} : vector<16x1xf32> -> vector<16x1xf32>
    %102 = vector.broadcast %101 : vector<16x1xf32> to vector<16x16xf32>
    %103 = arith.mulf %98, %102 : vector<16x16xf32>
    %cst_49 = arith.constant dense<0.000000e+00> : vector<16x16xf32>
    %104 = tpu.matmul %103, %89, %cst_49 {dimension_numbers = #tpu.dot_dimension_numbers<[1], [0], [0], [1], [0, 0, 1, 1], [], []>} : vector<16x16xf32>, vector<16x16xf32>, vector<16x16xf32> -> vector<16x16xf32>
    %105 = tpu.concatenate %86, %104 in 1 : vector<16x16xf32>, vector<16x16xf32> -> vector<16x32xf32>
    %106 = tpu.concatenate %68, %105 in 0 : vector<16x32xf32>, vector<16x32xf32> -> vector<32x32xf32>
    %c0_50 = arith.constant 0 : index
    %c0_51 = arith.constant 0 : index
    %107 = vector.load %arg10[%c0_50, %c0_51] : memref<32x32xf32, #tpu.memory_space<vmem>>, vector<32x32xf32>
    %cst_52 = arith.constant dense<0.000000e+00> : vector<32x32xf32>
    %108 = tpu.matmul %106, %107, %cst_52 {dimension_numbers = #tpu.dot_dimension_numbers<[1], [0], [0], [1], [0, 0, 1, 1], [], []>} : vector<32x32xf32>, vector<32x32xf32>, vector<32x32xf32> -> vector<32x32xf32>
    %c0_53 = arith.constant 0 : index
    %c0_54 = arith.constant 0 : index
    %109 = vector.load %arg11[%c0_53, %c0_54] : memref<1x32xf32, #tpu.memory_space<vmem>>, vector<1x32xf32>
    %110 = vector.broadcast %109 : vector<1x32xf32> to vector<32x32xf32>
    %111 = arith.addf %108, %110 : vector<32x32xf32>
    %112 = arith.addf %111, %26 : vector<32x32xf32>
    %c0_55 = arith.constant 0 : index
    %c0_56 = arith.constant 0 : index
    %113 = vector.load %arg12[%c0_55, %c0_56] : memref<1x32xf32, #tpu.memory_space<vmem>>, vector<1x32xf32>
    %c0_57 = arith.constant 0 : index
    %c0_58 = arith.constant 0 : index
    %114 = vector.load %arg13[%c0_57, %c0_58] : memref<1x32xf32, #tpu.memory_space<vmem>>, vector<1x32xf32>
    %cst_59 = arith.constant dense<0.000000e+00> : vector<32xf32>
    %115 = vector.multi_reduction <add>, %112, %cst_59 [1] : vector<32x32xf32> to vector<32xf32>
    %116 = vector.shape_cast %115 : vector<32xf32> to vector<32x1xf32>
    %cst_60 = arith.constant 3.200000e+01 : f32
    %117 = vector.broadcast %cst_60 : f32 to vector<32x1xf32>
    %118 = arith.divf %116, %117 : vector<32x1xf32>
    %119 = vector.broadcast %118 : vector<32x1xf32> to vector<32x32xf32>
    %120 = arith.subf %112, %119 : vector<32x32xf32>
    %121 = arith.mulf %120, %120 : vector<32x32xf32>
    %cst_61 = arith.constant dense<0.000000e+00> : vector<32xf32>
    %122 = vector.multi_reduction <add>, %121, %cst_61 [1] : vector<32x32xf32> to vector<32xf32>
    %123 = vector.shape_cast %122 : vector<32xf32> to vector<32x1xf32>
    %cst_62 = arith.constant 3.200000e+01 : f32
    %124 = vector.broadcast %cst_62 : f32 to vector<32x1xf32>
    %125 = arith.divf %123, %124 : vector<32x1xf32>
    %126 = vector.broadcast %118 : vector<32x1xf32> to vector<32x32xf32>
    %127 = arith.subf %112, %126 : vector<32x32xf32>
    %cst_63 = arith.constant 9.99999974E-6 : f32
    %128 = vector.broadcast %cst_63 : f32 to vector<32x1xf32>
    %129 = arith.addf %125, %128 : vector<32x1xf32>
    %130 = math.rsqrt %129 : vector<32x1xf32>
    %131 = vector.broadcast %130 : vector<32x1xf32> to vector<32x32xf32>
    %132 = arith.mulf %127, %131 : vector<32x32xf32>
    %133 = vector.broadcast %113 : vector<1x32xf32> to vector<32x32xf32>
    %134 = arith.mulf %132, %133 : vector<32x32xf32>
    %135 = vector.broadcast %114 : vector<1x32xf32> to vector<32x32xf32>
    %136 = arith.addf %134, %135 : vector<32x32xf32>
    %137 = vector.extract_strided_slice %136 {offsets = [0, 0], sizes = [16, 32], strides = [1, 1]} : vector<32x32xf32> to vector<16x32xf32>
    %c8 = arith.constant 8 : index
    %c0_64 = arith.constant 0 : index
    %138 = vector.load %arg34[%c8, %c0_64] : memref<64x32xf32, #tpu.memory_space<vmem>>, vector<16x32xf32>
    tpu.vector_store %arg34[%c8, %c0_64], %137 {strides = array<i32>} : memref<64x32xf32, #tpu.memory_space<vmem>>, vector<16x32xf32>,
    %139 = vector.extract_strided_slice %136 {offsets = [16, 0], sizes = [16, 32], strides = [1, 1]} : vector<32x32xf32> to vector<16x32xf32>
    %c40 = arith.constant 40 : index
    %c0_65 = arith.constant 0 : index
    %140 = vector.load %arg34[%c40, %c0_65] : memref<64x32xf32, #tpu.memory_space<vmem>>, vector<16x32xf32>
    tpu.vector_store %arg34[%c40, %c0_65], %139 {strides = array<i32>} : memref<64x32xf32, #tpu.memory_space<vmem>>, vector<16x32xf32>,
    %c4 = arith.constant 4 : index
    %c0_66 = arith.constant 0 : index
    %141 = vector.load %arg34[%c4, %c0_66] : memref<64x32xf32, #tpu.memory_space<vmem>>, vector<16x32xf32>
    %c5 = arith.constant 5 : index
    %c0_67 = arith.constant 0 : index
    %142 = vector.load %arg34[%c5, %c0_67] : memref<64x32xf32, #tpu.memory_space<vmem>>, vector<16x32xf32>
    %c6 = arith.constant 6 : index
    %c0_68 = arith.constant 0 : index
    %143 = vector.load %arg34[%c6, %c0_68] : memref<64x32xf32, #tpu.memory_space<vmem>>, vector<16x32xf32>
    %c7 = arith.constant 7 : index
    %c0_69 = arith.constant 0 : index
    %144 = vector.load %arg34[%c7, %c0_69] : memref<64x32xf32, #tpu.memory_space<vmem>>, vector<16x32xf32>
    %c8_70 = arith.constant 8 : index
    %c0_71 = arith.constant 0 : index
    %145 = vector.load %arg34[%c8_70, %c0_71] : memref<64x32xf32, #tpu.memory_space<vmem>>, vector<16x32xf32>
    %c9 = arith.constant 9 : index
    %c0_72 = arith.constant 0 : index
    %146 = vector.load %arg34[%c9, %c0_72] : memref<64x32xf32, #tpu.memory_space<vmem>>, vector<16x32xf32>
    %c10 = arith.constant 10 : index
    %c0_73 = arith.constant 0 : index
    %147 = vector.load %arg34[%c10, %c0_73] : memref<64x32xf32, #tpu.memory_space<vmem>>, vector<16x32xf32>
    %c11 = arith.constant 11 : index
    %c0_74 = arith.constant 0 : index
    %148 = vector.load %arg34[%c11, %c0_74] : memref<64x32xf32, #tpu.memory_space<vmem>>, vector<16x32xf32>
    %c12 = arith.constant 12 : index
    %c0_75 = arith.constant 0 : index
    %149 = vector.load %arg34[%c12, %c0_75] : memref<64x32xf32, #tpu.memory_space<vmem>>, vector<16x32xf32>
    %150 = tpu.concatenate %141, %142, %143, %144, %145, %146, %147, %148, %149 in 1 : vector<16x32xf32>, vector<16x32xf32>, vector<16x32xf32>, vector<16x32xf32>, vector<16x32xf32>, vector<16x32xf32>, vector<16x32xf32>, vector<16x32xf32>, vector<16x32xf32> -> vector<16x288xf32>
    %c36 = arith.constant 36 : index
    %c0_76 = arith.constant 0 : index
    %151 = vector.load %arg34[%c36, %c0_76] : memref<64x32xf32, #tpu.memory_space<vmem>>, vector<16x32xf32>
    %c37 = arith.constant 37 : index
    %c0_77 = arith.constant 0 : index
    %152 = vector.load %arg34[%c37, %c0_77] : memref<64x32xf32, #tpu.memory_space<vmem>>, vector<16x32xf32>
    %c38 = arith.constant 38 : index
    %c0_78 = arith.constant 0 : index
    %153 = vector.load %arg34[%c38, %c0_78] : memref<64x32xf32, #tpu.memory_space<vmem>>, vector<16x32xf32>
    %c39 = arith.constant 39 : index
    %c0_79 = arith.constant 0 : index
    %154 = vector.load %arg34[%c39, %c0_79] : memref<64x32xf32, #tpu.memory_space<vmem>>, vector<16x32xf32>
    %c40_80 = arith.constant 40 : index
    %c0_81 = arith.constant 0 : index
    %155 = vector.load %arg34[%c40_80, %c0_81] : memref<64x32xf32, #tpu.memory_space<vmem>>, vector<16x32xf32>
    %c41 = arith.constant 41 : index
    %c0_82 = arith.constant 0 : index
    %156 = vector.load %arg34[%c41, %c0_82] : memref<64x32xf32, #tpu.memory_space<vmem>>, vector<16x32xf32>
    %c42 = arith.constant 42 : index
    %c0_83 = arith.constant 0 : index
    %157 = vector.load %arg34[%c42, %c0_83] : memref<64x32xf32, #tpu.memory_space<vmem>>, vector<16x32xf32>
    %c43 = arith.constant 43 : index
    %c0_84 = arith.constant 0 : index
    %158 = vector.load %arg34[%c43, %c0_84] : memref<64x32xf32, #tpu.memory_space<vmem>>, vector<16x32xf32>
    %c44 = arith.constant 44 : index
    %c0_85 = arith.constant 0 : index
    %159 = vector.load %arg34[%c44, %c0_85] : memref<64x32xf32, #tpu.memory_space<vmem>>, vector<16x32xf32>
    %160 = tpu.concatenate %151, %152, %153, %154, %155, %156, %157, %158, %159 in 1 : vector<16x32xf32>, vector<16x32xf32>, vector<16x32xf32>, vector<16x32xf32>, vector<16x32xf32>, vector<16x32xf32>, vector<16x32xf32>, vector<16x32xf32>, vector<16x32xf32> -> vector<16x288xf32>
    %161 = tpu.concatenate %150, %160 in 0 : vector<16x288xf32>, vector<16x288xf32> -> vector<32x288xf32>
    %c0_86 = arith.constant 0 : index
    %c0_87 = arith.constant 0 : index
    %162 = vector.load %arg14[%c0_86, %c0_87] : memref<288x64xf32, #tpu.memory_space<vmem>>, vector<288x64xf32>
    %cst_88 = arith.constant dense<0.000000e+00> : vector<32x64xf32>
    %163 = tpu.matmul %161, %162, %cst_88 {dimension_numbers = #tpu.dot_dimension_numbers<[1], [0], [0], [1], [0, 0, 1, 1], [], []>} : vector<32x288xf32>, vector<288x64xf32>, vector<32x64xf32> -> vector<32x64xf32>
    %c0_89 = arith.constant 0 : index
    %c0_90 = arith.constant 0 : index
    %164 = vector.load %arg15[%c0_89, %c0_90] : memref<1x64xf32, #tpu.memory_space<vmem>>, vector<1x64xf32>
    %165 = vector.broadcast %164 : vector<1x64xf32> to vector<32x64xf32>
    %166 = arith.addf %163, %165 : vector<32x64xf32>
    %cst_91 = arith.constant 0.000000e+00 : f32
    %167 = vector.broadcast %cst_91 : f32 to vector<32x64xf32>
    %168 = arith.maximumf %166, %167 : vector<32x64xf32>
    %c0_92 = arith.constant 0 : index
    %c0_93 = arith.constant 0 : index
    %169 = vector.load %arg16[%c0_92, %c0_93] : memref<64x32xf32, #tpu.memory_space<vmem>>, vector<64x32xf32>
    %cst_94 = arith.constant dense<0.000000e+00> : vector<32x32xf32>
    %170 = tpu.matmul %168, %169, %cst_94 {dimension_numbers = #tpu.dot_dimension_numbers<[1], [0], [0], [1], [0, 0, 1, 1], [], []>} : vector<32x64xf32>, vector<64x32xf32>, vector<32x32xf32> -> vector<32x32xf32>
    %c0_95 = arith.constant 0 : index
    %c0_96 = arith.constant 0 : index
    %171 = vector.load %arg17[%c0_95, %c0_96] : memref<1x32xf32, #tpu.memory_space<vmem>>, vector<1x32xf32>
    %172 = vector.broadcast %171 : vector<1x32xf32> to vector<32x32xf32>
    %173 = arith.addf %170, %172 : vector<32x32xf32>
    %174 = arith.addf %173, %136 : vector<32x32xf32>
    %c0_97 = arith.constant 0 : index
    %c0_98 = arith.constant 0 : index
    %175 = vector.load %arg18[%c0_97, %c0_98] : memref<1x32xf32, #tpu.memory_space<vmem>>, vector<1x32xf32>
    %c0_99 = arith.constant 0 : index
    %c0_100 = arith.constant 0 : index
    %176 = vector.load %arg19[%c0_99, %c0_100] : memref<1x32xf32, #tpu.memory_space<vmem>>, vector<1x32xf32>
    %cst_101 = arith.constant dense<0.000000e+00> : vector<32xf32>
    %177 = vector.multi_reduction <add>, %174, %cst_101 [1] : vector<32x32xf32> to vector<32xf32>
    %178 = vector.shape_cast %177 : vector<32xf32> to vector<32x1xf32>
    %cst_102 = arith.constant 3.200000e+01 : f32
    %179 = vector.broadcast %cst_102 : f32 to vector<32x1xf32>
    %180 = arith.divf %178, %179 : vector<32x1xf32>
    %181 = vector.broadcast %180 : vector<32x1xf32> to vector<32x32xf32>
    %182 = arith.subf %174, %181 : vector<32x32xf32>
    %183 = arith.mulf %182, %182 : vector<32x32xf32>
    %cst_103 = arith.constant dense<0.000000e+00> : vector<32xf32>
    %184 = vector.multi_reduction <add>, %183, %cst_103 [1] : vector<32x32xf32> to vector<32xf32>
    %185 = vector.shape_cast %184 : vector<32xf32> to vector<32x1xf32>
    %cst_104 = arith.constant 3.200000e+01 : f32
    %186 = vector.broadcast %cst_104 : f32 to vector<32x1xf32>
    %187 = arith.divf %185, %186 : vector<32x1xf32>
    %188 = vector.broadcast %180 : vector<32x1xf32> to vector<32x32xf32>
    %189 = arith.subf %174, %188 : vector<32x32xf32>
    %cst_105 = arith.constant 9.99999974E-6 : f32
    %190 = vector.broadcast %cst_105 : f32 to vector<32x1xf32>
    %191 = arith.addf %187, %190 : vector<32x1xf32>
    %192 = math.rsqrt %191 : vector<32x1xf32>
    %193 = vector.broadcast %192 : vector<32x1xf32> to vector<32x32xf32>
    %194 = arith.mulf %189, %193 : vector<32x32xf32>
    %195 = vector.broadcast %175 : vector<1x32xf32> to vector<32x32xf32>
    %196 = arith.mulf %194, %195 : vector<32x32xf32>
    %197 = vector.broadcast %176 : vector<1x32xf32> to vector<32x32xf32>
    %198 = arith.addf %196, %197 : vector<32x32xf32>
    %c0_106 = arith.constant 0 : index
    %c0_107 = arith.constant 0 : index
    %199 = vector.load %arg20[%c0_106, %c0_107] : memref<32x96xf32, #tpu.memory_space<vmem>>, vector<32x96xf32>
    %cst_108 = arith.constant dense<0.000000e+00> : vector<32x96xf32>
    %200 = tpu.matmul %198, %199, %cst_108 {dimension_numbers = #tpu.dot_dimension_numbers<[1], [0], [0], [1], [0, 0, 1, 1], [], []>} : vector<32x32xf32>, vector<32x96xf32>, vector<32x96xf32> -> vector<32x96xf32>
    %c0_109 = arith.constant 0 : index
    %c0_110 = arith.constant 0 : index
    %201 = vector.load %arg21[%c0_109, %c0_110] : memref<1x96xf32, #tpu.memory_space<vmem>>, vector<1x96xf32>
    %202 = vector.broadcast %201 : vector<1x96xf32> to vector<32x96xf32>
    %203 = arith.addf %200, %202 : vector<32x96xf32>
    %204 = vector.extract_strided_slice %203 {offsets = [0, 0], sizes = [16, 16], strides = [1, 1]} : vector<32x96xf32> to vector<16x16xf32>
    %205 = vector.extract_strided_slice %203 {offsets = [0, 32], sizes = [16, 16], strides = [1, 1]} : vector<32x96xf32> to vector<16x16xf32>
    %206 = vector.extract_strided_slice %203 {offsets = [0, 64], sizes = [16, 16], strides = [1, 1]} : vector<32x96xf32> to vector<16x16xf32>
    %207 = tpu.transpose %205, [1, 0] : vector<16x16xf32> -> vector<16x16xf32>
    %cst_111 = arith.constant dense<0.000000e+00> : vector<16x16xf32>
    %208 = tpu.matmul %204, %207, %cst_111 {dimension_numbers = #tpu.dot_dimension_numbers<[1], [0], [0], [1], [0, 0, 1, 1], [], []>} : vector<16x16xf32>, vector<16x16xf32>, vector<16x16xf32> -> vector<16x16xf32>
    %cst_112 = arith.constant 2.500000e-01 : f32
    %209 = vector.broadcast %cst_112 : f32 to vector<16x16xf32>
    %210 = arith.mulf %208, %209 : vector<16x16xf32>
    %cst_113 = arith.constant dense<0xFF800000> : vector<16xf32>
    %211 = vector.multi_reduction <maximumf>, %210, %cst_113 [1] : vector<16x16xf32> to vector<16xf32>
    %212 = vector.shape_cast %211 : vector<16xf32> to vector<16x1xf32>
    %213 = vector.broadcast %212 : vector<16x1xf32> to vector<16x16xf32>
    %214 = arith.subf %210, %213 : vector<16x16xf32>
    %215 = math.exp %214 : vector<16x16xf32>
    %cst_114 = arith.constant dense<0.000000e+00> : vector<16xf32>
    %216 = vector.multi_reduction <add>, %215, %cst_114 [1] : vector<16x16xf32> to vector<16xf32>
    %217 = vector.shape_cast %216 : vector<16xf32> to vector<16x1xf32>
    %218 = tpu.reciprocal %217 {approx = true} : vector<16x1xf32> -> vector<16x1xf32>
    %219 = vector.broadcast %218 : vector<16x1xf32> to vector<16x16xf32>
    %220 = arith.mulf %215, %219 : vector<16x16xf32>
    %cst_115 = arith.constant dense<0.000000e+00> : vector<16x16xf32>
    %221 = tpu.matmul %220, %206, %cst_115 {dimension_numbers = #tpu.dot_dimension_numbers<[1], [0], [0], [1], [0, 0, 1, 1], [], []>} : vector<16x16xf32>, vector<16x16xf32>, vector<16x16xf32> -> vector<16x16xf32>
    %222 = vector.extract_strided_slice %203 {offsets = [0, 16], sizes = [16, 16], strides = [1, 1]} : vector<32x96xf32> to vector<16x16xf32>
    %223 = vector.extract_strided_slice %203 {offsets = [0, 48], sizes = [16, 16], strides = [1, 1]} : vector<32x96xf32> to vector<16x16xf32>
    %224 = vector.extract_strided_slice %203 {offsets = [0, 80], sizes = [16, 16], strides = [1, 1]} : vector<32x96xf32> to vector<16x16xf32>
    %225 = tpu.transpose %223, [1, 0] : vector<16x16xf32> -> vector<16x16xf32>
    %cst_116 = arith.constant dense<0.000000e+00> : vector<16x16xf32>
    %226 = tpu.matmul %222, %225, %cst_116 {dimension_numbers = #tpu.dot_dimension_numbers<[1], [0], [0], [1], [0, 0, 1, 1], [], []>} : vector<16x16xf32>, vector<16x16xf32>, vector<16x16xf32> -> vector<16x16xf32>
    %cst_117 = arith.constant 2.500000e-01 : f32
    %227 = vector.broadcast %cst_117 : f32 to vector<16x16xf32>
    %228 = arith.mulf %226, %227 : vector<16x16xf32>
    %cst_118 = arith.constant dense<0xFF800000> : vector<16xf32>
    %229 = vector.multi_reduction <maximumf>, %228, %cst_118 [1] : vector<16x16xf32> to vector<16xf32>
    %230 = vector.shape_cast %229 : vector<16xf32> to vector<16x1xf32>
    %231 = vector.broadcast %230 : vector<16x1xf32> to vector<16x16xf32>
    %232 = arith.subf %228, %231 : vector<16x16xf32>
    %233 = math.exp %232 : vector<16x16xf32>
    %cst_119 = arith.constant dense<0.000000e+00> : vector<16xf32>
    %234 = vector.multi_reduction <add>, %233, %cst_119 [1] : vector<16x16xf32> to vector<16xf32>
    %235 = vector.shape_cast %234 : vector<16xf32> to vector<16x1xf32>
    %236 = tpu.reciprocal %235 {approx = true} : vector<16x1xf32> -> vector<16x1xf32>
    %237 = vector.broadcast %236 : vector<16x1xf32> to vector<16x16xf32>
    %238 = arith.mulf %233, %237 : vector<16x16xf32>
    %cst_120 = arith.constant dense<0.000000e+00> : vector<16x16xf32>
    %239 = tpu.matmul %238, %224, %cst_120 {dimension_numbers = #tpu.dot_dimension_numbers<[1], [0], [0], [1], [0, 0, 1, 1], [], []>} : vector<16x16xf32>, vector<16x16xf32>, vector<16x16xf32> -> vector<16x16xf32>
    %240 = tpu.concatenate %221, %239 in 1 : vector<16x16xf32>, vector<16x16xf32> -> vector<16x32xf32>
    %241 = vector.extract_strided_slice %203 {offsets = [16, 0], sizes = [16, 16], strides = [1, 1]} : vector<32x96xf32> to vector<16x16xf32>
    %242 = vector.extract_strided_slice %203 {offsets = [16, 32], sizes = [16, 16], strides = [1, 1]} : vector<32x96xf32> to vector<16x16xf32>
    %243 = vector.extract_strided_slice %203 {offsets = [16, 64], sizes = [16, 16], strides = [1, 1]} : vector<32x96xf32> to vector<16x16xf32>
    %244 = tpu.transpose %242, [1, 0] : vector<16x16xf32> -> vector<16x16xf32>
    %cst_121 = arith.constant dense<0.000000e+00> : vector<16x16xf32>
    %245 = tpu.matmul %241, %244, %cst_121 {dimension_numbers = #tpu.dot_dimension_numbers<[1], [0], [0], [1], [0, 0, 1, 1], [], []>} : vector<16x16xf32>, vector<16x16xf32>, vector<16x16xf32> -> vector<16x16xf32>
    %cst_122 = arith.constant 2.500000e-01 : f32
    %246 = vector.broadcast %cst_122 : f32 to vector<16x16xf32>
    %247 = arith.mulf %245, %246 : vector<16x16xf32>
    %cst_123 = arith.constant dense<0xFF800000> : vector<16xf32>
    %248 = vector.multi_reduction <maximumf>, %247, %cst_123 [1] : vector<16x16xf32> to vector<16xf32>
    %249 = vector.shape_cast %248 : vector<16xf32> to vector<16x1xf32>
    %250 = vector.broadcast %249 : vector<16x1xf32> to vector<16x16xf32>
    %251 = arith.subf %247, %250 : vector<16x16xf32>
    %252 = math.exp %251 : vector<16x16xf32>
    %cst_124 = arith.constant dense<0.000000e+00> : vector<16xf32>
    %253 = vector.multi_reduction <add>, %252, %cst_124 [1] : vector<16x16xf32> to vector<16xf32>
    %254 = vector.shape_cast %253 : vector<16xf32> to vector<16x1xf32>
    %255 = tpu.reciprocal %254 {approx = true} : vector<16x1xf32> -> vector<16x1xf32>
    %256 = vector.broadcast %255 : vector<16x1xf32> to vector<16x16xf32>
    %257 = arith.mulf %252, %256 : vector<16x16xf32>
    %cst_125 = arith.constant dense<0.000000e+00> : vector<16x16xf32>
    %258 = tpu.matmul %257, %243, %cst_125 {dimension_numbers = #tpu.dot_dimension_numbers<[1], [0], [0], [1], [0, 0, 1, 1], [], []>} : vector<16x16xf32>, vector<16x16xf32>, vector<16x16xf32> -> vector<16x16xf32>
    %259 = vector.extract_strided_slice %203 {offsets = [16, 16], sizes = [16, 16], strides = [1, 1]} : vector<32x96xf32> to vector<16x16xf32>
    %260 = vector.extract_strided_slice %203 {offsets = [16, 48], sizes = [16, 16], strides = [1, 1]} : vector<32x96xf32> to vector<16x16xf32>
    %261 = vector.extract_strided_slice %203 {offsets = [16, 80], sizes = [16, 16], strides = [1, 1]} : vector<32x96xf32> to vector<16x16xf32>
    %262 = tpu.transpose %260, [1, 0] : vector<16x16xf32> -> vector<16x16xf32>
    %cst_126 = arith.constant dense<0.000000e+00> : vector<16x16xf32>
    %263 = tpu.matmul %259, %262, %cst_126 {dimension_numbers = #tpu.dot_dimension_numbers<[1], [0], [0], [1], [0, 0, 1, 1], [], []>} : vector<16x16xf32>, vector<16x16xf32>, vector<16x16xf32> -> vector<16x16xf32>
    %cst_127 = arith.constant 2.500000e-01 : f32
    %264 = vector.broadcast %cst_127 : f32 to vector<16x16xf32>
    %265 = arith.mulf %263, %264 : vector<16x16xf32>
    %cst_128 = arith.constant dense<0xFF800000> : vector<16xf32>
    %266 = vector.multi_reduction <maximumf>, %265, %cst_128 [1] : vector<16x16xf32> to vector<16xf32>
    %267 = vector.shape_cast %266 : vector<16xf32> to vector<16x1xf32>
    %268 = vector.broadcast %267 : vector<16x1xf32> to vector<16x16xf32>
    %269 = arith.subf %265, %268 : vector<16x16xf32>
    %270 = math.exp %269 : vector<16x16xf32>
    %cst_129 = arith.constant dense<0.000000e+00> : vector<16xf32>
    %271 = vector.multi_reduction <add>, %270, %cst_129 [1] : vector<16x16xf32> to vector<16xf32>
    %272 = vector.shape_cast %271 : vector<16xf32> to vector<16x1xf32>
    %273 = tpu.reciprocal %272 {approx = true} : vector<16x1xf32> -> vector<16x1xf32>
    %274 = vector.broadcast %273 : vector<16x1xf32> to vector<16x16xf32>
    %275 = arith.mulf %270, %274 : vector<16x16xf32>
    %cst_130 = arith.constant dense<0.000000e+00> : vector<16x16xf32>
    %276 = tpu.matmul %275, %261, %cst_130 {dimension_numbers = #tpu.dot_dimension_numbers<[1], [0], [0], [1], [0, 0, 1, 1], [], []>} : vector<16x16xf32>, vector<16x16xf32>, vector<16x16xf32> -> vector<16x16xf32>
    %277 = tpu.concatenate %258, %276 in 1 : vector<16x16xf32>, vector<16x16xf32> -> vector<16x32xf32>
    %278 = tpu.concatenate %240, %277 in 0 : vector<16x32xf32>, vector<16x32xf32> -> vector<32x32xf32>
    %c0_131 = arith.constant 0 : index
    %c0_132 = arith.constant 0 : index
    %279 = vector.load %arg22[%c0_131, %c0_132] : memref<32x32xf32, #tpu.memory_space<vmem>>, vector<32x32xf32>
    %cst_133 = arith.constant dense<0.000000e+00> : vector<32x32xf32>
    %280 = tpu.matmul %278, %279, %cst_133 {dimension_numbers = #tpu.dot_dimension_numbers<[1], [0], [0], [1], [0, 0, 1, 1], [], []>} : vector<32x32xf32>, vector<32x32xf32>, vector<32x32xf32> -> vector<32x32xf32>
    %c0_134 = arith.constant 0 : index
    %c0_135 = arith.constant 0 : index
    %281 = vector.load %arg23[%c0_134, %c0_135] : memref<1x32xf32, #tpu.memory_space<vmem>>, vector<1x32xf32>
    %282 = vector.broadcast %281 : vector<1x32xf32> to vector<32x32xf32>
    %283 = arith.addf %280, %282 : vector<32x32xf32>
    %284 = arith.addf %283, %198 : vector<32x32xf32>
    %c0_136 = arith.constant 0 : index
    %c0_137 = arith.constant 0 : index
    %285 = vector.load %arg24[%c0_136, %c0_137] : memref<1x32xf32, #tpu.memory_space<vmem>>, vector<1x32xf32>
    %c0_138 = arith.constant 0 : index
    %c0_139 = arith.constant 0 : index
    %286 = vector.load %arg25[%c0_138, %c0_139] : memref<1x32xf32, #tpu.memory_space<vmem>>, vector<1x32xf32>
    %cst_140 = arith.constant dense<0.000000e+00> : vector<32xf32>
    %287 = vector.multi_reduction <add>, %284, %cst_140 [1] : vector<32x32xf32> to vector<32xf32>
    %288 = vector.shape_cast %287 : vector<32xf32> to vector<32x1xf32>
    %cst_141 = arith.constant 3.200000e+01 : f32
    %289 = vector.broadcast %cst_141 : f32 to vector<32x1xf32>
    %290 = arith.divf %288, %289 : vector<32x1xf32>
    %291 = vector.broadcast %290 : vector<32x1xf32> to vector<32x32xf32>
    %292 = arith.subf %284, %291 : vector<32x32xf32>
    %293 = arith.mulf %292, %292 : vector<32x32xf32>
    %cst_142 = arith.constant dense<0.000000e+00> : vector<32xf32>
    %294 = vector.multi_reduction <add>, %293, %cst_142 [1] : vector<32x32xf32> to vector<32xf32>
    %295 = vector.shape_cast %294 : vector<32xf32> to vector<32x1xf32>
    %cst_143 = arith.constant 3.200000e+01 : f32
    %296 = vector.broadcast %cst_143 : f32 to vector<32x1xf32>
    %297 = arith.divf %295, %296 : vector<32x1xf32>
    %298 = vector.broadcast %290 : vector<32x1xf32> to vector<32x32xf32>
    %299 = arith.subf %284, %298 : vector<32x32xf32>
    %cst_144 = arith.constant 9.99999974E-6 : f32
    %300 = vector.broadcast %cst_144 : f32 to vector<32x1xf32>
    %301 = arith.addf %297, %300 : vector<32x1xf32>
    %302 = math.rsqrt %301 : vector<32x1xf32>
    %303 = vector.broadcast %302 : vector<32x1xf32> to vector<32x32xf32>
    %304 = arith.mulf %299, %303 : vector<32x32xf32>
    %305 = vector.broadcast %285 : vector<1x32xf32> to vector<32x32xf32>
    %306 = arith.mulf %304, %305 : vector<32x32xf32>
    %307 = vector.broadcast %286 : vector<1x32xf32> to vector<32x32xf32>
    %308 = arith.addf %306, %307 : vector<32x32xf32>
    %309 = vector.extract_strided_slice %308 {offsets = [0, 0], sizes = [16, 32], strides = [1, 1]} : vector<32x32xf32> to vector<16x32xf32>
    %c8_145 = arith.constant 8 : index
    %c0_146 = arith.constant 0 : index
    %310 = vector.load %arg34[%c8_145, %c0_146] : memref<64x32xf32, #tpu.memory_space<vmem>>, vector<16x32xf32>
    tpu.vector_store %arg34[%c8_145, %c0_146], %309 {strides = array<i32>} : memref<64x32xf32, #tpu.memory_space<vmem>>, vector<16x32xf32>,
    %311 = vector.extract_strided_slice %308 {offsets = [16, 0], sizes = [16, 32], strides = [1, 1]} : vector<32x32xf32> to vector<16x32xf32>
    %c40_147 = arith.constant 40 : index
    %c0_148 = arith.constant 0 : index
    %312 = vector.load %arg34[%c40_147, %c0_148] : memref<64x32xf32, #tpu.memory_space<vmem>>, vector<16x32xf32>
    tpu.vector_store %arg34[%c40_147, %c0_148], %311 {strides = array<i32>} : memref<64x32xf32, #tpu.memory_space<vmem>>, vector<16x32xf32>,
    %c4_149 = arith.constant 4 : index
    %c0_150 = arith.constant 0 : index
    %313 = vector.load %arg34[%c4_149, %c0_150] : memref<64x32xf32, #tpu.memory_space<vmem>>, vector<16x32xf32>
    %c5_151 = arith.constant 5 : index
    %c0_152 = arith.constant 0 : index
    %314 = vector.load %arg34[%c5_151, %c0_152] : memref<64x32xf32, #tpu.memory_space<vmem>>, vector<16x32xf32>
    %c6_153 = arith.constant 6 : index
    %c0_154 = arith.constant 0 : index
    %315 = vector.load %arg34[%c6_153, %c0_154] : memref<64x32xf32, #tpu.memory_space<vmem>>, vector<16x32xf32>
    %c7_155 = arith.constant 7 : index
    %c0_156 = arith.constant 0 : index
    %316 = vector.load %arg34[%c7_155, %c0_156] : memref<64x32xf32, #tpu.memory_space<vmem>>, vector<16x32xf32>
    %c8_157 = arith.constant 8 : index
    %c0_158 = arith.constant 0 : index
    %317 = vector.load %arg34[%c8_157, %c0_158] : memref<64x32xf32, #tpu.memory_space<vmem>>, vector<16x32xf32>
    %c9_159 = arith.constant 9 : index
    %c0_160 = arith.constant 0 : index
    %318 = vector.load %arg34[%c9_159, %c0_160] : memref<64x32xf32, #tpu.memory_space<vmem>>, vector<16x32xf32>
    %c10_161 = arith.constant 10 : index
    %c0_162 = arith.constant 0 : index
    %319 = vector.load %arg34[%c10_161, %c0_162] : memref<64x32xf32, #tpu.memory_space<vmem>>, vector<16x32xf32>
    %c11_163 = arith.constant 11 : index
    %c0_164 = arith.constant 0 : index
    %320 = vector.load %arg34[%c11_163, %c0_164] : memref<64x32xf32, #tpu.memory_space<vmem>>, vector<16x32xf32>
    %c12_165 = arith.constant 12 : index
    %c0_166 = arith.constant 0 : index
    %321 = vector.load %arg34[%c12_165, %c0_166] : memref<64x32xf32, #tpu.memory_space<vmem>>, vector<16x32xf32>
    %322 = tpu.concatenate %313, %314, %315, %316, %317, %318, %319, %320, %321 in 1 : vector<16x32xf32>, vector<16x32xf32>, vector<16x32xf32>, vector<16x32xf32>, vector<16x32xf32>, vector<16x32xf32>, vector<16x32xf32>, vector<16x32xf32>, vector<16x32xf32> -> vector<16x288xf32>
    %c36_167 = arith.constant 36 : index
    %c0_168 = arith.constant 0 : index
    %323 = vector.load %arg34[%c36_167, %c0_168] : memref<64x32xf32, #tpu.memory_space<vmem>>, vector<16x32xf32>
    %c37_169 = arith.constant 37 : index
    %c0_170 = arith.constant 0 : index
    %324 = vector.load %arg34[%c37_169, %c0_170] : memref<64x32xf32, #tpu.memory_space<vmem>>, vector<16x32xf32>
    %c38_171 = arith.constant 38 : index
    %c0_172 = arith.constant 0 : index
    %325 = vector.load %arg34[%c38_171, %c0_172] : memref<64x32xf32, #tpu.memory_space<vmem>>, vector<16x32xf32>
    %c39_173 = arith.constant 39 : index
    %c0_174 = arith.constant 0 : index
    %326 = vector.load %arg34[%c39_173, %c0_174] : memref<64x32xf32, #tpu.memory_space<vmem>>, vector<16x32xf32>
    %c40_175 = arith.constant 40 : index
    %c0_176 = arith.constant 0 : index
    %327 = vector.load %arg34[%c40_175, %c0_176] : memref<64x32xf32, #tpu.memory_space<vmem>>, vector<16x32xf32>
    %c41_177 = arith.constant 41 : index
    %c0_178 = arith.constant 0 : index
    %328 = vector.load %arg34[%c41_177, %c0_178] : memref<64x32xf32, #tpu.memory_space<vmem>>, vector<16x32xf32>
    %c42_179 = arith.constant 42 : index
    %c0_180 = arith.constant 0 : index
    %329 = vector.load %arg34[%c42_179, %c0_180] : memref<64x32xf32, #tpu.memory_space<vmem>>, vector<16x32xf32>
    %c43_181 = arith.constant 43 : index
    %c0_182 = arith.constant 0 : index
    %330 = vector.load %arg34[%c43_181, %c0_182] : memref<64x32xf32, #tpu.memory_space<vmem>>, vector<16x32xf32>
    %c44_183 = arith.constant 44 : index
    %c0_184 = arith.constant 0 : index
    %331 = vector.load %arg34[%c44_183, %c0_184] : memref<64x32xf32, #tpu.memory_space<vmem>>, vector<16x32xf32>
    %332 = tpu.concatenate %323, %324, %325, %326, %327, %328, %329, %330, %331 in 1 : vector<16x32xf32>, vector<16x32xf32>, vector<16x32xf32>, vector<16x32xf32>, vector<16x32xf32>, vector<16x32xf32>, vector<16x32xf32>, vector<16x32xf32>, vector<16x32xf32> -> vector<16x288xf32>
    %333 = tpu.concatenate %322, %332 in 0 : vector<16x288xf32>, vector<16x288xf32> -> vector<32x288xf32>
    %c0_185 = arith.constant 0 : index
    %c0_186 = arith.constant 0 : index
    %334 = vector.load %arg26[%c0_185, %c0_186] : memref<288x64xf32, #tpu.memory_space<vmem>>, vector<288x64xf32>
    %cst_187 = arith.constant dense<0.000000e+00> : vector<32x64xf32>
    %335 = tpu.matmul %333, %334, %cst_187 {dimension_numbers = #tpu.dot_dimension_numbers<[1], [0], [0], [1], [0, 0, 1, 1], [], []>} : vector<32x288xf32>, vector<288x64xf32>, vector<32x64xf32> -> vector<32x64xf32>
    %c0_188 = arith.constant 0 : index
    %c0_189 = arith.constant 0 : index
    %336 = vector.load %arg27[%c0_188, %c0_189] : memref<1x64xf32, #tpu.memory_space<vmem>>, vector<1x64xf32>
    %337 = vector.broadcast %336 : vector<1x64xf32> to vector<32x64xf32>
    %338 = arith.addf %335, %337 : vector<32x64xf32>
    %cst_190 = arith.constant 0.000000e+00 : f32
    %339 = vector.broadcast %cst_190 : f32 to vector<32x64xf32>
    %340 = arith.maximumf %338, %339 : vector<32x64xf32>
    %c0_191 = arith.constant 0 : index
    %c0_192 = arith.constant 0 : index
    %341 = vector.load %arg28[%c0_191, %c0_192] : memref<64x32xf32, #tpu.memory_space<vmem>>, vector<64x32xf32>
    %cst_193 = arith.constant dense<0.000000e+00> : vector<32x32xf32>
    %342 = tpu.matmul %340, %341, %cst_193 {dimension_numbers = #tpu.dot_dimension_numbers<[1], [0], [0], [1], [0, 0, 1, 1], [], []>} : vector<32x64xf32>, vector<64x32xf32>, vector<32x32xf32> -> vector<32x32xf32>
    %c0_194 = arith.constant 0 : index
    %c0_195 = arith.constant 0 : index
    %343 = vector.load %arg29[%c0_194, %c0_195] : memref<1x32xf32, #tpu.memory_space<vmem>>, vector<1x32xf32>
    %344 = vector.broadcast %343 : vector<1x32xf32> to vector<32x32xf32>
    %345 = arith.addf %342, %344 : vector<32x32xf32>
    %346 = arith.addf %345, %308 : vector<32x32xf32>
    %c0_196 = arith.constant 0 : index
    %c0_197 = arith.constant 0 : index
    %347 = vector.load %arg30[%c0_196, %c0_197] : memref<1x32xf32, #tpu.memory_space<vmem>>, vector<1x32xf32>
    %c0_198 = arith.constant 0 : index
    %c0_199 = arith.constant 0 : index
    %348 = vector.load %arg31[%c0_198, %c0_199] : memref<1x32xf32, #tpu.memory_space<vmem>>, vector<1x32xf32>
    %cst_200 = arith.constant dense<0.000000e+00> : vector<32xf32>
    %349 = vector.multi_reduction <add>, %346, %cst_200 [1] : vector<32x32xf32> to vector<32xf32>
    %350 = vector.shape_cast %349 : vector<32xf32> to vector<32x1xf32>
    %cst_201 = arith.constant 3.200000e+01 : f32
    %351 = vector.broadcast %cst_201 : f32 to vector<32x1xf32>
    %352 = arith.divf %350, %351 : vector<32x1xf32>
    %353 = vector.broadcast %352 : vector<32x1xf32> to vector<32x32xf32>
    %354 = arith.subf %346, %353 : vector<32x32xf32>
    %355 = arith.mulf %354, %354 : vector<32x32xf32>
    %cst_202 = arith.constant dense<0.000000e+00> : vector<32xf32>
    %356 = vector.multi_reduction <add>, %355, %cst_202 [1] : vector<32x32xf32> to vector<32xf32>
    %357 = vector.shape_cast %356 : vector<32xf32> to vector<32x1xf32>
    %cst_203 = arith.constant 3.200000e+01 : f32
    %358 = vector.broadcast %cst_203 : f32 to vector<32x1xf32>
    %359 = arith.divf %357, %358 : vector<32x1xf32>
    %360 = vector.broadcast %352 : vector<32x1xf32> to vector<32x32xf32>
    %361 = arith.subf %346, %360 : vector<32x32xf32>
    %cst_204 = arith.constant 9.99999974E-6 : f32
    %362 = vector.broadcast %cst_204 : f32 to vector<32x1xf32>
    %363 = arith.addf %359, %362 : vector<32x1xf32>
    %364 = math.rsqrt %363 : vector<32x1xf32>
    %365 = vector.broadcast %364 : vector<32x1xf32> to vector<32x32xf32>
    %366 = arith.mulf %361, %365 : vector<32x32xf32>
    %367 = vector.broadcast %347 : vector<1x32xf32> to vector<32x32xf32>
    %368 = arith.mulf %366, %367 : vector<32x32xf32>
    %369 = vector.broadcast %348 : vector<1x32xf32> to vector<32x32xf32>
    %370 = arith.addf %368, %369 : vector<32x32xf32>
    %c0_205 = arith.constant 0 : index
    %c0_206 = arith.constant 0 : index
    %371 = vector.load %arg33[%c0_205, %c0_206] : memref<32x32xf32, #tpu.memory_space<vmem>>, vector<32x32xf32>
    tpu.vector_store %arg33[%c0_205, %c0_206], %370 {strides = array<i32>} : memref<32x32xf32, #tpu.memory_space<vmem>>, vector<32x32xf32>,
    return
  }
}

</mosaic_0001>

<llo_original>
// kernel: encoder_forward.1
$region0: #{encoder_forward.1}
  #allocation0 [shape = 'u32[]', space=smem, size = 0x4, offset = 0x4, fixed_abs, tag = 'smem constant byte address 0x4 - core index']
  #allocation1 [shape = 'u32[144,128]{1,0:T(1,128)}', space=vmem, size = 0x12000, scoped, tag = 'internal scratch']
  #allocation2 [shape = 'f32[64,32]{1,0:T(8,128)}', space=vmem, size = 0x8000, scoped, tag = 'scratch operand']
  %s0 = inlined_call_operand.smem [shape: u32[34], index: -1, kind: input, shape index: {}]
  %s1 = sld [smem:[%s0]]
  %s2 = scalar_lea.smem %s0, 1
  %s3 = sld [smem:[%s2]]
  %s4 = scalar_lea.smem %s0, 2
  %s5 = sld [smem:[%s4]]
  %s6 = scalar_lea.smem %s0, 3
  %s7 = sld [smem:[%s6]]
  %s8 = scalar_lea.smem %s0, 4
  %s9 = sld [smem:[%s8]]
  %s10 = scalar_lea.smem %s0, 5
  %s11 = sld [smem:[%s10]]
  %s12 = scalar_lea.smem %s0, 6
  %s13 = sld [smem:[%s12]]
  %s14 = scalar_lea.smem %s0, 7
  %s15 = sld [smem:[%s14]]
  %s16 = scalar_lea.smem %s0, 8
  %s17 = sld [smem:[%s16]]
  %s18 = scalar_lea.smem %s0, 9
  %s19 = sld [smem:[%s18]]
  %s20 = scalar_lea.smem %s0, 10
  %s21 = sld [smem:[%s20]]
  %s22 = scalar_lea.smem %s0, 11
  %s23 = sld [smem:[%s22]]
  %s24 = scalar_lea.smem %s0, 12
  %s25 = sld [smem:[%s24]]
  %s26 = scalar_lea.smem %s0, 13
  %s27 = sld [smem:[%s26]]
  %s28 = scalar_lea.smem %s0, 14
  %s29 = sld [smem:[%s28]]
  %s30 = scalar_lea.smem %s0, 15
  %s31 = sld [smem:[%s30]]
  %s32 = scalar_lea.smem %s0, 16
  %s33 = sld [smem:[%s32]]
  %s34 = scalar_lea.smem %s0, 17
  %s35 = sld [smem:[%s34]]
  %s36 = scalar_lea.smem %s0, 18
  %s37 = sld [smem:[%s36]]
  %s38 = scalar_lea.smem %s0, 19
  %s39 = sld [smem:[%s38]]
  %s40 = scalar_lea.smem %s0, 20
  %s41 = sld [smem:[%s40]]
  %s42 = scalar_lea.smem %s0, 21
  %s43 = sld [smem:[%s42]]
  %s44 = scalar_lea.smem %s0, 22
  %s45 = sld [smem:[%s44]]
  %s46 = scalar_lea.smem %s0, 23
  %s47 = sld [smem:[%s46]]
  %s48 = scalar_lea.smem %s0, 24
  %s49 = sld [smem:[%s48]]
  %s50 = scalar_lea.smem %s0, 25
  %s51 = sld [smem:[%s50]]
  %s52 = scalar_lea.smem %s0, 26
  %s53 = sld [smem:[%s52]]
  %s54 = scalar_lea.smem %s0, 27
  %s55 = sld [smem:[%s54]]
  %s56 = scalar_lea.smem %s0, 28
  %s57 = sld [smem:[%s56]]
  %s58 = scalar_lea.smem %s0, 29
  %s59 = sld [smem:[%s58]]
  %s60 = scalar_lea.smem %s0, 30
  %s61 = sld [smem:[%s60]]
  %s62 = scalar_lea.smem %s0, 31
  %s63 = sld [smem:[%s62]]
  %s64 = scalar_lea.smem %s0, 32
  %s65 = sld [smem:[%s64]]
  %s66 = scalar_lea.smem %s0, 33
  %s67 = sld [smem:[%s66]]
  %68 = xla_tuple %s65, %s67
  %s69 = sld [smem:[#allocation0]]
  $region222: #{encoder_forward.1} parent=0
    _
  %s71 = ssub.s32 1, %s69
  %s72 = scalar_select 0, %s71, %s69
  $region1: #{encoder_forward.1} parent=0
    #allocation3 [shape = 'u8[16384]{0}', space=vmem, size = 0x4000, scoped, tag = 'input window, operand 0, single buffered']
    #allocation4 [shape = 's32[1]{0}', space=sflag, size = 0x4, scoped, tag = 'scoped memory for encoder_forward.1']
    #allocation5 [shape = 's32[1]{0}', space=sflag, size = 0x4, scoped, tag = 'scoped memory for encoder_forward.1']
    #allocation6 [shape = 'u8[12288]{0}', space=vmem, size = 0x3000, scoped, tag = 'input window, operand 2, single buffered']
    #allocation7 [shape = 's32[1]{0}', space=sflag, size = 0x4, scoped, tag = 'scoped memory for encoder_forward.1']
    #allocation8 [shape = 'u8[512]{0}', space=vmem, size = 0x400, scoped, tag = 'input window, operand 7, single buffered']
    #allocation9 [shape = 'u8[16384]{0}', space=vmem, size = 0x4000, scoped, tag = 'input window, operand 10, single buffered']
    #allocation10 [shape = 's32[1]{0}', space=sflag, size = 0x4, scoped, tag = 'scoped memory for encoder_forward.1']
    #allocation11 [shape = 'u8[512]{0}', space=vmem, size = 0x400, scoped, tag = 'input window, operand 11, single buffered']
    #allocation12 [shape = 'u8[512]{0}', space=vmem, size = 0x400, scoped, tag = 'input window, operand 12, single buffered']
    #allocation13 [shape = 's32[1]{0}', space=sflag, size = 0x4, scoped, tag = 'scoped memory for encoder_forward.1']
    #allocation14 [shape = 'u8[512]{0}', space=vmem, size = 0x400, scoped, tag = 'input window, operand 13, single buffered']
    #allocation15 [shape = 'u8[512]{0}', space=vmem, size = 0x400, scoped, tag = 'input window, operand 15, single buffered']
    #allocation16 [shape = 's32[1]{0}', space=sflag, size = 0x4, scoped, tag = 'scoped memory for encoder_forward.1']
    #allocation17 [shape = 'u8[512]{0}', space=vmem, size = 0x400, scoped, tag = 'input window, operand 17, single buffered']
    #allocation18 [shape = 'u8[512]{0}', space=vmem, size = 0x400, scoped, tag = 'input window, operand 18, single buffered']
    #allocation19 [shape = 's32[1]{0}', space=sflag, size = 0x4, scoped, tag = 'scoped memory for encoder_forward.1']
    #allocation20 [shape = 'u8[512]{0}', space=vmem, size = 0x400, scoped, tag = 'input window, operand 19, single buffered']
    #allocation21 [shape = 'u8[16384]{0}', space=vmem, size = 0x4000, scoped, tag = 'input window, operand 22, single buffered']
    #allocation22 [shape = 's32[1]{0}', space=sflag, size = 0x4, scoped, tag = 'scoped memory for encoder_forward.1']
    #allocation23 [shape = 'u8[512]{0}', space=vmem, size = 0x400, scoped, tag = 'input window, operand 23, single buffered']
    #allocation24 [shape = 'u8[512]{0}', space=vmem, size = 0x400, scoped, tag = 'input window, operand 24, single buffered']
    #allocation25 [shape = 's32[1]{0}', space=sflag, size = 0x4, scoped, tag = 'scoped memory for encoder_forward.1']
    #allocation26 [shape = 'u8[512]{0}', space=vmem, size = 0x400, scoped, tag = 'input window, operand 25, single buffered']
    #allocation27 [shape = 'u8[512]{0}', space=vmem, size = 0x400, scoped, tag = 'input window, operand 27, single buffered']
    #allocation28 [shape = 's32[1]{0}', space=sflag, size = 0x4, scoped, tag = 'scoped memory for encoder_forward.1']
    #allocation29 [shape = 'u8[512]{0}', space=vmem, size = 0x400, scoped, tag = 'input window, operand 29, single buffered']
    #allocation30 [shape = 'u8[512]{0}', space=vmem, size = 0x400, scoped, tag = 'input window, operand 30, single buffered']
    #allocation31 [shape = 's32[1]{0}', space=sflag, size = 0x4, scoped, tag = 'scoped memory for encoder_forward.1']
    #allocation32 [shape = 'u8[512]{0}', space=vmem, size = 0x400, scoped, tag = 'input window, operand 31, single buffered']
    #allocation33 [shape = 'u8[16384]{0}', space=vmem, size = 0x4000, scoped, tag = 'output window, operand 0, single buffered']
    #allocation34 [shape = 'u8[16384]{0}', space=vmem, size = 0x4000, scoped, tag = 'output window, operand 1, single buffered']
    #allocation35 [shape = 's32[1]{0}', space=sflag, size = 0x4, scoped, tag = 'scoped memory for encoder_forward.1']
    %73 = vsyncpa [#allocation4], 0
    %74 = vsyncpa [#allocation7], 0
    %75 = vsyncpa [#allocation10], 0
    %76 = vsyncpa [#allocation13], 0
    %77 = vsyncpa [#allocation16], 0
    %78 = vsyncpa [#allocation19], 0
    %79 = vsyncpa [#allocation22], 0
    %80 = vsyncpa [#allocation25], 0
    %81 = vsyncpa [#allocation28], 0
    %82 = vsyncpa [#allocation31], 0
    %83 = vsyncpa [#allocation5], 0
    %84 = vsyncpa [#allocation35], 0
    // Predicated region
    $region2: #{encoder_forward.1} parent=1 // pred_check
      _
    $region3: #{encoder_forward.1} parent=1 // pred_check_branch
      %86 = sbr.rel (0) target = $region5
    $region4: #{encoder_forward.1} parent=1 // pred_region
      %s88 = ssub.s32 512, 512
      %89 = vsyncadd [#allocation4], %s88
      %s90 = sshll.u32 [#allocation3], 4
      %s91 = int_to_ptr.vmem [resolvable:$true] %s90
      %96 = dma.hbm_to_vmem [thread:$0]  %s1, 512, %s91, [#allocation4], 128, 128, 8
    $region5: #{encoder_forward.1} parent=1 // pred_fallthru
      _
    // Predicated region
    $region6: #{encoder_forward.1} parent=1 // pred_check
      _
    $region7: #{encoder_forward.1} parent=1 // pred_check_branch
      %98 = sbr.rel (0) target = $region9
    $region8: #{encoder_forward.1} parent=1 // pred_region
      _
    $region9: #{encoder_forward.1} parent=1 // pred_fallthru
      _
    // Predicated region
    $region10: #{encoder_forward.1} parent=1 // pred_check
      _
    $region11: #{encoder_forward.1} parent=1 // pred_check_branch
      %100 = sbr.rel (0) target = $region13
    $region12: #{encoder_forward.1} parent=1 // pred_region
      %s102 = ssub.s32 384, 384
      %103 = vsyncadd [#allocation7], %s102
      %s104 = sshll.u32 [#allocation6], 4
      %s105 = int_to_ptr.vmem [resolvable:$true] %s104
      %110 = dma.hbm_to_vmem [thread:$0]  %s5, 384, %s105, [#allocation7], 128, 128, 8
    $region13: #{encoder_forward.1} parent=1 // pred_fallthru
      _
    // Predicated region
    $region14: #{encoder_forward.1} parent=1 // pred_check
      _
    $region15: #{encoder_forward.1} parent=1 // pred_check_branch
      %112 = sbr.rel (0) target = $region17
    $region16: #{encoder_forward.1} parent=1 // pred_region
      _
    $region17: #{encoder_forward.1} parent=1 // pred_fallthru
      _
    // Predicated region
    $region18: #{encoder_forward.1} parent=1 // pred_check
      _
    $region19: #{encoder_forward.1} parent=1 // pred_check_branch
      %114 = sbr.rel (0) target = $region21
    $region20: #{encoder_forward.1} parent=1 // pred_region
      _
    $region21: #{encoder_forward.1} parent=1 // pred_fallthru
      _
    // Predicated region
    $region22: #{encoder_forward.1} parent=1 // pred_check
      _
    $region23: #{encoder_forward.1} parent=1 // pred_check_branch
      %116 = sbr.rel (0) target = $region25
    $region24: #{encoder_forward.1} parent=1 // pred_region
      _
    $region25: #{encoder_forward.1} parent=1 // pred_fallthru
      _
    // Predicated region
    $region26: #{encoder_forward.1} parent=1 // pred_check
      _
    $region27: #{encoder_forward.1} parent=1 // pred_check_branch
      %118 = sbr.rel (0) target = $region29
    $region28: #{encoder_forward.1} parent=1 // pred_region
      _
    $region29: #{encoder_forward.1} parent=1 // pred_fallthru
      _
    // Predicated region
    $region30: #{encoder_forward.1} parent=1 // pred_check
      _
    $region31: #{encoder_forward.1} parent=1 // pred_check_branch
      %120 = sbr.rel (0) target = $region33
    $region32: #{encoder_forward.1} parent=1 // pred_region
      %s122 = ssub.s32 16, 16
      %123 = vsyncadd [#allocation7], %s122
      %s125 = sshll.u32 [#allocation8], 4
      %s126 = int_to_ptr.vmem [resolvable:$true] %s125
      %128 = dma.hbm_to_vmem [thread:$0]  %s15, 16, %s126, [#allocation7]
    $region33: #{encoder_forward.1} parent=1 // pred_fallthru
      _
    // Predicated region
    $region34: #{encoder_forward.1} parent=1 // pred_check
      _
    $region35: #{encoder_forward.1} parent=1 // pred_check_branch
      %130 = sbr.rel (0) target = $region37
    $region36: #{encoder_forward.1} parent=1 // pred_region
      _
    $region37: #{encoder_forward.1} parent=1 // pred_fallthru
      _
    // Predicated region
    $region38: #{encoder_forward.1} parent=1 // pred_check
      _
    $region39: #{encoder_forward.1} parent=1 // pred_check_branch
      %132 = sbr.rel (0) target = $region41
    $region40: #{encoder_forward.1} parent=1 // pred_region
      _
    $region41: #{encoder_forward.1} parent=1 // pred_fallthru
      _
    // Predicated region
    $region42: #{encoder_forward.1} parent=1 // pred_check
      _
    $region43: #{encoder_forward.1} parent=1 // pred_check_branch
      %134 = sbr.rel (0) target = $region45
    $region44: #{encoder_forward.1} parent=1 // pred_region
      %s136 = ssub.s32 512, 512
      %137 = vsyncadd [#allocation10], %s136
      %s138 = sshll.u32 [#allocation9], 4
      %s139 = int_to_ptr.vmem [resolvable:$true] %s138
      %144 = dma.hbm_to_vmem [thread:$0]  %s21, 512, %s139, [#allocation10], 128, 128, 8
    $region45: #{encoder_forward.1} parent=1 // pred_fallthru
      _
    // Predicated region
    $region46: #{encoder_forward.1} parent=1 // pred_check
      _
    $region47: #{encoder_forward.1} parent=1 // pred_check_branch
      %146 = sbr.rel (0) target = $region49
    $region48: #{encoder_forward.1} parent=1 // pred_region
      %s148 = ssub.s32 16, 16
      %149 = vsyncadd [#allocation10], %s148
      %s151 = sshll.u32 [#allocation11], 4
      %s152 = int_to_ptr.vmem [resolvable:$true] %s151
      %154 = dma.hbm_to_vmem [thread:$0]  %s23, 16, %s152, [#allocation10]
    $region49: #{encoder_forward.1} parent=1 // pred_fallthru
      _
    // Predicated region
    $region50: #{encoder_forward.1} parent=1 // pred_check
      _
    $region51: #{encoder_forward.1} parent=1 // pred_check_branch
      %156 = sbr.rel (0) target = $region53
    $region52: #{encoder_forward.1} parent=1 // pred_region
      %s158 = ssub.s32 16, 16
      %159 = vsyncadd [#allocation13], %s158
      %s161 = sshll.u32 [#allocation12], 4
      %s162 = int_to_ptr.vmem [resolvable:$true] %s161
      %164 = dma.hbm_to_vmem [thread:$0]  %s25, 16, %s162, [#allocation13]
    $region53: #{encoder_forward.1} parent=1 // pred_fallthru
      _
    // Predicated region
    $region54: #{encoder_forward.1} parent=1 // pred_check
      _
    $region55: #{encoder_forward.1} parent=1 // pred_check_branch
      %166 = sbr.rel (0) target = $region57
    $region56: #{encoder_forward.1} parent=1 // pred_region
      %s168 = ssub.s32 16, 16
      %169 = vsyncadd [#allocation13], %s168
      %s171 = sshll.u32 [#allocation14], 4
      %s172 = int_to_ptr.vmem [resolvable:$true] %s171
      %174 = dma.hbm_to_vmem [thread:$0]  %s27, 16, %s172, [#allocation13]
    $region57: #{encoder_forward.1} parent=1 // pred_fallthru
      _
    // Predicated region
    $region58: #{encoder_forward.1} parent=1 // pred_check
      _
    $region59: #{encoder_forward.1} parent=1 // pred_check_branch
      %176 = sbr.rel (0) target = $region61
    $region60: #{encoder_forward.1} parent=1 // pred_region
      _
    $region61: #{encoder_forward.1} parent=1 // pred_fallthru
      _
    // Predicated region
    $region62: #{encoder_forward.1} parent=1 // pred_check
      _
    $region63: #{encoder_forward.1} parent=1 // pred_check_branch
      %178 = sbr.rel (0) target = $region65
    $region64: #{encoder_forward.1} parent=1 // pred_region
      %s180 = ssub.s32 16, 16
      %181 = vsyncadd [#allocation16], %s180
      %s183 = sshll.u32 [#allocation15], 4
      %s184 = int_to_ptr.vmem [resolvable:$true] %s183
      %186 = dma.hbm_to_vmem [thread:$0]  %s31, 16, %s184, [#allocation16]
    $region65: #{encoder_forward.1} parent=1 // pred_fallthru
      _
    // Predicated region
    $region66: #{encoder_forward.1} parent=1 // pred_check
      _
    $region67: #{encoder_forward.1} parent=1 // pred_check_branch
      %188 = sbr.rel (0) target = $region69
    $region68: #{encoder_forward.1} parent=1 // pred_region
      _
    $region69: #{encoder_forward.1} parent=1 // pred_fallthru
      _
    // Predicated region
    $region70: #{encoder_forward.1} parent=1 // pred_check
      _
    $region71: #{encoder_forward.1} parent=1 // pred_check_branch
      %190 = sbr.rel (0) target = $region73
    $region72: #{encoder_forward.1} parent=1 // pred_region
      %s192 = ssub.s32 16, 16
      %193 = vsyncadd [#allocation16], %s192
      %s195 = sshll.u32 [#allocation17], 4
      %s196 = int_to_ptr.vmem [resolvable:$true] %s195
      %198 = dma.hbm_to_vmem [thread:$0]  %s35, 16, %s196, [#allocation16]
    $region73: #{encoder_forward.1} parent=1 // pred_fallthru
      _
    // Predicated region
    $region74: #{encoder_forward.1} parent=1 // pred_check
      _
    $region75: #{encoder_forward.1} parent=1 // pred_check_branch
      %200 = sbr.rel (0) target = $region77
    $region76: #{encoder_forward.1} parent=1 // pred_region
      %s202 = ssub.s32 16, 16
      %203 = vsyncadd [#allocation19], %s202
      %s205 = sshll.u32 [#allocation18], 4
      %s206 = int_to_ptr.vmem [resolvable:$true] %s205
      %208 = dma.hbm_to_vmem [thread:$0]  %s37, 16, %s206, [#allocation19]
    $region77: #{encoder_forward.1} parent=1 // pred_fallthru
      _
    // Predicated region
    $region78: #{encoder_forward.1} parent=1 // pred_check
      _
    $region79: #{encoder_forward.1} parent=1 // pred_check_branch
      %210 = sbr.rel (0) target = $region81
    $region80: #{encoder_forward.1} parent=1 // pred_region
      %s212 = ssub.s32 16, 16
      %213 = vsyncadd [#allocation19], %s212
      %s215 = sshll.u32 [#allocation20], 4
      %s216 = int_to_ptr.vmem [resolvable:$true] %s215
      %218 = dma.hbm_to_vmem [thread:$0]  %s39, 16, %s216, [#allocation19]
    $region81: #{encoder_forward.1} parent=1 // pred_fallthru
      _
    // Predicated region
    $region82: #{encoder_forward.1} parent=1 // pred_check
      _
    $region83: #{encoder_forward.1} parent=1 // pred_check_branch
      %220 = sbr.rel (0) target = $region85
    $region84: #{encoder_forward.1} parent=1 // pred_region
      _
    $region85: #{encoder_forward.1} parent=1 // pred_fallthru
      _
    // Predicated region
    $region86: #{encoder_forward.1} parent=1 // pred_check
      _
    $region87: #{encoder_forward.1} parent=1 // pred_check_branch
      %222 = sbr.rel (0) target = $region89
    $region88: #{encoder_forward.1} parent=1 // pred_region
      _
    $region89: #{encoder_forward.1} parent=1 // pred_fallthru
      _
    // Predicated region
    $region90: #{encoder_forward.1} parent=1 // pred_check
      _
    $region91: #{encoder_forward.1} parent=1 // pred_check_branch
      %224 = sbr.rel (0) target = $region93
    $region92: #{encoder_forward.1} parent=1 // pred_region
      %s226 = ssub.s32 512, 512
      %227 = vsyncadd [#allocation22], %s226
      %s228 = sshll.u32 [#allocation21], 4
      %s229 = int_to_ptr.vmem [resolvable:$true] %s228
      %234 = dma.hbm_to_vmem [thread:$0]  %s45, 512, %s229, [#allocation22], 128, 128, 8
    $region93: #{encoder_forward.1} parent=1 // pred_fallthru
      _
    // Predicated region
    $region94: #{encoder_forward.1} parent=1 // pred_check
      _
    $region95: #{encoder_forward.1} parent=1 // pred_check_branch
      %236 = sbr.rel (0) target = $region97
    $region96: #{encoder_forward.1} parent=1 // pred_region
      %s238 = ssub.s32 16, 16
      %239 = vsyncadd [#allocation22], %s238
      %s241 = sshll.u32 [#allocation23], 4
      %s242 = int_to_ptr.vmem [resolvable:$true] %s241
      %244 = dma.hbm_to_vmem [thread:$0]  %s47, 16, %s242, [#allocation22]
    $region97: #{encoder_forward.1} parent=1 // pred_fallthru
      _
    // Predicated region
    $region98: #{encoder_forward.1} parent=1 // pred_check
      _
    $region99: #{encoder_forward.1} parent=1 // pred_check_branch
      %246 = sbr.rel (0) target = $region101
    $region100: #{encoder_forward.1} parent=1 // pred_region
      %s248 = ssub.s32 16, 16
      %249 = vsyncadd [#allocation25], %s248
      %s251 = sshll.u32 [#allocation24], 4
      %s252 = int_to_ptr.vmem [resolvable:$true] %s251
      %254 = dma.hbm_to_vmem [thread:$0]  %s49, 16, %s252, [#allocation25]
    $region101: #{encoder_forward.1} parent=1 // pred_fallthru
      _
    // Predicated region
    $region102: #{encoder_forward.1} parent=1 // pred_check
      _
    $region103: #{encoder_forward.1} parent=1 // pred_check_branch
      %256 = sbr.rel (0) target = $region105
    $region104: #{encoder_forward.1} parent=1 // pred_region
      %s258 = ssub.s32 16, 16
      %259 = vsyncadd [#allocation25], %s258
      %s261 = sshll.u32 [#allocation26], 4
      %s262 = int_to_ptr.vmem [resolvable:$true] %s261
      %264 = dma.hbm_to_vmem [thread:$0]  %s51, 16, %s262, [#allocation25]
    $region105: #{encoder_forward.1} parent=1 // pred_fallthru
      _
    // Predicated region
    $region106: #{encoder_forward.1} parent=1 // pred_check
      _
    $region107: #{encoder_forward.1} parent=1 // pred_check_branch
      %266 = sbr.rel (0) target = $region109
    $region108: #{encoder_forward.1} parent=1 // pred_region
      _
    $region109: #{encoder_forward.1} parent=1 // pred_fallthru
      _
    // Predicated region
    $region110: #{encoder_forward.1} parent=1 // pred_check
      _
    $region111: #{encoder_forward.1} parent=1 // pred_check_branch
      %268 = sbr.rel (0) target = $region113
    $region112: #{encoder_forward.1} parent=1 // pred_region
      %s270 = ssub.s32 16, 16
      %271 = vsyncadd [#allocation28], %s270
      %s273 = sshll.u32 [#allocation27], 4
      %s274 = int_to_ptr.vmem [resolvable:$true] %s273
      %276 = dma.hbm_to_vmem [thread:$0]  %s55, 16, %s274, [#allocation28]
    $region113: #{encoder_forward.1} parent=1 // pred_fallthru
      _
    // Predicated region
    $region114: #{encoder_forward.1} parent=1 // pred_check
      _
    $region115: #{encoder_forward.1} parent=1 // pred_check_branch
      %278 = sbr.rel (0) target = $region117
    $region116: #{encoder_forward.1} parent=1 // pred_region
      _
    $region117: #{encoder_forward.1} parent=1 // pred_fallthru
      _
    // Predicated region
    $region118: #{encoder_forward.1} parent=1 // pred_check
      _
    $region119: #{encoder_forward.1} parent=1 // pred_check_branch
      %280 = sbr.rel (0) target = $region121
    $region120: #{encoder_forward.1} parent=1 // pred_region
      %s282 = ssub.s32 16, 16
      %283 = vsyncadd [#allocation28], %s282
      %s285 = sshll.u32 [#allocation29], 4
      %s286 = int_to_ptr.vmem [resolvable:$true] %s285
      %288 = dma.hbm_to_vmem [thread:$0]  %s59, 16, %s286, [#allocation28]
    $region121: #{encoder_forward.1} parent=1 // pred_fallthru
      _
    // Predicated region
    $region122: #{encoder_forward.1} parent=1 // pred_check
      _
    $region123: #{encoder_forward.1} parent=1 // pred_check_branch
      %290 = sbr.rel (0) target = $region125
    $region124: #{encoder_forward.1} parent=1 // pred_region
      %s292 = ssub.s32 16, 16
      %293 = vsyncadd [#allocation31], %s292
      %s295 = sshll.u32 [#allocation30], 4
      %s296 = int_to_ptr.vmem [resolvable:$true] %s295
      %298 = dma.hbm_to_vmem [thread:$0]  %s61, 16, %s296, [#allocation31]
    $region125: #{encoder_forward.1} parent=1 // pred_fallthru
      _
    // Predicated region
    $region126: #{encoder_forward.1} parent=1 // pred_check
      _
    $region127: #{encoder_forward.1} parent=1 // pred_check_branch
      %300 = sbr.rel (0) target = $region129
    $region128: #{encoder_forward.1} parent=1 // pred_region
      %s302 = ssub.s32 16, 16
      %303 = vsyncadd [#allocation31], %s302
      %s305 = sshll.u32 [#allocation32], 4
      %s306 = int_to_ptr.vmem [resolvable:$true] %s305
      %308 = dma.hbm_to_vmem [thread:$0]  %s63, 16, %s306, [#allocation31]
    $region129: #{encoder_forward.1} parent=1 // pred_fallthru
      _
    // Predicated region
    $region130: #{encoder_forward.1} parent=1 // pred_check
      _
    $region131: #{encoder_forward.1} parent=1 // pred_check_branch
      %310 = sbr.rel (0) target = $region133
    $region132: #{encoder_forward.1} parent=1 // pred_region
      %311 = dma.done [#allocation4], 512
    $region133: #{encoder_forward.1} parent=1 // pred_fallthru
      _
    // Predicated region
    $region134: #{encoder_forward.1} parent=1 // pred_check
      _
    $region135: #{encoder_forward.1} parent=1 // pred_check_branch
      %313 = sbr.rel (0) target = $region137
    $region136: #{encoder_forward.1} parent=1 // pred_region
      %314 = dma.done [#allocation7], 384
    $region137: #{encoder_forward.1} parent=1 // pred_fallthru
      _
    // Predicated region
    $region138: #{encoder_forward.1} parent=1 // pred_check
      _
    $region139: #{encoder_forward.1} parent=1 // pred_check_branch
      %316 = sbr.rel (0) target = $region141
    $region140: #{encoder_forward.1} parent=1 // pred_region
      %317 = dma.done [#allocation7], 16
    $region141: #{encoder_forward.1} parent=1 // pred_fallthru
      _
    // Predicated region
    $region142: #{encoder_forward.1} parent=1 // pred_check
      _
    $region143: #{encoder_forward.1} parent=1 // pred_check_branch
      %319 = sbr.rel (0) target = $region145
    $region144: #{encoder_forward.1} parent=1 // pred_region
      %320 = dma.done [#allocation10], 512
    $region145: #{encoder_forward.1} parent=1 // pred_fallthru
      _
    // Predicated region
    $region146: #{encoder_forward.1} parent=1 // pred_check
      _
    $region147: #{encoder_forward.1} parent=1 // pred_check_branch
      %322 = sbr.rel (0) target = $region149
    $region148: #{encoder_forward.1} parent=1 // pred_region
      %323 = dma.done [#allocation10], 16
    $region149: #{encoder_forward.1} parent=1 // pred_fallthru
      _
    // Predicated region
    $region150: #{encoder_forward.1} parent=1 // pred_check
      _
    $region151: #{encoder_forward.1} parent=1 // pred_check_branch
      %325 = sbr.rel (0) target = $region153
    $region152: #{encoder_forward.1} parent=1 // pred_region
      %326 = dma.done [#allocation13], 16
    $region153: #{encoder_forward.1} parent=1 // pred_fallthru
      _
    // Predicated region
    $region154: #{encoder_forward.1} parent=1 // pred_check
      _
    $region155: #{encoder_forward.1} parent=1 // pred_check_branch
      %328 = sbr.rel (0) target = $region157
    $region156: #{encoder_forward.1} parent=1 // pred_region
      %329 = dma.done [#allocation13], 16
    $region157: #{encoder_forward.1} parent=1 // pred_fallthru
      _
    // Predicated region
    $region158: #{encoder_forward.1} parent=1 // pred_check
      _
    $region159: #{encoder_forward.1} parent=1 // pred_check_branch
      %331 = sbr.rel (0) target = $region161
    $region160: #{encoder_forward.1} parent=1 // pred_region
      %332 = dma.done [#allocation16], 16
    $region161: #{encoder_forward.1} parent=1 // pred_fallthru
      _
    // Predicated region
    $region162: #{encoder_forward.1} parent=1 // pred_check
      _
    $region163: #{encoder_forward.1} parent=1 // pred_check_branch
      %334 = sbr.rel (0) target = $region165
    $region164: #{encoder_forward.1} parent=1 // pred_region
      %335 = dma.done [#allocation16], 16
    $region165: #{encoder_forward.1} parent=1 // pred_fallthru
      _
    // Predicated region
    $region166: #{encoder_forward.1} parent=1 // pred_check
      _
    $region167: #{encoder_forward.1} parent=1 // pred_check_branch
      %337 = sbr.rel (0) target = $region169
    $region168: #{encoder_forward.1} parent=1 // pred_region
      %338 = dma.done [#allocation19], 16
    $region169: #{encoder_forward.1} parent=1 // pred_fallthru
      _
    // Predicated region
    $region170: #{encoder_forward.1} parent=1 // pred_check
      _
    $region171: #{encoder_forward.1} parent=1 // pred_check_branch
      %340 = sbr.rel (0) target = $region173
    $region172: #{encoder_forward.1} parent=1 // pred_region
      %341 = dma.done [#allocation19], 16
    $region173: #{encoder_forward.1} parent=1 // pred_fallthru
      _
    // Predicated region
    $region174: #{encoder_forward.1} parent=1 // pred_check
      _
    $region175: #{encoder_forward.1} parent=1 // pred_check_branch
      %343 = sbr.rel (0) target = $region177
    $region176: #{encoder_forward.1} parent=1 // pred_region
      %344 = dma.done [#allocation22], 512
    $region177: #{encoder_forward.1} parent=1 // pred_fallthru
      _
    // Predicated region
    $region178: #{encoder_forward.1} parent=1 // pred_check
      _
    $region179: #{encoder_forward.1} parent=1 // pred_check_branch
      %346 = sbr.rel (0) target = $region181
    $region180: #{encoder_forward.1} parent=1 // pred_region
      %347 = dma.done [#allocation22], 16
    $region181: #{encoder_forward.1} parent=1 // pred_fallthru
      _
    // Predicated region
    $region182: #{encoder_forward.1} parent=1 // pred_check
      _
    $region183: #{encoder_forward.1} parent=1 // pred_check_branch
      %349 = sbr.rel (0) target = $region185
    $region184: #{encoder_forward.1} parent=1 // pred_region
      %350 = dma.done [#allocation25], 16
    $region185: #{encoder_forward.1} parent=1 // pred_fallthru
      _
    // Predicated region
    $region186: #{encoder_forward.1} parent=1 // pred_check
      _
    $region187: #{encoder_forward.1} parent=1 // pred_check_branch
      %352 = sbr.rel (0) target = $region189
    $region188: #{encoder_forward.1} parent=1 // pred_region
      %353 = dma.done [#allocation25], 16
    $region189: #{encoder_forward.1} parent=1 // pred_fallthru
      _
    // Predicated region
    $region190: #{encoder_forward.1} parent=1 // pred_check
      _
    $region191: #{encoder_forward.1} parent=1 // pred_check_branch
      %355 = sbr.rel (0) target = $region193
    $region192: #{encoder_forward.1} parent=1 // pred_region
      %356 = dma.done [#allocation28], 16
    $region193: #{encoder_forward.1} parent=1 // pred_fallthru
      _
    // Predicated region
    $region194: #{encoder_forward.1} parent=1 // pred_check
      _
    $region195: #{encoder_forward.1} parent=1 // pred_check_branch
      %358 = sbr.rel (0) target = $region197
    $region196: #{encoder_forward.1} parent=1 // pred_region
      %359 = dma.done [#allocation28], 16
    $region197: #{encoder_forward.1} parent=1 // pred_fallthru
      _
    // Predicated region
    $region198: #{encoder_forward.1} parent=1 // pred_check
      _
    $region199: #{encoder_forward.1} parent=1 // pred_check_branch
      %361 = sbr.rel (0) target = $region201
    $region200: #{encoder_forward.1} parent=1 // pred_region
      %362 = dma.done [#allocation31], 16
    $region201: #{encoder_forward.1} parent=1 // pred_fallthru
      _
    // Predicated region
    $region202: #{encoder_forward.1} parent=1 // pred_check
      _
    $region203: #{encoder_forward.1} parent=1 // pred_check_branch
      %364 = sbr.rel (0) target = $region205
    $region204: #{encoder_forward.1} parent=1 // pred_region
      %365 = dma.done [#allocation31], 16
    $region205: #{encoder_forward.1} parent=1 // pred_fallthru
      _
    %vm366 = vcmask 261120
    %367 = vst.msk [vmem:[#allocation2] sm:$0xff] %vm366, 0.0
    %368 = vst.msk [vmem:[#allocation2 + $0x8] sm:$0xff] %vm366, 0.0
    %369 = vst.msk [vmem:[#allocation2 + $0x10] sm:$0xff] %vm366, 0.0
    %370 = vst.msk [vmem:[#allocation2 + $0x18] sm:$0xff] %vm366, 0.0
    %371 = vst.msk [vmem:[#allocation2 + $0x20] sm:$0xff] %vm366, 0.0
    %372 = vst.msk [vmem:[#allocation2 + $0x28] sm:$0xff] %vm366, 0.0
    %373 = vst.msk [vmem:[#allocation2 + $0x30] sm:$0xff] %vm366, 0.0
    %374 = vst.msk [vmem:[#allocation2 + $0x38] sm:$0xff] %vm366, 0.0
    %v375 = vld [vmem:[#allocation3] sm:$0xff]
    %v376 = vld [vmem:[#allocation3 + $0x8] sm:$0xff]
    %v377 = vld [vmem:[#allocation3 + $0x10] sm:$0xff]
    %v378 = vld [vmem:[#allocation3 + $0x18] sm:$0xff]
    %v379 = vld [vmem:[#allocation6] sm:$0xff]
    %v380 = vld [vmem:[#allocation6 + $0x8] sm:$0xff]
    %v381 = vld [vmem:[#allocation6 + $0x10] sm:$0xf]
    %v382 = vld [vmem:[%s7] sm:$0x1]
    %v384 = vlaneseq
    %v385 = vshrl.u32 %v384, 7
    %v386 = vsub.s32 0, %v385
    %v387 = vrot.slane %v382, %v386
    %vm389 = vcmask 162816
    %v391 = vsel %vm389, %v375, 0
    %v394 = vsel %vm389, %v376, 0
    %v397 = vsel %vm389, %v377, 0
    %v400 = vsel %vm389, %v378, 0
    %vm402 = vcmask 1043456
    %v404 = vsel %vm402, %v381, 0
    %406 = vmatprep.subr.mxu0 0.0
    %407 = vmatpush1.msra.mxu0 %v379
    %408 = vmatprep.subr.mxu0 0.0
    %409 = vmatpush1.msra.mxu0 %v380
    %410 = vmatprep.subr.mxu0 0.0
    %411 = vmatpush1.msra.mxu0 %v404
    %412 = vmatprep.subr.mxu0 0.0
    %413 = vmatpush1.msra.mxu0 0.0
    %414 = vmatprep.subr.mxu0 0.0
    %415 = vmatpush1.msra.mxu0 0.0
    %416 = vmatprep.subr.mxu0 0.0
    %417 = vmatpush1.msra.mxu0 0.0
    %418 = vmatprep.subr.mxu0 0.0
    %419 = vmatpush1.msra.mxu0 0.0
    %420 = vmatprep.subr.mxu0 0.0
    %421 = vmatpush1.msra.mxu0 0.0
    %422 = vmatprep.subr.mxu0 0.0
    %423 = vmatpush1.msra.mxu0 0.0
    %424 = vmatprep.subr.mxu0 0.0
    %425 = vmatpush1.msra.mxu0 0.0
    %426 = vmatprep.subr.mxu0 0.0
    %427 = vmatpush1.msra.mxu0 0.0
    %428 = vmatprep.subr.mxu0 0.0
    %429 = vmatpush1.msra.mxu0 0.0
    %430 = vmatprep.subr.mxu0 0.0
    %431 = vmatpush1.msra.mxu0 0.0
    %432 = vmatprep.subr.mxu0 0.0
    %433 = vmatpush1.msra.mxu0 0.0
    %434 = vmatprep.subr.mxu0 0.0
    %435 = vmatpush1.msra.mxu0 0.0
    %436 = vmatprep.subr.mxu0 0.0
    %437 = vmatpush1.msra.mxu0 0.0
    %438 = vmatprep.subr.mxu0 0.0
    %439 = vmatpush1.msra.mxu0 0.0
    %440 = vmatprep.subr.mxu0 0.0
    %441 = vmatpush1.msra.mxu0 0.0
    %442 = vmatprep.subr.mxu0 0.0
    %443 = vmatpush1.msra.mxu0 0.0
    %444 = vmatprep.subr.mxu0 0.0
    %445 = vmatpush1.msra.mxu0 0.0
    %446 = vmatprep.subr.mxu0 0.0
    %447 = vmatpush1.msra.mxu0 0.0
    %448 = vmatprep.subr.mxu0 0.0
    %449 = vmatpush1.msra.mxu0 0.0
    %450 = vmatprep.subr.mxu0 0.0
    %451 = vmatpush1.msra.mxu0 0.0
    %452 = vmatprep.subr.mxu0 0.0
    %453 = vmatpush1.msra.mxu0 0.0
    %454 = vmatprep.subr.mxu0 0.0
    %455 = vmatpush1.msra.mxu0 0.0
    %456 = vmatprep.subr.mxu0 0.0
    %457 = vmatpush1.msra.mxu0 0.0
    %458 = vmatprep.subr.mxu0 0.0
    %459 = vmatpush1.msra.mxu0 0.0
    %460 = vmatprep.subr.mxu0 0.0
    %461 = vmatpush1.msra.mxu0 0.0
    %462 = vmatprep.subr.mxu0 0.0
    %463 = vmatpush1.msra.mxu0 0.0
    %464 = vmatprep.subr.mxu0 0.0
    %465 = vmatpush1.msra.mxu0 0.0
    %466 = vmatprep.subr.mxu0 0.0
    %467 = vmatpush1.msra.mxu0 0.0
    %468 = vmatprep.subr.mxu0 0.0
    %469 = vmatpush1.msra.mxu0 0.0
    %470 = vmatprep.mubr.f32.mxu0 0.0
    %471 = vmatmul.mubr.f32.gmra.mrb[0].mxu0 %v391
    %v472 = vpop.f32.mrb[0].mxu0
    %v473 = vadd.f32 %v387, %v472
    %v474 = vpop.f32.mrb[0].mxu0
    %475 = vmatprep.mubr.f32.mxu0 0.0
    %476 = vmatmul.mubr.f32.gmra.mrb[0].mxu0 %v394
    %v477 = vpop.f32.mrb[0].mxu0
    %v478 = vadd.f32 %v387, %v477
    %v479 = vpop.f32.mrb[0].mxu0
    %480 = vmatprep.mubr.f32.mxu0 0.0
    %481 = vmatmul.mubr.f32.gmra.mrb[0].mxu0 %v397
    %v482 = vpop.f32.mrb[0].mxu0
    %v483 = vadd.f32 %v387, %v482
    %v484 = vpop.f32.mrb[0].mxu0
    %485 = vmatprep.mubr.f32.mxu0 0.0
    %486 = vmatmul.mubr.f32.gmra.mrb[0].mxu0 %v400
    %v487 = vpop.f32.mrb[0].mxu0
    %v488 = vadd.f32 %v387, %v487
    %v489 = vpop.f32.mrb[0].mxu0
    %490 = vdwg.mxu0
    %v491 = vmax.f32 %v473, 0.0
    %v492 = vmax.f32 %v478, 0.0
    %v493 = vmax.f32 %v483, 0.0
    %v494 = vmax.f32 %v488, 0.0
    %v495 = vld [vmem:[%s9] sm:$0xff]
    %v496 = vld [vmem:[%s9 + $0x8] sm:$0xff]
    %v497 = vld [vmem:[%s9 + $0x10] sm:$0xff]
    %v498 = vld [vmem:[%s9 + $0x18] sm:$0xff]
    %v499 = vld [vmem:[%s11] sm:$0x1]
    %v501 = vlaneseq
    %v502 = vshrl.u32 %v501, 7
    %v503 = vsub.s32 0, %v502
    %v504 = vrot.slane %v499, %v503
    %v507 = vsel %vm366, %v491, 0
    %v510 = vsel %vm366, %v492, 0
    %v513 = vsel %vm366, %v493, 0
    %v516 = vsel %vm366, %v494, 0
    %518 = vmatprep.subr.mxu0 0.0
    %519 = vmatpush1.msra.mxu0 %v495
    %520 = vmatprep.subr.mxu0 0.0
    %521 = vmatpush1.msra.mxu0 %v496
    %522 = vmatprep.subr.mxu0 0.0
    %523 = vmatpush1.msra.mxu0 %v497
    %524 = vmatprep.subr.mxu0 0.0
    %525 = vmatpush1.msra.mxu0 %v498
    %526 = vmatprep.subr.mxu0 0.0
    %527 = vmatpush1.msra.mxu0 0.0
    %528 = vmatprep.subr.mxu0 0.0
    %529 = vmatpush1.msra.mxu0 0.0
    %530 = vmatprep.subr.mxu0 0.0
    %531 = vmatpush1.msra.mxu0 0.0
    %532 = vmatprep.subr.mxu0 0.0
    %533 = vmatpush1.msra.mxu0 0.0
    %534 = vmatprep.subr.mxu0 0.0
    %535 = vmatpush1.msra.mxu0 0.0
    %536 = vmatprep.subr.mxu0 0.0
    %537 = vmatpush1.msra.mxu0 0.0
    %538 = vmatprep.subr.mxu0 0.0
    %539 = vmatpush1.msra.mxu0 0.0
    %540 = vmatprep.subr.mxu0 0.0
    %541 = vmatpush1.msra.mxu0 0.0
    %542 = vmatprep.subr.mxu0 0.0
    %543 = vmatpush1.msra.mxu0 0.0
    %544 = vmatprep.subr.mxu0 0.0
    %545 = vmatpush1.msra.mxu0 0.0
    %546 = vmatprep.subr.mxu0 0.0
    %547 = vmatpush1.msra.mxu0 0.0
    %548 = vmatprep.subr.mxu0 0.0
    %549 = vmatpush1.msra.mxu0 0.0
    %550 = vmatprep.subr.mxu0 0.0
    %551 = vmatpush1.msra.mxu0 0.0
    %552 = vmatprep.subr.mxu0 0.0
    %553 = vmatpush1.msra.mxu0 0.0
    %554 = vmatprep.subr.mxu0 0.0
    %555 = vmatpush1.msra.mxu0 0.0
    %556 = vmatprep.subr.mxu0 0.0
    %557 = vmatpush1.msra.mxu0 0.0
    %558 = vmatprep.subr.mxu0 0.0
    %559 = vmatpush1.msra.mxu0 0.0
    %560 = vmatprep.subr.mxu0 0.0
    %561 = vmatpush1.msra.mxu0 0.0
    %562 = vmatprep.subr.mxu0 0.0
    %563 = vmatpush1.msra.mxu0 0.0
    %564 = vmatprep.subr.mxu0 0.0
    %565 = vmatpush1.msra.mxu0 0.0
    %566 = vmatprep.subr.mxu0 0.0
    %567 = vmatpush1.msra.mxu0 0.0
    %568 = vmatprep.subr.mxu0 0.0
    %569 = vmatpush1.msra.mxu0 0.0
    %570 = vmatprep.subr.mxu0 0.0
    %571 = vmatpush1.msra.mxu0 0.0
    %572 = vmatprep.subr.mxu0 0.0
    %573 = vmatpush1.msra.mxu0 0.0
    %574 = vmatprep.subr.mxu0 0.0
    %575 = vmatpush1.msra.mxu0 0.0
    %576 = vmatprep.subr.mxu0 0.0
    %577 = vmatpush1.msra.mxu0 0.0
    %578 = vmatprep.subr.mxu0 0.0
    %579 = vmatpush1.msra.mxu0 0.0
    %580 = vmatprep.subr.mxu0 0.0
    %581 = vmatpush1.msra.mxu0 0.0
    %582 = vmatprep.mubr.f32.mxu0 0.0
    %583 = vmatmul.mubr.f32.gmra.mrb[0].mxu0 %v507
    %v584 = vpop.f32.mrb[0].mxu0
    %v585 = vadd.f32 %v504, %v584
    %v586 = vpop.f32.mrb[0].mxu0
    %587 = vmatprep.mubr.f32.mxu0 0.0
    %588 = vmatmul.mubr.f32.gmra.mrb[0].mxu0 %v510
    %v589 = vpop.f32.mrb[0].mxu0
    %v590 = vadd.f32 %v504, %v589
    %v591 = vpop.f32.mrb[0].mxu0
    %592 = vmatprep.mubr.f32.mxu0 0.0
    %593 = vmatmul.mubr.f32.gmra.mrb[0].mxu0 %v513
    %v594 = vpop.f32.mrb[0].mxu0
    %v595 = vadd.f32 %v504, %v594
    %v596 = vpop.f32.mrb[0].mxu0
    %597 = vmatprep.mubr.f32.mxu0 0.0
    %598 = vmatmul.mubr.f32.gmra.mrb[0].mxu0 %v516
    %v599 = vpop.f32.mrb[0].mxu0
    %v600 = vadd.f32 %v504, %v599
    %v601 = vpop.f32.mrb[0].mxu0
    %602 = vdwg.mxu0
    %v603 = vmax.f32 %v585, 0.0
    %v604 = vmax.f32 %v590, 0.0
    %v605 = vmax.f32 %v595, 0.0
    %v606 = vmax.f32 %v600, 0.0
    %v607 = vld [vmem:[%s13] sm:$0xff]
    %v608 = vld [vmem:[%s13 + $0x8] sm:$0xff]
    %v609 = vld [vmem:[%s13 + $0x10] sm:$0xff]
    %v610 = vld [vmem:[%s13 + $0x18] sm:$0xff]
    %v611 = vld [vmem:[#allocation8] sm:$0x1]
    %v613 = vlaneseq
    %v614 = vshrl.u32 %v613, 7
    %v615 = vsub.s32 0, %v614
    %v616 = vrot.slane %v611, %v615
    %v619 = vsel %vm366, %v603, 0
    %v622 = vsel %vm366, %v604, 0
    %v625 = vsel %vm366, %v605, 0
    %v628 = vsel %vm366, %v606, 0
    %630 = vmatprep.subr.mxu0 0.0
    %631 = vmatpush1.msra.mxu0 %v607
    %632 = vmatprep.subr.mxu0 0.0
    %633 = vmatpush1.msra.mxu0 %v608
    %634 = vmatprep.subr.mxu0 0.0
    %635 = vmatpush1.msra.mxu0 %v609
    %636 = vmatprep.subr.mxu0 0.0
    %637 = vmatpush1.msra.mxu0 %v610
    %638 = vmatprep.subr.mxu0 0.0
    %639 = vmatpush1.msra.mxu0 0.0
    %640 = vmatprep.subr.mxu0 0.0
    %641 = vmatpush1.msra.mxu0 0.0
    %642 = vmatprep.subr.mxu0 0.0
    %643 = vmatpush1.msra.mxu0 0.0
    %644 = vmatprep.subr.mxu0 0.0
    %645 = vmatpush1.msra.mxu0 0.0
    %646 = vmatprep.subr.mxu0 0.0
    %647 = vmatpush1.msra.mxu0 0.0
    %648 = vmatprep.subr.mxu0 0.0
    %649 = vmatpush1.msra.mxu0 0.0
    %650 = vmatprep.subr.mxu0 0.0
    %651 = vmatpush1.msra.mxu0 0.0
    %652 = vmatprep.subr.mxu0 0.0
    %653 = vmatpush1.msra.mxu0 0.0
    %654 = vmatprep.subr.mxu0 0.0
    %655 = vmatpush1.msra.mxu0 0.0
    %656 = vmatprep.subr.mxu0 0.0
    %657 = vmatpush1.msra.mxu0 0.0
    %658 = vmatprep.subr.mxu0 0.0
    %659 = vmatpush1.msra.mxu0 0.0
    %660 = vmatprep.subr.mxu0 0.0
    %661 = vmatpush1.msra.mxu0 0.0
    %662 = vmatprep.subr.mxu0 0.0
    %663 = vmatpush1.msra.mxu0 0.0
    %664 = vmatprep.subr.mxu0 0.0
    %665 = vmatpush1.msra.mxu0 0.0
    %666 = vmatprep.subr.mxu0 0.0
    %667 = vmatpush1.msra.mxu0 0.0
    %668 = vmatprep.subr.mxu0 0.0
    %669 = vmatpush1.msra.mxu0 0.0
    %670 = vmatprep.subr.mxu0 0.0
    %671 = vmatpush1.msra.mxu0 0.0
    %672 = vmatprep.subr.mxu0 0.0
    %673 = vmatpush1.msra.mxu0 0.0
    %674 = vmatprep.subr.mxu0 0.0
    %675 = vmatpush1.msra.mxu0 0.0
    %676 = vmatprep.subr.mxu0 0.0
    %677 = vmatpush1.msra.mxu0 0.0
    %678 = vmatprep.subr.mxu0 0.0
    %679 = vmatpush1.msra.mxu0 0.0
    %680 = vmatprep.subr.mxu0 0.0
    %681 = vmatpush1.msra.mxu0 0.0
    %682 = vmatprep.subr.mxu0 0.0
    %683 = vmatpush1.msra.mxu0 0.0
    %684 = vmatprep.subr.mxu0 0.0
    %685 = vmatpush1.msra.mxu0 0.0
    %686 = vmatprep.subr.mxu0 0.0
    %687 = vmatpush1.msra.mxu0 0.0
    %688 = vmatprep.subr.mxu0 0.0
    %689 = vmatpush1.msra.mxu0 0.0
    %690 = vmatprep.subr.mxu0 0.0
    %691 = vmatpush1.msra.mxu0 0.0
    %692 = vmatprep.subr.mxu0 0.0
    %693 = vmatpush1.msra.mxu0 0.0
    %694 = vmatprep.mubr.f32.mxu0 0.0
    %695 = vmatmul.mubr.f32.gmra.mrb[0].mxu0 %v619
    %v696 = vpop.f32.mrb[0].mxu0
    %v697 = vadd.f32 %v616, %v696
    %v698 = vpop.f32.mrb[0].mxu0
    %699 = vmatprep.mubr.f32.mxu0 0.0
    %700 = vmatmul.mubr.f32.gmra.mrb[0].mxu0 %v622
    %v701 = vpop.f32.mrb[0].mxu0
    %v702 = vadd.f32 %v616, %v701
    %v703 = vpop.f32.mrb[0].mxu0
    %704 = vmatprep.mubr.f32.mxu0 0.0
    %705 = vmatmul.mubr.f32.gmra.mrb[0].mxu0 %v625
    %v706 = vpop.f32.mrb[0].mxu0
    %v707 = vadd.f32 %v616, %v706
    %v708 = vpop.f32.mrb[0].mxu0
    %709 = vmatprep.mubr.f32.mxu0 0.0
    %710 = vmatmul.mubr.f32.gmra.mrb[0].mxu0 %v628
    %v711 = vpop.f32.mrb[0].mxu0
    %v712 = vadd.f32 %v616, %v711
    %v713 = vpop.f32.mrb[0].mxu0
    %714 = vdwg.mxu0
    %v715 = vmax.f32 %v697, 0.0
    %v716 = vmax.f32 %v702, 0.0
    %v717 = vmax.f32 %v707, 0.0
    %v718 = vmax.f32 %v712, 0.0
    %719 = vst.msk [vmem:[#allocation33] sm:$0xff] %vm366, %v715
    %720 = vst.msk [vmem:[#allocation33 + $0x8] sm:$0xff] %vm366, %v716
    %721 = vst.msk [vmem:[#allocation33 + $0x10] sm:$0xff] %vm366, %v717
    %722 = vst.msk [vmem:[#allocation33 + $0x18] sm:$0xff] %vm366, %v718
    %v723 = vld [vmem:[%s3] sm:$0xff]
    %v724 = vld [vmem:[%s3 + $0x8] sm:$0xff]
    %v725 = vld [vmem:[%s3 + $0x10] sm:$0xff]
    %v726 = vld [vmem:[%s3 + $0x18] sm:$0xff]
    %v727 = vadd.f32 %v715, %v723
    %v728 = vadd.f32 %v716, %v724
    %v729 = vadd.f32 %v717, %v725
    %v730 = vadd.f32 %v718, %v726
    %v731 = vld [vmem:[%s17] sm:$0xff]
    %v732 = vld [vmem:[%s17 + $0x8] sm:$0xff]
    %v733 = vld [vmem:[%s17 + $0x10] sm:$0xff]
    %v734 = vld [vmem:[%s17 + $0x18] sm:$0xff]
    %v735 = vld [vmem:[%s19] sm:$0x1]
    %v737 = vlaneseq
    %v738 = vshrl.u32 %v737, 7
    %v739 = vsub.s32 0, %v738
    %v740 = vrot.slane %v735, %v739
    %v743 = vsel %vm366, %v727, 0
    %v746 = vsel %vm366, %v728, 0
    %v749 = vsel %vm366, %v729, 0
    %v752 = vsel %vm366, %v730, 0
    %754 = vmatprep.subr.mxu0 0.0
    %755 = vmatpush1.msra.mxu0 %v731
    %756 = vmatprep.subr.mxu0 0.0
    %757 = vmatpush1.msra.mxu0 %v732
    %758 = vmatprep.subr.mxu0 0.0
    %759 = vmatpush1.msra.mxu0 %v733
    %760 = vmatprep.subr.mxu0 0.0
    %761 = vmatpush1.msra.mxu0 %v734
    %762 = vmatprep.subr.mxu0 0.0
    %763 = vmatpush1.msra.mxu0 0.0
    %764 = vmatprep.subr.mxu0 0.0
    %765 = vmatpush1.msra.mxu0 0.0
    %766 = vmatprep.subr.mxu0 0.0
    %767 = vmatpush1.msra.mxu0 0.0
    %768 = vmatprep.subr.mxu0 0.0
    %769 = vmatpush1.msra.mxu0 0.0
    %770 = vmatprep.subr.mxu0 0.0
    %771 = vmatpush1.msra.mxu0 0.0
    %772 = vmatprep.subr.mxu0 0.0
    %773 = vmatpush1.msra.mxu0 0.0
    %774 = vmatprep.subr.mxu0 0.0
    %775 = vmatpush1.msra.mxu0 0.0
    %776 = vmatprep.subr.mxu0 0.0
    %777 = vmatpush1.msra.mxu0 0.0
    %778 = vmatprep.subr.mxu0 0.0
    %779 = vmatpush1.msra.mxu0 0.0
    %780 = vmatprep.subr.mxu0 0.0
    %781 = vmatpush1.msra.mxu0 0.0
    %782 = vmatprep.subr.mxu0 0.0
    %783 = vmatpush1.msra.mxu0 0.0
    %784 = vmatprep.subr.mxu0 0.0
    %785 = vmatpush1.msra.mxu0 0.0
    %786 = vmatprep.subr.mxu0 0.0
    %787 = vmatpush1.msra.mxu0 0.0
    %788 = vmatprep.subr.mxu0 0.0
    %789 = vmatpush1.msra.mxu0 0.0
    %790 = vmatprep.subr.mxu0 0.0
    %791 = vmatpush1.msra.mxu0 0.0
    %792 = vmatprep.subr.mxu0 0.0
    %793 = vmatpush1.msra.mxu0 0.0
    %794 = vmatprep.subr.mxu0 0.0
    %795 = vmatpush1.msra.mxu0 0.0
    %796 = vmatprep.subr.mxu0 0.0
    %797 = vmatpush1.msra.mxu0 0.0
    %798 = vmatprep.subr.mxu0 0.0
    %799 = vmatpush1.msra.mxu0 0.0
    %800 = vmatprep.subr.mxu0 0.0
    %801 = vmatpush1.msra.mxu0 0.0
    %802 = vmatprep.subr.mxu0 0.0
    %803 = vmatpush1.msra.mxu0 0.0
    %804 = vmatprep.subr.mxu0 0.0
    %805 = vmatpush1.msra.mxu0 0.0
    %806 = vmatprep.subr.mxu0 0.0
    %807 = vmatpush1.msra.mxu0 0.0
    %808 = vmatprep.subr.mxu0 0.0
    %809 = vmatpush1.msra.mxu0 0.0
    %810 = vmatprep.subr.mxu0 0.0
    %811 = vmatpush1.msra.mxu0 0.0
    %812 = vmatprep.subr.mxu0 0.0
    %813 = vmatpush1.msra.mxu0 0.0
    %814 = vmatprep.subr.mxu0 0.0
    %815 = vmatpush1.msra.mxu0 0.0
    %816 = vmatprep.subr.mxu0 0.0
    %817 = vmatpush1.msra.mxu0 0.0
    %818 = vmatprep.mubr.f32.mxu0 0.0
    %819 = vmatmul.mubr.f32.gmra.mrb[0].mxu0 %v743
    %v820 = vpop.f32.mrb[0].mxu0
    %v821 = vadd.f32 %v740, %v820
    %v822 = vpop.f32.mrb[0].mxu0
    %823 = vmatprep.mubr.f32.mxu0 0.0
    %824 = vmatmul.mubr.f32.gmra.mrb[0].mxu0 %v746
    %v825 = vpop.f32.mrb[0].mxu0
    %v826 = vadd.f32 %v740, %v825
    %v827 = vpop.f32.mrb[0].mxu0
    %828 = vmatprep.mubr.f32.mxu0 0.0
    %829 = vmatmul.mubr.f32.gmra.mrb[0].mxu0 %v749
    %v830 = vpop.f32.mrb[0].mxu0
    %v831 = vadd.f32 %v740, %v830
    %v832 = vpop.f32.mrb[0].mxu0
    %833 = vmatprep.mubr.f32.mxu0 0.0
    %834 = vmatmul.mubr.f32.gmra.mrb[0].mxu0 %v752
    %v835 = vpop.f32.mrb[0].mxu0
    %v836 = vadd.f32 %v740, %v835
    %v837 = vpop.f32.mrb[0].mxu0
    %838 = vdwg.mxu0
    %841 = vrot.lane.b32.xlu0 %v821, 96
    %v842 = vpop.permute.xlu0 %841
    %843 = vrot.lane.b32.xlu0 %v826, 96
    %v844 = vpop.permute.xlu0 %843
    %vm845 = vcmask 130048
    %v846 = vsel %vm845, %v821, 0
    %v848 = vsel %vm845, %v826, 0
    %v850 = vsel %vm845, %v842, 0
    %v852 = vsel %vm845, %v844, 0
    %854 = vmatprep.subr.mxu0 0.0
    %855 = vmatpush1.xpose.msra.mxu0 %v850
    %856 = vmatprep.subr.mxu0 0.0
    %857 = vmatpush1.xpose.msra.mxu0 %v852
    %858 = vmatprep.subr.mxu0 0.0
    %859 = vmatpush1.xpose.msra.mxu0 0.0
    %860 = vmatprep.subr.mxu0 0.0
    %861 = vmatpush1.xpose.msra.mxu0 0.0
    %862 = vmatprep.subr.mxu0 0.0
    %863 = vmatpush1.xpose.msra.mxu0 0.0
    %864 = vmatprep.subr.mxu0 0.0
    %865 = vmatpush1.xpose.msra.mxu0 0.0
    %866 = vmatprep.subr.mxu0 0.0
    %867 = vmatpush1.xpose.msra.mxu0 0.0
    %868 = vmatprep.subr.mxu0 0.0
    %869 = vmatpush1.xpose.msra.mxu0 0.0
    %870 = vmatprep.subr.mxu0 0.0
    %871 = vmatpush1.xpose.msra.mxu0 0.0
    %872 = vmatprep.subr.mxu0 0.0
    %873 = vmatpush1.xpose.msra.mxu0 0.0
    %874 = vmatprep.subr.mxu0 0.0
    %875 = vmatpush1.xpose.msra.mxu0 0.0
    %876 = vmatprep.subr.mxu0 0.0
    %877 = vmatpush1.xpose.msra.mxu0 0.0
    %878 = vmatprep.subr.mxu0 0.0
    %879 = vmatpush1.xpose.msra.mxu0 0.0
    %880 = vmatprep.subr.mxu0 0.0
    %881 = vmatpush1.xpose.msra.mxu0 0.0
    %882 = vmatprep.subr.mxu0 0.0
    %883 = vmatpush1.xpose.msra.mxu0 0.0
    %884 = vmatprep.subr.mxu0 0.0
    %885 = vmatpush1.xpose.msra.mxu0 0.0
    %886 = vmatprep.subr.mxu0 0.0
    %887 = vmatpush1.xpose.msra.mxu0 0.0
    %888 = vmatprep.subr.mxu0 0.0
    %889 = vmatpush1.xpose.msra.mxu0 0.0
    %890 = vmatprep.subr.mxu0 0.0
    %891 = vmatpush1.xpose.msra.mxu0 0.0
    %892 = vmatprep.subr.mxu0 0.0
    %893 = vmatpush1.xpose.msra.mxu0 0.0
    %894 = vmatprep.subr.mxu0 0.0
    %895 = vmatpush1.xpose.msra.mxu0 0.0
    %896 = vmatprep.subr.mxu0 0.0
    %897 = vmatpush1.xpose.msra.mxu0 0.0
    %898 = vmatprep.subr.mxu0 0.0
    %899 = vmatpush1.xpose.msra.mxu0 0.0
    %900 = vmatprep.subr.mxu0 0.0
    %901 = vmatpush1.xpose.msra.mxu0 0.0
    %902 = vmatprep.subr.mxu0 0.0
    %903 = vmatpush1.xpose.msra.mxu0 0.0
    %904 = vmatprep.subr.mxu0 0.0
    %905 = vmatpush1.xpose.msra.mxu0 0.0
    %906 = vmatprep.subr.mxu0 0.0
    %907 = vmatpush1.xpose.msra.mxu0 0.0
    %908 = vmatprep.subr.mxu0 0.0
    %909 = vmatpush1.xpose.msra.mxu0 0.0
    %910 = vmatprep.subr.mxu0 0.0
    %911 = vmatpush1.xpose.msra.mxu0 0.0
    %912 = vmatprep.subr.mxu0 0.0
    %913 = vmatpush1.xpose.msra.mxu0 0.0
    %914 = vmatprep.subr.mxu0 0.0
    %915 = vmatpush1.xpose.msra.mxu0 0.0
    %916 = vmatprep.subr.mxu0 0.0
    %917 = vmatpush1.xpose.msra.mxu0 0.0
    %918 = vmatprep.mubr.f32.mxu0 0.0
    %919 = vmatmul.mubr.f32.gmra.mrb[0].mxu0 %v846
    %v920 = vpop.f32.mrb[0].mxu0
    %v921 = vadd.f32 0.0, %v920
    %v922 = vpop.f32.mrb[0].mxu0
    %923 = vmatprep.mubr.f32.mxu0 0.0
    %924 = vmatmul.mubr.f32.gmra.mrb[0].mxu0 %v848
    %v925 = vpop.f32.mrb[0].mxu0
    %v926 = vadd.f32 0.0, %v925
    %v927 = vpop.f32.mrb[0].mxu0
    %928 = vdwg.mxu0
    %v929 = vmul.f32 %v921, 0.25
    %v930 = vmul.f32 %v926, 0.25
    %v931 = vsel %vm845, %v929, -inf
    %932 = vmax.xlane.f32.xlu0 %v931
    %v933 = vpop.xlane.xlu0 %932
    %v934 = vsel %vm845, %v930, -inf
    %935 = vmax.xlane.f32.xlu0 %v934
    %v936 = vpop.xlane.xlu0 %935
    %v937 = vsub.f32 %v929, %v933
    %v938 = vsub.f32 %v930, %v936
    %v939 = vmul.f32 %v937, 1.442695
    %v940 = vpow.pop %v939
    %v941 = vmul.f32 %v938, 1.442695
    %v942 = vpow.pop %v941
    %v943 = vsel %vm845, %v940, 0.0
    %944 = vadd.xlane.f32.xlu0 %v943
    %v945 = vpop.xlane.xlu0 %944
    %v946 = vsel %vm845, %v942, 0.0
    %947 = vadd.xlane.f32.xlu0 %v946
    %v948 = vpop.xlane.xlu0 %947
    %v949 = vrcp.pop %v945
    %v950 = vrcp.pop %v948
    %v951 = vmul.f32 %v940, %v949
    %v952 = vmul.f32 %v942, %v950
    %953 = vrot.lane.b32.xlu0 %v821, 64
    %v954 = vpop.permute.xlu0 %953
    %955 = vrot.lane.b32.xlu0 %v826, 64
    %v956 = vpop.permute.xlu0 %955
    %v960 = vsel %vm845, %v951, 0
    %v963 = vsel %vm845, %v952, 0
    %965 = vmatprep.subr.mxu0 0.0
    %966 = vmatpush1.msra.mxu0 %v954
    %967 = vmatprep.subr.mxu0 0.0
    %968 = vmatpush1.msra.mxu0 %v956
    %969 = vmatprep.subr.mxu0 0.0
    %970 = vmatpush1.msra.mxu0 0.0
    %971 = vmatprep.subr.mxu0 0.0
    %972 = vmatpush1.msra.mxu0 0.0
    %973 = vmatprep.subr.mxu0 0.0
    %974 = vmatpush1.msra.mxu0 0.0
    %975 = vmatprep.subr.mxu0 0.0
    %976 = vmatpush1.msra.mxu0 0.0
    %977 = vmatprep.subr.mxu0 0.0
    %978 = vmatpush1.msra.mxu0 0.0
    %979 = vmatprep.subr.mxu0 0.0
    %980 = vmatpush1.msra.mxu0 0.0
    %981 = vmatprep.subr.mxu0 0.0
    %982 = vmatpush1.msra.mxu0 0.0
    %983 = vmatprep.subr.mxu0 0.0
    %984 = vmatpush1.msra.mxu0 0.0
    %985 = vmatprep.subr.mxu0 0.0
    %986 = vmatpush1.msra.mxu0 0.0
    %987 = vmatprep.subr.mxu0 0.0
    %988 = vmatpush1.msra.mxu0 0.0
    %989 = vmatprep.subr.mxu0 0.0
    %990 = vmatpush1.msra.mxu0 0.0
    %991 = vmatprep.subr.mxu0 0.0
    %992 = vmatpush1.msra.mxu0 0.0
    %993 = vmatprep.subr.mxu0 0.0
    %994 = vmatpush1.msra.mxu0 0.0
    %995 = vmatprep.subr.mxu0 0.0
    %996 = vmatpush1.msra.mxu0 0.0
    %997 = vmatprep.subr.mxu0 0.0
    %998 = vmatpush1.msra.mxu0 0.0
    %999 = vmatprep.subr.mxu0 0.0
    %1000 = vmatpush1.msra.mxu0 0.0
    %1001 = vmatprep.subr.mxu0 0.0
    %1002 = vmatpush1.msra.mxu0 0.0
    %1003 = vmatprep.subr.mxu0 0.0
    %1004 = vmatpush1.msra.mxu0 0.0
    %1005 = vmatprep.subr.mxu0 0.0
    %1006 = vmatpush1.msra.mxu0 0.0
    %1007 = vmatprep.subr.mxu0 0.0
    %1008 = vmatpush1.msra.mxu0 0.0
    %1009 = vmatprep.subr.mxu0 0.0
    %1010 = vmatpush1.msra.mxu0 0.0
    %1011 = vmatprep.subr.mxu0 0.0
    %1012 = vmatpush1.msra.mxu0 0.0
    %1013 = vmatprep.subr.mxu0 0.0
    %1014 = vmatpush1.msra.mxu0 0.0
    %1015 = vmatprep.subr.mxu0 0.0
    %1016 = vmatpush1.msra.mxu0 0.0
    %1017 = vmatprep.subr.mxu0 0.0
    %1018 = vmatpush1.msra.mxu0 0.0
    %1019 = vmatprep.subr.mxu0 0.0
    %1020 = vmatpush1.msra.mxu0 0.0
    %1021 = vmatprep.subr.mxu0 0.0
    %1022 = vmatpush1.msra.mxu0 0.0
    %1023 = vmatprep.subr.mxu0 0.0
    %1024 = vmatpush1.msra.mxu0 0.0
    %1025 = vmatprep.subr.mxu0 0.0
    %1026 = vmatpush1.msra.mxu0 0.0
    %1027 = vmatprep.subr.mxu0 0.0
    %1028 = vmatpush1.msra.mxu0 0.0
    %1029 = vmatprep.mubr.f32.mxu0 0.0
    %1030 = vmatmul.mubr.f32.gmra.mrb[0].mxu0 %v960
    %v1031 = vpop.f32.mrb[0].mxu0
    %v1032 = vadd.f32 0.0, %v1031
    %v1033 = vpop.f32.mrb[0].mxu0
    %1034 = vmatprep.mubr.f32.mxu0 0.0
    %1035 = vmatmul.mubr.f32.gmra.mrb[0].mxu0 %v963
    %v1036 = vpop.f32.mrb[0].mxu0
    %v1037 = vadd.f32 0.0, %v1036
    %v1038 = vpop.f32.mrb[0].mxu0
    %1039 = vdwg.mxu0
    %1040 = vrot.lane.b32.xlu0 %v821, 112
    %v1041 = vpop.permute.xlu0 %1040
    %1042 = vrot.lane.b32.xlu0 %v826, 112
    %v1043 = vpop.permute.xlu0 %1042
    %1044 = vrot.lane.b32.xlu0 %v821, 80
    %v1045 = vpop.permute.xlu0 %1044
    %1046 = vrot.lane.b32.xlu0 %v826, 80
    %v1047 = vpop.permute.xlu0 %1046
    %v1048 = vsel %vm845, %v1041, 0
    %v1050 = vsel %vm845, %v1043, 0
    %v1052 = vsel %vm845, %v1045, 0
    %v1054 = vsel %vm845, %v1047, 0
    %1056 = vmatprep.subr.mxu0 0.0
    %1057 = vmatpush1.xpose.msra.mxu0 %v1052
    %1058 = vmatprep.subr.mxu0 0.0
    %1059 = vmatpush1.xpose.msra.mxu0 %v1054
    %1060 = vmatprep.subr.mxu0 0.0
    %1061 = vmatpush1.xpose.msra.mxu0 0.0
    %1062 = vmatprep.subr.mxu0 0.0
    %1063 = vmatpush1.xpose.msra.mxu0 0.0
    %1064 = vmatprep.subr.mxu0 0.0
    %1065 = vmatpush1.xpose.msra.mxu0 0.0
    %1066 = vmatprep.subr.mxu0 0.0
    %1067 = vmatpush1.xpose.msra.mxu0 0.0
    %1068 = vmatprep.subr.mxu0 0.0
    %1069 = vmatpush1.xpose.msra.mxu0 0.0
    %1070 = vmatprep.subr.mxu0 0.0
    %1071 = vmatpush1.xpose.msra.mxu0 0.0
    %1072 = vmatprep.subr.mxu0 0.0
    %1073 = vmatpush1.xpose.msra.mxu0 0.0
    %1074 = vmatprep.subr.mxu0 0.0
    %1075 = vmatpush1.xpose.msra.mxu0 0.0
    %1076 = vmatprep.subr.mxu0 0.0
    %1077 = vmatpush1.xpose.msra.mxu0 0.0
    %1078 = vmatprep.subr.mxu0 0.0
    %1079 = vmatpush1.xpose.msra.mxu0 0.0
    %1080 = vmatprep.subr.mxu0 0.0
    %1081 = vmatpush1.xpose.msra.mxu0 0.0
    %1082 = vmatprep.subr.mxu0 0.0
    %1083 = vmatpush1.xpose.msra.mxu0 0.0
    %1084 = vmatprep.subr.mxu0 0.0
    %1085 = vmatpush1.xpose.msra.mxu0 0.0
    %1086 = vmatprep.subr.mxu0 0.0
    %1087 = vmatpush1.xpose.msra.mxu0 0.0
    %1088 = vmatprep.subr.mxu0 0.0
    %1089 = vmatpush1.xpose.msra.mxu0 0.0
    %1090 = vmatprep.subr.mxu0 0.0
    %1091 = vmatpush1.xpose.msra.mxu0 0.0
    %1092 = vmatprep.subr.mxu0 0.0
    %1093 = vmatpush1.xpose.msra.mxu0 0.0
    %1094 = vmatprep.subr.mxu0 0.0
    %1095 = vmatpush1.xpose.msra.mxu0 0.0
    %1096 = vmatprep.subr.mxu0 0.0
    %1097 = vmatpush1.xpose.msra.mxu0 0.0
    %1098 = vmatprep.subr.mxu0 0.0
    %1099 = vmatpush1.xpose.msra.mxu0 0.0
    %1100 = vmatprep.subr.mxu0 0.0
    %1101 = vmatpush1.xpose.msra.mxu0 0.0
    %1102 = vmatprep.subr.mxu0 0.0
    %1103 = vmatpush1.xpose.msra.mxu0 0.0
    %1104 = vmatprep.subr.mxu0 0.0
    %1105 = vmatpush1.xpose.msra.mxu0 0.0
    %1106 = vmatprep.subr.mxu0 0.0
    %1107 = vmatpush1.xpose.msra.mxu0 0.0
    %1108 = vmatprep.subr.mxu0 0.0
    %1109 = vmatpush1.xpose.msra.mxu0 0.0
    %1110 = vmatprep.subr.mxu0 0.0
    %1111 = vmatpush1.xpose.msra.mxu0 0.0
    %1112 = vmatprep.subr.mxu0 0.0
    %1113 = vmatpush1.xpose.msra.mxu0 0.0
    %1114 = vmatprep.subr.mxu0 0.0
    %1115 = vmatpush1.xpose.msra.mxu0 0.0
    %1116 = vmatprep.subr.mxu0 0.0
    %1117 = vmatpush1.xpose.msra.mxu0 0.0
    %1118 = vmatprep.subr.mxu0 0.0
    %1119 = vmatpush1.xpose.msra.mxu0 0.0
    %1120 = vmatprep.mubr.f32.mxu0 0.0
    %1121 = vmatmul.mubr.f32.gmra.mrb[0].mxu0 %v1048
    %v1122 = vpop.f32.mrb[0].mxu0
    %v1123 = vadd.f32 0.0, %v1122
    %v1124 = vpop.f32.mrb[0].mxu0
    %1125 = vmatprep.mubr.f32.mxu0 0.0
    %1126 = vmatmul.mubr.f32.gmra.mrb[0].mxu0 %v1050
    %v1127 = vpop.f32.mrb[0].mxu0
    %v1128 = vadd.f32 0.0, %v1127
    %v1129 = vpop.f32.mrb[0].mxu0
    %1130 = vdwg.mxu0
    %v1131 = vmul.f32 %v1123, 0.25
    %v1132 = vmul.f32 %v1128, 0.25
    %v1133 = vsel %vm845, %v1131, -inf
    %1134 = vmax.xlane.f32.xlu0 %v1133
    %v1135 = vpop.xlane.xlu0 %1134
    %v1136 = vsel %vm845, %v1132, -inf
    %1137 = vmax.xlane.f32.xlu0 %v1136
    %v1138 = vpop.xlane.xlu0 %1137
    %v1139 = vsub.f32 %v1131, %v1135
    %v1140 = vsub.f32 %v1132, %v1138
    %v1141 = vmul.f32 %v1139, 1.442695
    %v1142 = vpow.pop %v1141
    %v1143 = vmul.f32 %v1140, 1.442695
    %v1144 = vpow.pop %v1143
    %v1145 = vsel %vm845, %v1142, 0.0
    %1146 = vadd.xlane.f32.xlu0 %v1145
    %v1147 = vpop.xlane.xlu0 %1146
    %v1148 = vsel %vm845, %v1144, 0.0
    %1149 = vadd.xlane.f32.xlu0 %v1148
    %v1150 = vpop.xlane.xlu0 %1149
    %v1151 = vrcp.pop %v1147
    %v1152 = vrcp.pop %v1150
    %v1153 = vmul.f32 %v1142, %v1151
    %v1154 = vmul.f32 %v1144, %v1152
    %1155 = vrot.lane.b32.xlu0 %v821, 48
    %v1156 = vpop.permute.xlu0 %1155
    %1157 = vrot.lane.b32.xlu0 %v826, 48
    %v1158 = vpop.permute.xlu0 %1157
    %v1162 = vsel %vm845, %v1153, 0
    %v1165 = vsel %vm845, %v1154, 0
    %1167 = vmatprep.subr.mxu0 0.0
    %1168 = vmatpush1.msra.mxu0 %v1156
    %1169 = vmatprep.subr.mxu0 0.0
    %1170 = vmatpush1.msra.mxu0 %v1158
    %1171 = vmatprep.subr.mxu0 0.0
    %1172 = vmatpush1.msra.mxu0 0.0
    %1173 = vmatprep.subr.mxu0 0.0
    %1174 = vmatpush1.msra.mxu0 0.0
    %1175 = vmatprep.subr.mxu0 0.0
    %1176 = vmatpush1.msra.mxu0 0.0
    %1177 = vmatprep.subr.mxu0 0.0
    %1178 = vmatpush1.msra.mxu0 0.0
    %1179 = vmatprep.subr.mxu0 0.0
    %1180 = vmatpush1.msra.mxu0 0.0
    %1181 = vmatprep.subr.mxu0 0.0
    %1182 = vmatpush1.msra.mxu0 0.0
    %1183 = vmatprep.subr.mxu0 0.0
    %1184 = vmatpush1.msra.mxu0 0.0
    %1185 = vmatprep.subr.mxu0 0.0
    %1186 = vmatpush1.msra.mxu0 0.0
    %1187 = vmatprep.subr.mxu0 0.0
    %1188 = vmatpush1.msra.mxu0 0.0
    %1189 = vmatprep.subr.mxu0 0.0
    %1190 = vmatpush1.msra.mxu0 0.0
    %1191 = vmatprep.subr.mxu0 0.0
    %1192 = vmatpush1.msra.mxu0 0.0
    %1193 = vmatprep.subr.mxu0 0.0
    %1194 = vmatpush1.msra.mxu0 0.0
    %1195 = vmatprep.subr.mxu0 0.0
    %1196 = vmatpush1.msra.mxu0 0.0
    %1197 = vmatprep.subr.mxu0 0.0
    %1198 = vmatpush1.msra.mxu0 0.0
    %1199 = vmatprep.subr.mxu0 0.0
    %1200 = vmatpush1.msra.mxu0 0.0
    %1201 = vmatprep.subr.mxu0 0.0
    %1202 = vmatpush1.msra.mxu0 0.0
    %1203 = vmatprep.subr.mxu0 0.0
    %1204 = vmatpush1.msra.mxu0 0.0
    %1205 = vmatprep.subr.mxu0 0.0
    %1206 = vmatpush1.msra.mxu0 0.0
    %1207 = vmatprep.subr.mxu0 0.0
    %1208 = vmatpush1.msra.mxu0 0.0
    %1209 = vmatprep.subr.mxu0 0.0
    %1210 = vmatpush1.msra.mxu0 0.0
    %1211 = vmatprep.subr.mxu0 0.0
    %1212 = vmatpush1.msra.mxu0 0.0
    %1213 = vmatprep.subr.mxu0 0.0
    %1214 = vmatpush1.msra.mxu0 0.0
    %1215 = vmatprep.subr.mxu0 0.0
    %1216 = vmatpush1.msra.mxu0 0.0
    %1217 = vmatprep.subr.mxu0 0.0
    %1218 = vmatpush1.msra.mxu0 0.0
    %1219 = vmatprep.subr.mxu0 0.0
    %1220 = vmatpush1.msra.mxu0 0.0
    %1221 = vmatprep.subr.mxu0 0.0
    %1222 = vmatpush1.msra.mxu0 0.0
    %1223 = vmatprep.subr.mxu0 0.0
    %1224 = vmatpush1.msra.mxu0 0.0
    %1225 = vmatprep.subr.mxu0 0.0
    %1226 = vmatpush1.msra.mxu0 0.0
    %1227 = vmatprep.subr.mxu0 0.0
    %1228 = vmatpush1.msra.mxu0 0.0
    %1229 = vmatprep.subr.mxu0 0.0
    %1230 = vmatpush1.msra.mxu0 0.0
    %1231 = vmatprep.mubr.f32.mxu0 0.0
    %1232 = vmatmul.mubr.f32.gmra.mrb[0].mxu0 %v1162
    %v1233 = vpop.f32.mrb[0].mxu0
    %v1234 = vadd.f32 0.0, %v1233
    %v1235 = vpop.f32.mrb[0].mxu0
    %1236 = vmatprep.mubr.f32.mxu0 0.0
    %1237 = vmatmul.mubr.f32.gmra.mrb[0].mxu0 %v1165
    %v1238 = vpop.f32.mrb[0].mxu0
    %v1239 = vadd.f32 0.0, %v1238
    %v1240 = vpop.f32.mrb[0].mxu0
    %1241 = vdwg.mxu0
    %1244 = vrot.lane.b32.xlu0 %v1234, 16
    %v1245 = vpop.permute.xlu0 %1244
    %1246 = vrot.lane.b32.xlu0 %v1239, 16
    %v1247 = vpop.permute.xlu0 %1246
    %v1250 = vsel %vm845, %v1032, %v1245
    %v1251 = vsel %vm845, %v1037, %v1247
    %1254 = vrot.lane.b32.xlu0 %v831, 96
    %v1255 = vpop.permute.xlu0 %1254
    %1256 = vrot.lane.b32.xlu0 %v836, 96
    %v1257 = vpop.permute.xlu0 %1256
    %v1258 = vsel %vm845, %v831, 0
    %v1260 = vsel %vm845, %v836, 0
    %v1262 = vsel %vm845, %v1255, 0
    %v1264 = vsel %vm845, %v1257, 0
    %1266 = vmatprep.subr.mxu0 0.0
    %1267 = vmatpush1.xpose.msra.mxu0 %v1262
    %1268 = vmatprep.subr.mxu0 0.0
    %1269 = vmatpush1.xpose.msra.mxu0 %v1264
    %1270 = vmatprep.subr.mxu0 0.0
    %1271 = vmatpush1.xpose.msra.mxu0 0.0
    %1272 = vmatprep.subr.mxu0 0.0
    %1273 = vmatpush1.xpose.msra.mxu0 0.0
    %1274 = vmatprep.subr.mxu0 0.0
    %1275 = vmatpush1.xpose.msra.mxu0 0.0
    %1276 = vmatprep.subr.mxu0 0.0
    %1277 = vmatpush1.xpose.msra.mxu0 0.0
    %1278 = vmatprep.subr.mxu0 0.0
    %1279 = vmatpush1.xpose.msra.mxu0 0.0
    %1280 = vmatprep.subr.mxu0 0.0
    %1281 = vmatpush1.xpose.msra.mxu0 0.0
    %1282 = vmatprep.subr.mxu0 0.0
    %1283 = vmatpush1.xpose.msra.mxu0 0.0
    %1284 = vmatprep.subr.mxu0 0.0
    %1285 = vmatpush1.xpose.msra.mxu0 0.0
    %1286 = vmatprep.subr.mxu0 0.0
    %1287 = vmatpush1.xpose.msra.mxu0 0.0
    %1288 = vmatprep.subr.mxu0 0.0
    %1289 = vmatpush1.xpose.msra.mxu0 0.0
    %1290 = vmatprep.subr.mxu0 0.0
    %1291 = vmatpush1.xpose.msra.mxu0 0.0
    %1292 = vmatprep.subr.mxu0 0.0
    %1293 = vmatpush1.xpose.msra.mxu0 0.0
    %1294 = vmatprep.subr.mxu0 0.0
    %1295 = vmatpush1.xpose.msra.mxu0 0.0
    %1296 = vmatprep.subr.mxu0 0.0
    %1297 = vmatpush1.xpose.msra.mxu0 0.0
    %1298 = vmatprep.subr.mxu0 0.0
    %1299 = vmatpush1.xpose.msra.mxu0 0.0
    %1300 = vmatprep.subr.mxu0 0.0
    %1301 = vmatpush1.xpose.msra.mxu0 0.0
    %1302 = vmatprep.subr.mxu0 0.0
    %1303 = vmatpush1.xpose.msra.mxu0 0.0
    %1304 = vmatprep.subr.mxu0 0.0
    %1305 = vmatpush1.xpose.msra.mxu0 0.0
    %1306 = vmatprep.subr.mxu0 0.0
    %1307 = vmatpush1.xpose.msra.mxu0 0.0
    %1308 = vmatprep.subr.mxu0 0.0
    %1309 = vmatpush1.xpose.msra.mxu0 0.0
    %1310 = vmatprep.subr.mxu0 0.0
    %1311 = vmatpush1.xpose.msra.mxu0 0.0
    %1312 = vmatprep.subr.mxu0 0.0
    %1313 = vmatpush1.xpose.msra.mxu0 0.0
    %1314 = vmatprep.subr.mxu0 0.0
    %1315 = vmatpush1.xpose.msra.mxu0 0.0
    %1316 = vmatprep.subr.mxu0 0.0
    %1317 = vmatpush1.xpose.msra.mxu0 0.0
    %1318 = vmatprep.subr.mxu0 0.0
    %1319 = vmatpush1.xpose.msra.mxu0 0.0
    %1320 = vmatprep.subr.mxu0 0.0
    %1321 = vmatpush1.xpose.msra.mxu0 0.0
    %1322 = vmatprep.subr.mxu0 0.0
    %1323 = vmatpush1.xpose.msra.mxu0 0.0
    %1324 = vmatprep.subr.mxu0 0.0
    %1325 = vmatpush1.xpose.msra.mxu0 0.0
    %1326 = vmatprep.subr.mxu0 0.0
    %1327 = vmatpush1.xpose.msra.mxu0 0.0
    %1328 = vmatprep.subr.mxu0 0.0
    %1329 = vmatpush1.xpose.msra.mxu0 0.0
    %1330 = vmatprep.mubr.f32.mxu0 0.0
    %1331 = vmatmul.mubr.f32.gmra.mrb[0].mxu0 %v1258
    %v1332 = vpop.f32.mrb[0].mxu0
    %v1333 = vadd.f32 0.0, %v1332
    %v1334 = vpop.f32.mrb[0].mxu0
    %1335 = vmatprep.mubr.f32.mxu0 0.0
    %1336 = vmatmul.mubr.f32.gmra.mrb[0].mxu0 %v1260
    %v1337 = vpop.f32.mrb[0].mxu0
    %v1338 = vadd.f32 0.0, %v1337
    %v1339 = vpop.f32.mrb[0].mxu0
    %1340 = vdwg.mxu0
    %v1341 = vmul.f32 %v1333, 0.25
    %v1342 = vmul.f32 %v1338, 0.25
    %v1343 = vsel %vm845, %v1341, -inf
    %1344 = vmax.xlane.f32.xlu0 %v1343
    %v1345 = vpop.xlane.xlu0 %1344
    %v1346 = vsel %vm845, %v1342, -inf
    %1347 = vmax.xlane.f32.xlu0 %v1346
    %v1348 = vpop.xlane.xlu0 %1347
    %v1349 = vsub.f32 %v1341, %v1345
    %v1350 = vsub.f32 %v1342, %v1348
    %v1351 = vmul.f32 %v1349, 1.442695
    %v1352 = vpow.pop %v1351
    %v1353 = vmul.f32 %v1350, 1.442695
    %v1354 = vpow.pop %v1353
    %v1355 = vsel %vm845, %v1352, 0.0
    %1356 = vadd.xlane.f32.xlu0 %v1355
    %v1357 = vpop.xlane.xlu0 %1356
    %v1358 = vsel %vm845, %v1354, 0.0
    %1359 = vadd.xlane.f32.xlu0 %v1358
    %v1360 = vpop.xlane.xlu0 %1359
    %v1361 = vrcp.pop %v1357
    %v1362 = vrcp.pop %v1360
    %v1363 = vmul.f32 %v1352, %v1361
    %v1364 = vmul.f32 %v1354, %v1362
    %1365 = vrot.lane.b32.xlu0 %v831, 64
    %v1366 = vpop.permute.xlu0 %1365
    %1367 = vrot.lane.b32.xlu0 %v836, 64
    %v1368 = vpop.permute.xlu0 %1367
    %v1372 = vsel %vm845, %v1363, 0
    %v1375 = vsel %vm845, %v1364, 0
    %1377 = vmatprep.subr.mxu0 0.0
    %1378 = vmatpush1.msra.mxu0 %v1366
    %1379 = vmatprep.subr.mxu0 0.0
    %1380 = vmatpush1.msra.mxu0 %v1368
    %1381 = vmatprep.subr.mxu0 0.0
    %1382 = vmatpush1.msra.mxu0 0.0
    %1383 = vmatprep.subr.mxu0 0.0
    %1384 = vmatpush1.msra.mxu0 0.0
    %1385 = vmatprep.subr.mxu0 0.0
    %1386 = vmatpush1.msra.mxu0 0.0
    %1387 = vmatprep.subr.mxu0 0.0
    %1388 = vmatpush1.msra.mxu0 0.0
    %1389 = vmatprep.subr.mxu0 0.0
    %1390 = vmatpush1.msra.mxu0 0.0
    %1391 = vmatprep.subr.mxu0 0.0
    %1392 = vmatpush1.msra.mxu0 0.0
    %1393 = vmatprep.subr.mxu0 0.0
    %1394 = vmatpush1.msra.mxu0 0.0
    %1395 = vmatprep.subr.mxu0 0.0
    %1396 = vmatpush1.msra.mxu0 0.0
    %1397 = vmatprep.subr.mxu0 0.0
    %1398 = vmatpush1.msra.mxu0 0.0
    %1399 = vmatprep.subr.mxu0 0.0
    %1400 = vmatpush1.msra.mxu0 0.0
    %1401 = vmatprep.subr.mxu0 0.0
    %1402 = vmatpush1.msra.mxu0 0.0
    %1403 = vmatprep.subr.mxu0 0.0
    %1404 = vmatpush1.msra.mxu0 0.0
    %1405 = vmatprep.subr.mxu0 0.0
    %1406 = vmatpush1.msra.mxu0 0.0
    %1407 = vmatprep.subr.mxu0 0.0
    %1408 = vmatpush1.msra.mxu0 0.0
    %1409 = vmatprep.subr.mxu0 0.0
    %1410 = vmatpush1.msra.mxu0 0.0
    %1411 = vmatprep.subr.mxu0 0.0
    %1412 = vmatpush1.msra.mxu0 0.0
    %1413 = vmatprep.subr.mxu0 0.0
    %1414 = vmatpush1.msra.mxu0 0.0
    %1415 = vmatprep.subr.mxu0 0.0
    %1416 = vmatpush1.msra.mxu0 0.0
    %1417 = vmatprep.subr.mxu0 0.0
    %1418 = vmatpush1.msra.mxu0 0.0
    %1419 = vmatprep.subr.mxu0 0.0
    %1420 = vmatpush1.msra.mxu0 0.0
    %1421 = vmatprep.subr.mxu0 0.0
    %1422 = vmatpush1.msra.mxu0 0.0
    %1423 = vmatprep.subr.mxu0 0.0
    %1424 = vmatpush1.msra.mxu0 0.0
    %1425 = vmatprep.subr.mxu0 0.0
    %1426 = vmatpush1.msra.mxu0 0.0
    %1427 = vmatprep.subr.mxu0 0.0
    %1428 = vmatpush1.msra.mxu0 0.0
    %1429 = vmatprep.subr.mxu0 0.0
    %1430 = vmatpush1.msra.mxu0 0.0
    %1431 = vmatprep.subr.mxu0 0.0
    %1432 = vmatpush1.msra.mxu0 0.0
    %1433 = vmatprep.subr.mxu0 0.0
    %1434 = vmatpush1.msra.mxu0 0.0
    %1435 = vmatprep.subr.mxu0 0.0
    %1436 = vmatpush1.msra.mxu0 0.0
    %1437 = vmatprep.subr.mxu0 0.0
    %1438 = vmatpush1.msra.mxu0 0.0
    %1439 = vmatprep.subr.mxu0 0.0
    %1440 = vmatpush1.msra.mxu0 0.0
    %1441 = vmatprep.mubr.f32.mxu0 0.0
    %1442 = vmatmul.mubr.f32.gmra.mrb[0].mxu0 %v1372
    %v1443 = vpop.f32.mrb[0].mxu0
    %v1444 = vadd.f32 0.0, %v1443
    %v1445 = vpop.f32.mrb[0].mxu0
    %1446 = vmatprep.mubr.f32.mxu0 0.0
    %1447 = vmatmul.mubr.f32.gmra.mrb[0].mxu0 %v1375
    %v1448 = vpop.f32.mrb[0].mxu0
    %v1449 = vadd.f32 0.0, %v1448
    %v1450 = vpop.f32.mrb[0].mxu0
    %1451 = vdwg.mxu0
    %1452 = vrot.lane.b32.xlu0 %v831, 112
    %v1453 = vpop.permute.xlu0 %1452
    %1454 = vrot.lane.b32.xlu0 %v836, 112
    %v1455 = vpop.permute.xlu0 %1454
    %1456 = vrot.lane.b32.xlu0 %v831, 80
    %v1457 = vpop.permute.xlu0 %1456
    %1458 = vrot.lane.b32.xlu0 %v836, 80
    %v1459 = vpop.permute.xlu0 %1458
    %v1460 = vsel %vm845, %v1453, 0
    %v1462 = vsel %vm845, %v1455, 0
    %v1464 = vsel %vm845, %v1457, 0
    %v1466 = vsel %vm845, %v1459, 0
    %1468 = vmatprep.subr.mxu0 0.0
    %1469 = vmatpush1.xpose.msra.mxu0 %v1464
    %1470 = vmatprep.subr.mxu0 0.0
    %1471 = vmatpush1.xpose.msra.mxu0 %v1466
    %1472 = vmatprep.subr.mxu0 0.0
    %1473 = vmatpush1.xpose.msra.mxu0 0.0
    %1474 = vmatprep.subr.mxu0 0.0
    %1475 = vmatpush1.xpose.msra.mxu0 0.0
    %1476 = vmatprep.subr.mxu0 0.0
    %1477 = vmatpush1.xpose.msra.mxu0 0.0
    %1478 = vmatprep.subr.mxu0 0.0
    %1479 = vmatpush1.xpose.msra.mxu0 0.0
    %1480 = vmatprep.subr.mxu0 0.0
    %1481 = vmatpush1.xpose.msra.mxu0 0.0
    %1482 = vmatprep.subr.mxu0 0.0
    %1483 = vmatpush1.xpose.msra.mxu0 0.0
    %1484 = vmatprep.subr.mxu0 0.0
    %1485 = vmatpush1.xpose.msra.mxu0 0.0
    %1486 = vmatprep.subr.mxu0 0.0
    %1487 = vmatpush1.xpose.msra.mxu0 0.0
    %1488 = vmatprep.subr.mxu0 0.0
    %1489 = vmatpush1.xpose.msra.mxu0 0.0
    %1490 = vmatprep.subr.mxu0 0.0
    %1491 = vmatpush1.xpose.msra.mxu0 0.0
    %1492 = vmatprep.subr.mxu0 0.0
    %1493 = vmatpush1.xpose.msra.mxu0 0.0
    %1494 = vmatprep.subr.mxu0 0.0
    %1495 = vmatpush1.xpose.msra.mxu0 0.0
    %1496 = vmatprep.subr.mxu0 0.0
    %1497 = vmatpush1.xpose.msra.mxu0 0.0
    %1498 = vmatprep.subr.mxu0 0.0
    %1499 = vmatpush1.xpose.msra.mxu0 0.0
    %1500 = vmatprep.subr.mxu0 0.0
    %1501 = vmatpush1.xpose.msra.mxu0 0.0
    %1502 = vmatprep.subr.mxu0 0.0
    %1503 = vmatpush1.xpose.msra.mxu0 0.0
    %1504 = vmatprep.subr.mxu0 0.0
    %1505 = vmatpush1.xpose.msra.mxu0 0.0
    %1506 = vmatprep.subr.mxu0 0.0
    %1507 = vmatpush1.xpose.msra.mxu0 0.0
    %1508 = vmatprep.subr.mxu0 0.0
    %1509 = vmatpush1.xpose.msra.mxu0 0.0
    %1510 = vmatprep.subr.mxu0 0.0
    %1511 = vmatpush1.xpose.msra.mxu0 0.0
    %1512 = vmatprep.subr.mxu0 0.0
    %1513 = vmatpush1.xpose.msra.mxu0 0.0
    %1514 = vmatprep.subr.mxu0 0.0
    %1515 = vmatpush1.xpose.msra.mxu0 0.0
    %1516 = vmatprep.subr.mxu0 0.0
    %1517 = vmatpush1.xpose.msra.mxu0 0.0
    %1518 = vmatprep.subr.mxu0 0.0
    %1519 = vmatpush1.xpose.msra.mxu0 0.0
    %1520 = vmatprep.subr.mxu0 0.0
    %1521 = vmatpush1.xpose.msra.mxu0 0.0
    %1522 = vmatprep.subr.mxu0 0.0
    %1523 = vmatpush1.xpose.msra.mxu0 0.0
    %1524 = vmatprep.subr.mxu0 0.0
    %1525 = vmatpush1.xpose.msra.mxu0 0.0
    %1526 = vmatprep.subr.mxu0 0.0
    %1527 = vmatpush1.xpose.msra.mxu0 0.0
    %1528 = vmatprep.subr.mxu0 0.0
    %1529 = vmatpush1.xpose.msra.mxu0 0.0
    %1530 = vmatprep.subr.mxu0 0.0
    %1531 = vmatpush1.xpose.msra.mxu0 0.0
    %1532 = vmatprep.mubr.f32.mxu0 0.0
    %1533 = vmatmul.mubr.f32.gmra.mrb[0].mxu0 %v1460
    %v1534 = vpop.f32.mrb[0].mxu0
    %v1535 = vadd.f32 0.0, %v1534
    %v1536 = vpop.f32.mrb[0].mxu0
    %1537 = vmatprep.mubr.f32.mxu0 0.0
    %1538 = vmatmul.mubr.f32.gmra.mrb[0].mxu0 %v1462
    %v1539 = vpop.f32.mrb[0].mxu0
    %v1540 = vadd.f32 0.0, %v1539
    %v1541 = vpop.f32.mrb[0].mxu0
    %1542 = vdwg.mxu0
    %v1543 = vmul.f32 %v1535, 0.25
    %v1544 = vmul.f32 %v1540, 0.25
    %v1545 = vsel %vm845, %v1543, -inf
    %1546 = vmax.xlane.f32.xlu0 %v1545
    %v1547 = vpop.xlane.xlu0 %1546
    %v1548 = vsel %vm845, %v1544, -inf
    %1549 = vmax.xlane.f32.xlu0 %v1548
    %v1550 = vpop.xlane.xlu0 %1549
    %v1551 = vsub.f32 %v1543, %v1547
    %v1552 = vsub.f32 %v1544, %v1550
    %v1553 = vmul.f32 %v1551, 1.442695
    %v1554 = vpow.pop %v1553
    %v1555 = vmul.f32 %v1552, 1.442695
    %v1556 = vpow.pop %v1555
    %v1557 = vsel %vm845, %v1554, 0.0
    %1558 = vadd.xlane.f32.xlu0 %v1557
    %v1559 = vpop.xlane.xlu0 %1558
    %v1560 = vsel %vm845, %v1556, 0.0
    %1561 = vadd.xlane.f32.xlu0 %v1560
    %v1562 = vpop.xlane.xlu0 %1561
    %v1563 = vrcp.pop %v1559
    %v1564 = vrcp.pop %v1562
    %v1565 = vmul.f32 %v1554, %v1563
    %v1566 = vmul.f32 %v1556, %v1564
    %1567 = vrot.lane.b32.xlu0 %v831, 48
    %v1568 = vpop.permute.xlu0 %1567
    %1569 = vrot.lane.b32.xlu0 %v836, 48
    %v1570 = vpop.permute.xlu0 %1569
    %v1574 = vsel %vm845, %v1565, 0
    %v1577 = vsel %vm845, %v1566, 0
    %1579 = vmatprep.subr.mxu0 0.0
    %1580 = vmatpush1.msra.mxu0 %v1568
    %1581 = vmatprep.subr.mxu0 0.0
    %1582 = vmatpush1.msra.mxu0 %v1570
    %1583 = vmatprep.subr.mxu0 0.0
    %1584 = vmatpush1.msra.mxu0 0.0
    %1585 = vmatprep.subr.mxu0 0.0
    %1586 = vmatpush1.msra.mxu0 0.0
    %1587 = vmatprep.subr.mxu0 0.0
    %1588 = vmatpush1.msra.mxu0 0.0
    %1589 = vmatprep.subr.mxu0 0.0
    %1590 = vmatpush1.msra.mxu0 0.0
    %1591 = vmatprep.subr.mxu0 0.0
    %1592 = vmatpush1.msra.mxu0 0.0
    %1593 = vmatprep.subr.mxu0 0.0
    %1594 = vmatpush1.msra.mxu0 0.0
    %1595 = vmatprep.subr.mxu0 0.0
    %1596 = vmatpush1.msra.mxu0 0.0
    %1597 = vmatprep.subr.mxu0 0.0
    %1598 = vmatpush1.msra.mxu0 0.0
    %1599 = vmatprep.subr.mxu0 0.0
    %1600 = vmatpush1.msra.mxu0 0.0
    %1601 = vmatprep.subr.mxu0 0.0
    %1602 = vmatpush1.msra.mxu0 0.0
    %1603 = vmatprep.subr.mxu0 0.0
    %1604 = vmatpush1.msra.mxu0 0.0
    %1605 = vmatprep.subr.mxu0 0.0
    %1606 = vmatpush1.msra.mxu0 0.0
    %1607 = vmatprep.subr.mxu0 0.0
    %1608 = vmatpush1.msra.mxu0 0.0
    %1609 = vmatprep.subr.mxu0 0.0
    %1610 = vmatpush1.msra.mxu0 0.0
    %1611 = vmatprep.subr.mxu0 0.0
    %1612 = vmatpush1.msra.mxu0 0.0
    %1613 = vmatprep.subr.mxu0 0.0
    %1614 = vmatpush1.msra.mxu0 0.0
    %1615 = vmatprep.subr.mxu0 0.0
    %1616 = vmatpush1.msra.mxu0 0.0
    %1617 = vmatprep.subr.mxu0 0.0
    %1618 = vmatpush1.msra.mxu0 0.0
    %1619 = vmatprep.subr.mxu0 0.0
    %1620 = vmatpush1.msra.mxu0 0.0
    %1621 = vmatprep.subr.mxu0 0.0
    %1622 = vmatpush1.msra.mxu0 0.0
    %1623 = vmatprep.subr.mxu0 0.0
    %1624 = vmatpush1.msra.mxu0 0.0
    %1625 = vmatprep.subr.mxu0 0.0
    %1626 = vmatpush1.msra.mxu0 0.0
    %1627 = vmatprep.subr.mxu0 0.0
    %1628 = vmatpush1.msra.mxu0 0.0
    %1629 = vmatprep.subr.mxu0 0.0
    %1630 = vmatpush1.msra.mxu0 0.0
    %1631 = vmatprep.subr.mxu0 0.0
    %1632 = vmatpush1.msra.mxu0 0.0
    %1633 = vmatprep.subr.mxu0 0.0
    %1634 = vmatpush1.msra.mxu0 0.0
    %1635 = vmatprep.subr.mxu0 0.0
    %1636 = vmatpush1.msra.mxu0 0.0
    %1637 = vmatprep.subr.mxu0 0.0
    %1638 = vmatpush1.msra.mxu0 0.0
    %1639 = vmatprep.subr.mxu0 0.0
    %1640 = vmatpush1.msra.mxu0 0.0
    %1641 = vmatprep.subr.mxu0 0.0
    %1642 = vmatpush1.msra.mxu0 0.0
    %1643 = vmatprep.mubr.f32.mxu0 0.0
    %1644 = vmatmul.mubr.f32.gmra.mrb[0].mxu0 %v1574
    %v1645 = vpop.f32.mrb[0].mxu0
    %v1646 = vadd.f32 0.0, %v1645
    %v1647 = vpop.f32.mrb[0].mxu0
    %1648 = vmatprep.mubr.f32.mxu0 0.0
    %1649 = vmatmul.mubr.f32.gmra.mrb[0].mxu0 %v1577
    %v1650 = vpop.f32.mrb[0].mxu0
    %v1651 = vadd.f32 0.0, %v1650
    %v1652 = vpop.f32.mrb[0].mxu0
    %1653 = vdwg.mxu0
    %1656 = vrot.lane.b32.xlu0 %v1646, 16
    %v1657 = vpop.permute.xlu0 %1656
    %1658 = vrot.lane.b32.xlu0 %v1651, 16
    %v1659 = vpop.permute.xlu0 %1658
    %v1662 = vsel %vm845, %v1444, %v1657
    %v1663 = vsel %vm845, %v1449, %v1659
    %v1664 = vld [vmem:[#allocation9] sm:$0xff]
    %v1665 = vld [vmem:[#allocation9 + $0x8] sm:$0xff]
    %v1666 = vld [vmem:[#allocation9 + $0x10] sm:$0xff]
    %v1667 = vld [vmem:[#allocation9 + $0x18] sm:$0xff]
    %v1668 = vld [vmem:[#allocation11] sm:$0x1]
    %v1670 = vlaneseq
    %v1671 = vshrl.u32 %v1670, 7
    %v1672 = vsub.s32 0, %v1671
    %v1673 = vrot.slane %v1668, %v1672
    %v1676 = vsel %vm366, %v1250, 0
    %v1679 = vsel %vm366, %v1251, 0
    %v1682 = vsel %vm366, %v1662, 0
    %v1685 = vsel %vm366, %v1663, 0
    %1687 = vmatprep.subr.mxu0 0.0
    %1688 = vmatpush1.msra.mxu0 %v1664
    %1689 = vmatprep.subr.mxu0 0.0
    %1690 = vmatpush1.msra.mxu0 %v1665
    %1691 = vmatprep.subr.mxu0 0.0
    %1692 = vmatpush1.msra.mxu0 %v1666
    %1693 = vmatprep.subr.mxu0 0.0
    %1694 = vmatpush1.msra.mxu0 %v1667
    %1695 = vmatprep.subr.mxu0 0.0
    %1696 = vmatpush1.msra.mxu0 0.0
    %1697 = vmatprep.subr.mxu0 0.0
    %1698 = vmatpush1.msra.mxu0 0.0
    %1699 = vmatprep.subr.mxu0 0.0
    %1700 = vmatpush1.msra.mxu0 0.0
    %1701 = vmatprep.subr.mxu0 0.0
    %1702 = vmatpush1.msra.mxu0 0.0
    %1703 = vmatprep.subr.mxu0 0.0
    %1704 = vmatpush1.msra.mxu0 0.0
    %1705 = vmatprep.subr.mxu0 0.0
    %1706 = vmatpush1.msra.mxu0 0.0
    %1707 = vmatprep.subr.mxu0 0.0
    %1708 = vmatpush1.msra.mxu0 0.0
    %1709 = vmatprep.subr.mxu0 0.0
    %1710 = vmatpush1.msra.mxu0 0.0
    %1711 = vmatprep.subr.mxu0 0.0
    %1712 = vmatpush1.msra.mxu0 0.0
    %1713 = vmatprep.subr.mxu0 0.0
    %1714 = vmatpush1.msra.mxu0 0.0
    %1715 = vmatprep.subr.mxu0 0.0
    %1716 = vmatpush1.msra.mxu0 0.0
    %1717 = vmatprep.subr.mxu0 0.0
    %1718 = vmatpush1.msra.mxu0 0.0
    %1719 = vmatprep.subr.mxu0 0.0
    %1720 = vmatpush1.msra.mxu0 0.0
    %1721 = vmatprep.subr.mxu0 0.0
    %1722 = vmatpush1.msra.mxu0 0.0
    %1723 = vmatprep.subr.mxu0 0.0
    %1724 = vmatpush1.msra.mxu0 0.0
    %1725 = vmatprep.subr.mxu0 0.0
    %1726 = vmatpush1.msra.mxu0 0.0
    %1727 = vmatprep.subr.mxu0 0.0
    %1728 = vmatpush1.msra.mxu0 0.0
    %1729 = vmatprep.subr.mxu0 0.0
    %1730 = vmatpush1.msra.mxu0 0.0
    %1731 = vmatprep.subr.mxu0 0.0
    %1732 = vmatpush1.msra.mxu0 0.0
    %1733 = vmatprep.subr.mxu0 0.0
    %1734 = vmatpush1.msra.mxu0 0.0
    %1735 = vmatprep.subr.mxu0 0.0
    %1736 = vmatpush1.msra.mxu0 0.0
    %1737 = vmatprep.subr.mxu0 0.0
    %1738 = vmatpush1.msra.mxu0 0.0
    %1739 = vmatprep.subr.mxu0 0.0
    %1740 = vmatpush1.msra.mxu0 0.0
    %1741 = vmatprep.subr.mxu0 0.0
    %1742 = vmatpush1.msra.mxu0 0.0
    %1743 = vmatprep.subr.mxu0 0.0
    %1744 = vmatpush1.msra.mxu0 0.0
    %1745 = vmatprep.subr.mxu0 0.0
    %1746 = vmatpush1.msra.mxu0 0.0
    %1747 = vmatprep.subr.mxu0 0.0
    %1748 = vmatpush1.msra.mxu0 0.0
    %1749 = vmatprep.subr.mxu0 0.0
    %1750 = vmatpush1.msra.mxu0 0.0
    %1751 = vmatprep.mubr.f32.mxu0 0.0
    %1752 = vmatmul.mubr.f32.gmra.mrb[0].mxu0 %v1676
    %v1753 = vpop.f32.mrb[0].mxu0
    %v1754 = vadd.f32 %v1673, %v1753
    %v1755 = vpop.f32.mrb[0].mxu0
    %1756 = vmatprep.mubr.f32.mxu0 0.0
    %1757 = vmatmul.mubr.f32.gmra.mrb[0].mxu0 %v1679
    %v1758 = vpop.f32.mrb[0].mxu0
    %v1759 = vadd.f32 %v1673, %v1758
    %v1760 = vpop.f32.mrb[0].mxu0
    %1761 = vmatprep.mubr.f32.mxu0 0.0
    %1762 = vmatmul.mubr.f32.gmra.mrb[0].mxu0 %v1682
    %v1763 = vpop.f32.mrb[0].mxu0
    %v1764 = vadd.f32 %v1673, %v1763
    %v1765 = vpop.f32.mrb[0].mxu0
    %1766 = vmatprep.mubr.f32.mxu0 0.0
    %1767 = vmatmul.mubr.f32.gmra.mrb[0].mxu0 %v1685
    %v1768 = vpop.f32.mrb[0].mxu0
    %v1769 = vadd.f32 %v1673, %v1768
    %v1770 = vpop.f32.mrb[0].mxu0
    %1771 = vdwg.mxu0
    %v1772 = vadd.f32 %v1754, %v727
    %v1773 = vadd.f32 %v1759, %v728
    %v1774 = vadd.f32 %v1764, %v729
    %v1775 = vadd.f32 %v1769, %v730
    %v1776 = vld [vmem:[#allocation12] sm:$0x1]
    %v1777 = vld [vmem:[#allocation14] sm:$0x1]
    %v1778 = vsel %vm366, %v1772, 0.0
    %1779 = vadd.xlane.f32.xlu0 %v1778
    %v1780 = vpop.xlane.xlu0 %1779
    %v1781 = vsel %vm366, %v1773, 0.0
    %1782 = vadd.xlane.f32.xlu0 %v1781
    %v1783 = vpop.xlane.xlu0 %1782
    %v1784 = vsel %vm366, %v1774, 0.0
    %1785 = vadd.xlane.f32.xlu0 %v1784
    %v1786 = vpop.xlane.xlu0 %1785
    %v1787 = vsel %vm366, %v1775, 0.0
    %1788 = vadd.xlane.f32.xlu0 %v1787
    %v1789 = vpop.xlane.xlu0 %1788
    %v1790 = vrcp.pop 32.0
    %v1791 = vmul.f32 %v1780, %v1790
    %v1792 = vmul.f32 %v1783, %v1790
    %v1793 = vmul.f32 %v1786, %v1790
    %v1794 = vmul.f32 %v1789, %v1790
    %v1795 = vsub.f32 %v1772, %v1791
    %v1796 = vsub.f32 %v1773, %v1792
    %v1797 = vsub.f32 %v1774, %v1793
    %v1798 = vsub.f32 %v1775, %v1794
    %v1799 = vmul.f32 %v1795, %v1795
    %v1800 = vmul.f32 %v1796, %v1796
    %v1801 = vmul.f32 %v1797, %v1797
    %v1802 = vmul.f32 %v1798, %v1798
    %v1803 = vsel %vm366, %v1799, 0.0
    %1804 = vadd.xlane.f32.xlu0 %v1803
    %v1805 = vpop.xlane.xlu0 %1804
    %v1806 = vsel %vm366, %v1800, 0.0
    %1807 = vadd.xlane.f32.xlu0 %v1806
    %v1808 = vpop.xlane.xlu0 %1807
    %v1809 = vsel %vm366, %v1801, 0.0
    %1810 = vadd.xlane.f32.xlu0 %v1809
    %v1811 = vpop.xlane.xlu0 %1810
    %v1812 = vsel %vm366, %v1802, 0.0
    %1813 = vadd.xlane.f32.xlu0 %v1812
    %v1814 = vpop.xlane.xlu0 %1813
    %v1815 = vmul.f32 %v1805, %v1790
    %v1816 = vmul.f32 %v1808, %v1790
    %v1817 = vmul.f32 %v1811, %v1790
    %v1818 = vmul.f32 %v1814, %v1790
    %v1819 = vadd.f32 %v1815, 1e-05
    %v1820 = vadd.f32 %v1816, 1e-05
    %v1821 = vadd.f32 %v1817, 1e-05
    %v1822 = vadd.f32 %v1818, 1e-05
    %v1823 = vrsqrt.pop %v1819
    %v1824 = vrsqrt.pop %v1820
    %v1825 = vrsqrt.pop %v1821
    %v1826 = vrsqrt.pop %v1822
    %v1827 = vmul.f32 %v1795, %v1823
    %v1828 = vmul.f32 %v1796, %v1824
    %v1829 = vmul.f32 %v1797, %v1825
    %v1830 = vmul.f32 %v1798, %v1826
    %v1832 = vlaneseq
    %v1833 = vshrl.u32 %v1832, 7
    %v1834 = vsub.s32 0, %v1833
    %v1835 = vrot.slane %v1776, %v1834
    %v1837 = vmul.f32 %v1827, %v1835
    %v1838 = vmul.f32 %v1828, %v1835
    %v1839 = vmul.f32 %v1829, %v1835
    %v1840 = vmul.f32 %v1830, %v1835
    %v1842 = vlaneseq
    %v1843 = vshrl.u32 %v1842, 7
    %v1844 = vsub.s32 0, %v1843
    %v1845 = vrot.slane %v1777, %v1844
    %v1847 = vadd.f32 %v1837, %v1845
    %v1848 = vadd.f32 %v1838, %v1845
    %v1849 = vadd.f32 %v1839, %v1845
    %v1850 = vadd.f32 %v1840, %v1845
    %1851 = vst.msk [vmem:[#allocation2 + $0x8] sm:$0xff] %vm366, %v1847
    %1852 = vst.msk [vmem:[#allocation2 + $0x10] sm:$0xff] %vm366, %v1848
    %1853 = vst.msk [vmem:[#allocation2 + $0x28] sm:$0xff] %vm366, %v1849
    %1854 = vst.msk [vmem:[#allocation2 + $0x30] sm:$0xff] %vm366, %v1850
    %v1855 = vld [vmem:[#allocation2 + $0x4] sm:$0xff]
    %v1856 = vld [vmem:[#allocation2 + $0xc] sm:$0xff]
    %v1857 = vld [vmem:[#allocation2 + $0x5] sm:$0xff]
    %v1858 = vld [vmem:[#allocation2 + $0xd] sm:$0xff]
    %v1859 = vld [vmem:[#allocation2 + $0x6] sm:$0xff]
    %v1860 = vld [vmem:[#allocation2 + $0xe] sm:$0xff]
    %v1861 = vld [vmem:[#allocation2 + $0x7] sm:$0xff]
    %v1862 = vld [vmem:[#allocation2 + $0xf] sm:$0xff]
    %v1863 = vld [vmem:[#allocation2 + $0x8] sm:$0xff]
    %v1864 = vld [vmem:[#allocation2 + $0x10] sm:$0xff]
    %v1865 = vld [vmem:[#allocation2 + $0x9] sm:$0xff]
    %v1866 = vld [vmem:[#allocation2 + $0x11] sm:$0xff]
    %v1867 = vld [vmem:[#allocation2 + $0xa] sm:$0xff]
    %v1868 = vld [vmem:[#allocation2 + $0x12] sm:$0xff]
    %v1869 = vld [vmem:[#allocation2 + $0xb] sm:$0xff]
    %v1870 = vld [vmem:[#allocation2 + $0x13] sm:$0xff]
    %v1871 = vld [vmem:[#allocation2 + $0x14] sm:$0xff]
    %1874 = vrot.lane.b32.xlu0 %v1857, 32
    %v1875 = vpop.permute.xlu0 %1874
    %1876 = vrot.lane.b32.xlu0 %v1858, 32
    %v1877 = vpop.permute.xlu0 %1876
    %1882 = vrot.lane.b32.xlu0 %v1859, 64
    %v1883 = vpop.permute.xlu0 %1882
    %1884 = vrot.lane.b32.xlu0 %v1860, 64
    %v1885 = vpop.permute.xlu0 %1884
    %1890 = vrot.lane.b32.xlu0 %v1861, 96
    %v1891 = vpop.permute.xlu0 %1890
    %1892 = vrot.lane.b32.xlu0 %v1862, 96
    %v1893 = vpop.permute.xlu0 %1892
    %1898 = vrot.lane.b32.xlu0 %v1865, 32
    %v1899 = vpop.permute.xlu0 %1898
    %1900 = vrot.lane.b32.xlu0 %v1866, 32
    %v1901 = vpop.permute.xlu0 %1900
    %1906 = vrot.lane.b32.xlu0 %v1867, 64
    %v1907 = vpop.permute.xlu0 %1906
    %1908 = vrot.lane.b32.xlu0 %v1868, 64
    %v1909 = vpop.permute.xlu0 %1908
    %1914 = vrot.lane.b32.xlu0 %v1869, 96
    %v1915 = vpop.permute.xlu0 %1914
    %1916 = vrot.lane.b32.xlu0 %v1870, 96
    %v1917 = vpop.permute.xlu0 %1916
    %v1920 = vsel %vm366, %v1855, %v1875
    %v1921 = vsel %vm366, %v1856, %v1877
    %vm1922 = vcmask 523264
    %v1923 = vsel %vm1922, %v1920, %v1883
    %v1924 = vsel %vm1922, %v1921, %v1885
    %vm1925 = vcmask 785408
    %v1926 = vsel %vm1925, %v1923, %v1891
    %v1927 = vsel %vm1925, %v1924, %v1893
    %v1928 = vsel %vm366, %v1863, %v1899
    %v1929 = vsel %vm366, %v1864, %v1901
    %v1930 = vsel %vm1922, %v1928, %v1907
    %v1931 = vsel %vm1922, %v1929, %v1909
    %v1932 = vsel %vm1925, %v1930, %v1915
    %v1933 = vsel %vm1925, %v1931, %v1917
    %v1934 = vld [vmem:[#allocation2 + $0x24] sm:$0xff]
    %v1935 = vld [vmem:[#allocation2 + $0x2c] sm:$0xff]
    %v1936 = vld [vmem:[#allocation2 + $0x25] sm:$0xff]
    %v1937 = vld [vmem:[#allocation2 + $0x2d] sm:$0xff]
    %v1938 = vld [vmem:[#allocation2 + $0x26] sm:$0xff]
    %v1939 = vld [vmem:[#allocation2 + $0x2e] sm:$0xff]
    %v1940 = vld [vmem:[#allocation2 + $0x27] sm:$0xff]
    %v1941 = vld [vmem:[#allocation2 + $0x2f] sm:$0xff]
    %v1942 = vld [vmem:[#allocation2 + $0x28] sm:$0xff]
    %v1943 = vld [vmem:[#allocation2 + $0x30] sm:$0xff]
    %v1944 = vld [vmem:[#allocation2 + $0x29] sm:$0xff]
    %v1945 = vld [vmem:[#allocation2 + $0x31] sm:$0xff]
    %v1946 = vld [vmem:[#allocation2 + $0x2a] sm:$0xff]
    %v1947 = vld [vmem:[#allocation2 + $0x32] sm:$0xff]
    %v1948 = vld [vmem:[#allocation2 + $0x2b] sm:$0xff]
    %v1949 = vld [vmem:[#allocation2 + $0x33] sm:$0xff]
    %v1950 = vld [vmem:[#allocation2 + $0x34] sm:$0xff]
    %1953 = vrot.lane.b32.xlu0 %v1936, 32
    %v1954 = vpop.permute.xlu0 %1953
    %1955 = vrot.lane.b32.xlu0 %v1937, 32
    %v1956 = vpop.permute.xlu0 %1955
    %1961 = vrot.lane.b32.xlu0 %v1938, 64
    %v1962 = vpop.permute.xlu0 %1961
    %1963 = vrot.lane.b32.xlu0 %v1939, 64
    %v1964 = vpop.permute.xlu0 %1963
    %1969 = vrot.lane.b32.xlu0 %v1940, 96
    %v1970 = vpop.permute.xlu0 %1969
    %1971 = vrot.lane.b32.xlu0 %v1941, 96
    %v1972 = vpop.permute.xlu0 %1971
    %1977 = vrot.lane.b32.xlu0 %v1944, 32
    %v1978 = vpop.permute.xlu0 %1977
    %1979 = vrot.lane.b32.xlu0 %v1945, 32
    %v1980 = vpop.permute.xlu0 %1979
    %1985 = vrot.lane.b32.xlu0 %v1946, 64
    %v1986 = vpop.permute.xlu0 %1985
    %1987 = vrot.lane.b32.xlu0 %v1947, 64
    %v1988 = vpop.permute.xlu0 %1987
    %1993 = vrot.lane.b32.xlu0 %v1948, 96
    %v1994 = vpop.permute.xlu0 %1993
    %1995 = vrot.lane.b32.xlu0 %v1949, 96
    %v1996 = vpop.permute.xlu0 %1995
    %v1999 = vsel %vm366, %v1934, %v1954
    %v2000 = vsel %vm366, %v1935, %v1956
    %v2001 = vsel %vm1922, %v1999, %v1962
    %v2002 = vsel %vm1922, %v2000, %v1964
    %v2003 = vsel %vm1925, %v2001, %v1970
    %v2004 = vsel %vm1925, %v2002, %v1972
    %v2005 = vsel %vm366, %v1942, %v1978
    %v2006 = vsel %vm366, %v1943, %v1980
    %v2007 = vsel %vm1922, %v2005, %v1986
    %v2008 = vsel %vm1922, %v2006, %v1988
    %v2009 = vsel %vm1925, %v2007, %v1994
    %v2010 = vsel %vm1925, %v2008, %v1996
    %v2011 = vld [vmem:[%s29] sm:$0xff]
    %v2012 = vld [vmem:[%s29 + $0x8] sm:$0xff]
    %v2013 = vld [vmem:[%s29 + $0x10] sm:$0xff]
    %v2014 = vld [vmem:[%s29 + $0x18] sm:$0xff]
    %v2015 = vld [vmem:[%s29 + $0x20] sm:$0xff]
    %v2016 = vld [vmem:[%s29 + $0x28] sm:$0xff]
    %v2017 = vld [vmem:[%s29 + $0x30] sm:$0xff]
    %v2018 = vld [vmem:[%s29 + $0x38] sm:$0xff]
    %v2019 = vld [vmem:[%s29 + $0x40] sm:$0xff]
    %v2020 = vld [vmem:[%s29 + $0x48] sm:$0xff]
    %v2021 = vld [vmem:[%s29 + $0x50] sm:$0xff]
    %v2022 = vld [vmem:[%s29 + $0x58] sm:$0xff]
    %v2023 = vld [vmem:[%s29 + $0x60] sm:$0xff]
    %v2024 = vld [vmem:[%s29 + $0x68] sm:$0xff]
    %v2025 = vld [vmem:[%s29 + $0x70] sm:$0xff]
    %v2026 = vld [vmem:[%s29 + $0x78] sm:$0xff]
    %v2027 = vld [vmem:[%s29 + $0x80] sm:$0xff]
    %v2028 = vld [vmem:[%s29 + $0x88] sm:$0xff]
    %v2029 = vld [vmem:[%s29 + $0x90] sm:$0xff]
    %v2030 = vld [vmem:[%s29 + $0x98] sm:$0xff]
    %v2031 = vld [vmem:[%s29 + $0xa0] sm:$0xff]
    %v2032 = vld [vmem:[%s29 + $0xa8] sm:$0xff]
    %v2033 = vld [vmem:[%s29 + $0xb0] sm:$0xff]
    %v2034 = vld [vmem:[%s29 + $0xb8] sm:$0xff]
    %v2035 = vld [vmem:[%s29 + $0xc0] sm:$0xff]
    %v2036 = vld [vmem:[%s29 + $0xc8] sm:$0xff]
    %v2037 = vld [vmem:[%s29 + $0xd0] sm:$0xff]
    %v2038 = vld [vmem:[%s29 + $0xd8] sm:$0xff]
    %v2039 = vld [vmem:[%s29 + $0xe0] sm:$0xff]
    %v2040 = vld [vmem:[%s29 + $0xe8] sm:$0xff]
    %v2041 = vld [vmem:[%s29 + $0xf0] sm:$0xff]
    %v2042 = vld [vmem:[%s29 + $0xf8] sm:$0xff]
    %v2043 = vld [vmem:[%s29 + $0x100] sm:$0xff]
    %v2044 = vld [vmem:[%s29 + $0x108] sm:$0xff]
    %v2045 = vld [vmem:[%s29 + $0x110] sm:$0xff]
    %v2046 = vld [vmem:[%s29 + $0x118] sm:$0xff]
    %v2047 = vld [vmem:[#allocation15] sm:$0x1]
    %v2049 = vlaneseq
    %v2050 = vshrl.u32 %v2049, 7
    %v2051 = vsub.s32 0, %v2050
    %v2052 = vrot.slane %v2047, %v2051
    %v2055 = vsel %vm366, %v1856, 0
    %v2058 = vsel %vm366, %v1871, 0
    %v2061 = vsel %vm366, %v1935, 0
    %v2064 = vsel %vm366, %v1950, 0
    %2066 = vmatprep.subr.mxu0 0.0
    %2067 = vmatpush1.msra.mxu0 %v2011
    %2068 = vmatprep.subr.mxu0 0.0
    %2069 = vmatpush1.msra.mxu0 %v2012
    %2070 = vmatprep.subr.mxu0 0.0
    %2071 = vmatpush1.msra.mxu0 %v2013
    %2072 = vmatprep.subr.mxu0 0.0
    %2073 = vmatpush1.msra.mxu0 %v2014
    %2074 = vmatprep.subr.mxu0 0.0
    %2075 = vmatpush1.msra.mxu0 %v2015
    %2076 = vmatprep.subr.mxu0 0.0
    %2077 = vmatpush1.msra.mxu0 %v2016
    %2078 = vmatprep.subr.mxu0 0.0
    %2079 = vmatpush1.msra.mxu0 %v2017
    %2080 = vmatprep.subr.mxu0 0.0
    %2081 = vmatpush1.msra.mxu0 %v2018
    %2082 = vmatprep.subr.mxu0 0.0
    %2083 = vmatpush1.msra.mxu0 %v2019
    %2084 = vmatprep.subr.mxu0 0.0
    %2085 = vmatpush1.msra.mxu0 %v2020
    %2086 = vmatprep.subr.mxu0 0.0
    %2087 = vmatpush1.msra.mxu0 %v2021
    %2088 = vmatprep.subr.mxu0 0.0
    %2089 = vmatpush1.msra.mxu0 %v2022
    %2090 = vmatprep.subr.mxu0 0.0
    %2091 = vmatpush1.msra.mxu0 %v2023
    %2092 = vmatprep.subr.mxu0 0.0
    %2093 = vmatpush1.msra.mxu0 %v2024
    %2094 = vmatprep.subr.mxu0 0.0
    %2095 = vmatpush1.msra.mxu0 %v2025
    %2096 = vmatprep.subr.mxu0 0.0
    %2097 = vmatpush1.msra.mxu0 %v2026
    %2098 = vmatprep.subr.mxu0 0.0
    %2099 = vmatpush1.msra.mxu0 %v2027
    %2100 = vmatprep.subr.mxu0 0.0
    %2101 = vmatpush1.msra.mxu0 %v2028
    %2102 = vmatprep.subr.mxu0 0.0
    %2103 = vmatpush1.msra.mxu0 %v2029
    %2104 = vmatprep.subr.mxu0 0.0
    %2105 = vmatpush1.msra.mxu0 %v2030
    %2106 = vmatprep.subr.mxu0 0.0
    %2107 = vmatpush1.msra.mxu0 %v2031
    %2108 = vmatprep.subr.mxu0 0.0
    %2109 = vmatpush1.msra.mxu0 %v2032
    %2110 = vmatprep.subr.mxu0 0.0
    %2111 = vmatpush1.msra.mxu0 %v2033
    %2112 = vmatprep.subr.mxu0 0.0
    %2113 = vmatpush1.msra.mxu0 %v2034
    %2114 = vmatprep.subr.mxu0 0.0
    %2115 = vmatpush1.msra.mxu0 %v2035
    %2116 = vmatprep.subr.mxu0 0.0
    %2117 = vmatpush1.msra.mxu0 %v2036
    %2118 = vmatprep.subr.mxu0 0.0
    %2119 = vmatpush1.msra.mxu0 %v2037
    %2120 = vmatprep.subr.mxu0 0.0
    %2121 = vmatpush1.msra.mxu0 %v2038
    %2122 = vmatprep.subr.mxu0 0.0
    %2123 = vmatpush1.msra.mxu0 %v2039
    %2124 = vmatprep.subr.mxu0 0.0
    %2125 = vmatpush1.msra.mxu0 %v2040
    %2126 = vmatprep.subr.mxu0 0.0
    %2127 = vmatpush1.msra.mxu0 %v2041
    %2128 = vmatprep.subr.mxu0 0.0
    %2129 = vmatpush1.msra.mxu0 %v2042
    %2130 = vmatprep.mubr.f32.mxu0 %v1932
    %2131 = vmatmul.mubr.f32.gmra.mrb[0].mxu0 %v1926
    %v2132 = vpop.f32.mrb[0].mxu0
    %v2133 = vadd.f32 %v2052, %v2132
    %v2134 = vpop.f32.mrb[0].mxu0
    %2135 = vmatprep.mubr.f32.mxu0 %v1933
    %2136 = vmatmul.mubr.f32.gmra.mrb[0].mxu0 %v1927
    %v2137 = vpop.f32.mrb[0].mxu0
    %v2138 = vadd.f32 %v2052, %v2137
    %v2139 = vpop.f32.mrb[0].mxu0
    %2140 = vmatprep.mubr.f32.mxu0 %v2009
    %2141 = vmatmul.mubr.f32.gmra.mrb[0].mxu0 %v2003
    %v2142 = vpop.f32.mrb[0].mxu0
    %v2143 = vadd.f32 %v2052, %v2142
    %v2144 = vpop.f32.mrb[0].mxu0
    %2145 = vmatprep.mubr.f32.mxu0 %v2010
    %2146 = vmatmul.mubr.f32.gmra.mrb[0].mxu0 %v2004
    %v2147 = vpop.f32.mrb[0].mxu0
    %v2148 = vadd.f32 %v2052, %v2147
    %v2149 = vpop.f32.mrb[0].mxu0
    %2150 = vdwg.mxu0
    %2151 = vmatprep.subr.mxu0 0.0
    %2152 = vmatpush1.msra.mxu0 %v2043
    %2153 = vmatprep.subr.mxu0 0.0
    %2154 = vmatpush1.msra.mxu0 %v2044
    %2155 = vmatprep.subr.mxu0 0.0
    %2156 = vmatpush1.msra.mxu0 %v2045
    %2157 = vmatprep.subr.mxu0 0.0
    %2158 = vmatpush1.msra.mxu0 %v2046
    %2159 = vmatprep.subr.mxu0 0.0
    %2160 = vmatpush1.msra.mxu0 0.0
    %2161 = vmatprep.subr.mxu0 0.0
    %2162 = vmatpush1.msra.mxu0 0.0
    %2163 = vmatprep.subr.mxu0 0.0
    %2164 = vmatpush1.msra.mxu0 0.0
    %2165 = vmatprep.subr.mxu0 0.0
    %2166 = vmatpush1.msra.mxu0 0.0
    %2167 = vmatprep.subr.mxu0 0.0
    %2168 = vmatpush1.msra.mxu0 0.0
    %2169 = vmatprep.subr.mxu0 0.0
    %2170 = vmatpush1.msra.mxu0 0.0
    %2171 = vmatprep.subr.mxu0 0.0
    %2172 = vmatpush1.msra.mxu0 0.0
    %2173 = vmatprep.subr.mxu0 0.0
    %2174 = vmatpush1.msra.mxu0 0.0
    %2175 = vmatprep.subr.mxu0 0.0
    %2176 = vmatpush1.msra.mxu0 0.0
    %2177 = vmatprep.subr.mxu0 0.0
    %2178 = vmatpush1.msra.mxu0 0.0
    %2179 = vmatprep.subr.mxu0 0.0
    %2180 = vmatpush1.msra.mxu0 0.0
    %2181 = vmatprep.subr.mxu0 0.0
    %2182 = vmatpush1.msra.mxu0 0.0
    %2183 = vmatprep.subr.mxu0 0.0
    %2184 = vmatpush1.msra.mxu0 0.0
    %2185 = vmatprep.subr.mxu0 0.0
    %2186 = vmatpush1.msra.mxu0 0.0
    %2187 = vmatprep.subr.mxu0 0.0
    %2188 = vmatpush1.msra.mxu0 0.0
    %2189 = vmatprep.subr.mxu0 0.0
    %2190 = vmatpush1.msra.mxu0 0.0
    %2191 = vmatprep.subr.mxu0 0.0
    %2192 = vmatpush1.msra.mxu0 0.0
    %2193 = vmatprep.subr.mxu0 0.0
    %2194 = vmatpush1.msra.mxu0 0.0
    %2195 = vmatprep.subr.mxu0 0.0
    %2196 = vmatpush1.msra.mxu0 0.0
    %2197 = vmatprep.subr.mxu0 0.0
    %2198 = vmatpush1.msra.mxu0 0.0
    %2199 = vmatprep.subr.mxu0 0.0
    %2200 = vmatpush1.msra.mxu0 0.0
    %2201 = vmatprep.subr.mxu0 0.0
    %2202 = vmatpush1.msra.mxu0 0.0
    %2203 = vmatprep.subr.mxu0 0.0
    %2204 = vmatpush1.msra.mxu0 0.0
    %2205 = vmatprep.subr.mxu0 0.0
    %2206 = vmatpush1.msra.mxu0 0.0
    %2207 = vmatprep.subr.mxu0 0.0
    %2208 = vmatpush1.msra.mxu0 0.0
    %2209 = vmatprep.subr.mxu0 0.0
    %2210 = vmatpush1.msra.mxu0 0.0
    %2211 = vmatprep.subr.mxu0 0.0
    %2212 = vmatpush1.msra.mxu0 0.0
    %2213 = vmatprep.subr.mxu0 0.0
    %2214 = vmatpush1.msra.mxu0 0.0
    %2215 = vmatprep.mubr.f32.mxu0 0.0
    %2216 = vmatmul.mubr.f32.gmra.mrb[0].mxu0 %v2055
    %v2217 = vpop.f32.mrb[0].mxu0
    %v2218 = vadd.f32 %v2133, %v2217
    %v2219 = vpop.f32.mrb[0].mxu0
    %2220 = vmatprep.mubr.f32.mxu0 0.0
    %2221 = vmatmul.mubr.f32.gmra.mrb[0].mxu0 %v2058
    %v2222 = vpop.f32.mrb[0].mxu0
    %v2223 = vadd.f32 %v2138, %v2222
    %v2224 = vpop.f32.mrb[0].mxu0
    %2225 = vmatprep.mubr.f32.mxu0 0.0
    %2226 = vmatmul.mubr.f32.gmra.mrb[0].mxu0 %v2061
    %v2227 = vpop.f32.mrb[0].mxu0
    %v2228 = vadd.f32 %v2143, %v2227
    %v2229 = vpop.f32.mrb[0].mxu0
    %2230 = vmatprep.mubr.f32.mxu0 0.0
    %2231 = vmatmul.mubr.f32.gmra.mrb[0].mxu0 %v2064
    %v2232 = vpop.f32.mrb[0].mxu0
    %v2233 = vadd.f32 %v2148, %v2232
    %v2234 = vpop.f32.mrb[0].mxu0
    %2235 = vdwg.mxu0
    %v2236 = vmax.f32 %v2218, 0.0
    %v2237 = vmax.f32 %v2223, 0.0
    %v2238 = vmax.f32 %v2228, 0.0
    %v2239 = vmax.f32 %v2233, 0.0
    %v2240 = vld [vmem:[%s33] sm:$0xff]
    %v2241 = vld [vmem:[%s33 + $0x8] sm:$0xff]
    %v2242 = vld [vmem:[%s33 + $0x10] sm:$0xff]
    %v2243 = vld [vmem:[%s33 + $0x18] sm:$0xff]
    %v2244 = vld [vmem:[%s33 + $0x20] sm:$0xff]
    %v2245 = vld [vmem:[%s33 + $0x28] sm:$0xff]
    %v2246 = vld [vmem:[%s33 + $0x30] sm:$0xff]
    %v2247 = vld [vmem:[%s33 + $0x38] sm:$0xff]
    %v2248 = vld [vmem:[#allocation17] sm:$0x1]
    %v2250 = vlaneseq
    %v2251 = vshrl.u32 %v2250, 7
    %v2252 = vsub.s32 0, %v2251
    %v2253 = vrot.slane %v2248, %v2252
    %v2256 = vsel %vm1922, %v2236, 0
    %v2259 = vsel %vm1922, %v2237, 0
    %v2262 = vsel %vm1922, %v2238, 0
    %v2265 = vsel %vm1922, %v2239, 0
    %2267 = vmatprep.subr.mxu0 0.0
    %2268 = vmatpush1.msra.mxu0 %v2240
    %2269 = vmatprep.subr.mxu0 0.0
    %2270 = vmatpush1.msra.mxu0 %v2241
    %2271 = vmatprep.subr.mxu0 0.0
    %2272 = vmatpush1.msra.mxu0 %v2242
    %2273 = vmatprep.subr.mxu0 0.0
    %2274 = vmatpush1.msra.mxu0 %v2243
    %2275 = vmatprep.subr.mxu0 0.0
    %2276 = vmatpush1.msra.mxu0 %v2244
    %2277 = vmatprep.subr.mxu0 0.0
    %2278 = vmatpush1.msra.mxu0 %v2245
    %2279 = vmatprep.subr.mxu0 0.0
    %2280 = vmatpush1.msra.mxu0 %v2246
    %2281 = vmatprep.subr.mxu0 0.0
    %2282 = vmatpush1.msra.mxu0 %v2247
    %2283 = vmatprep.subr.mxu0 0.0
    %2284 = vmatpush1.msra.mxu0 0.0
    %2285 = vmatprep.subr.mxu0 0.0
    %2286 = vmatpush1.msra.mxu0 0.0
    %2287 = vmatprep.subr.mxu0 0.0
    %2288 = vmatpush1.msra.mxu0 0.0
    %2289 = vmatprep.subr.mxu0 0.0
    %2290 = vmatpush1.msra.mxu0 0.0
    %2291 = vmatprep.subr.mxu0 0.0
    %2292 = vmatpush1.msra.mxu0 0.0
    %2293 = vmatprep.subr.mxu0 0.0
    %2294 = vmatpush1.msra.mxu0 0.0
    %2295 = vmatprep.subr.mxu0 0.0
    %2296 = vmatpush1.msra.mxu0 0.0
    %2297 = vmatprep.subr.mxu0 0.0
    %2298 = vmatpush1.msra.mxu0 0.0
    %2299 = vmatprep.subr.mxu0 0.0
    %2300 = vmatpush1.msra.mxu0 0.0
    %2301 = vmatprep.subr.mxu0 0.0
    %2302 = vmatpush1.msra.mxu0 0.0
    %2303 = vmatprep.subr.mxu0 0.0
    %2304 = vmatpush1.msra.mxu0 0.0
    %2305 = vmatprep.subr.mxu0 0.0
    %2306 = vmatpush1.msra.mxu0 0.0
    %2307 = vmatprep.subr.mxu0 0.0
    %2308 = vmatpush1.msra.mxu0 0.0
    %2309 = vmatprep.subr.mxu0 0.0
    %2310 = vmatpush1.msra.mxu0 0.0
    %2311 = vmatprep.subr.mxu0 0.0
    %2312 = vmatpush1.msra.mxu0 0.0
    %2313 = vmatprep.subr.mxu0 0.0
    %2314 = vmatpush1.msra.mxu0 0.0
    %2315 = vmatprep.subr.mxu0 0.0
    %2316 = vmatpush1.msra.mxu0 0.0
    %2317 = vmatprep.subr.mxu0 0.0
    %2318 = vmatpush1.msra.mxu0 0.0
    %2319 = vmatprep.subr.mxu0 0.0
    %2320 = vmatpush1.msra.mxu0 0.0
    %2321 = vmatprep.subr.mxu0 0.0
    %2322 = vmatpush1.msra.mxu0 0.0
    %2323 = vmatprep.subr.mxu0 0.0
    %2324 = vmatpush1.msra.mxu0 0.0
    %2325 = vmatprep.subr.mxu0 0.0
    %2326 = vmatpush1.msra.mxu0 0.0
    %2327 = vmatprep.subr.mxu0 0.0
    %2328 = vmatpush1.msra.mxu0 0.0
    %2329 = vmatprep.subr.mxu0 0.0
    %2330 = vmatpush1.msra.mxu0 0.0
    %2331 = vmatprep.mubr.f32.mxu0 0.0
    %2332 = vmatmul.mubr.f32.gmra.mrb[0].mxu0 %v2256
    %v2333 = vpop.f32.mrb[0].mxu0
    %v2334 = vadd.f32 %v2253, %v2333
    %v2335 = vpop.f32.mrb[0].mxu0
    %2336 = vmatprep.mubr.f32.mxu0 0.0
    %2337 = vmatmul.mubr.f32.gmra.mrb[0].mxu0 %v2259
    %v2338 = vpop.f32.mrb[0].mxu0
    %v2339 = vadd.f32 %v2253, %v2338
    %v2340 = vpop.f32.mrb[0].mxu0
    %2341 = vmatprep.mubr.f32.mxu0 0.0
    %2342 = vmatmul.mubr.f32.gmra.mrb[0].mxu0 %v2262
    %v2343 = vpop.f32.mrb[0].mxu0
    %v2344 = vadd.f32 %v2253, %v2343
    %v2345 = vpop.f32.mrb[0].mxu0
    %2346 = vmatprep.mubr.f32.mxu0 0.0
    %2347 = vmatmul.mubr.f32.gmra.mrb[0].mxu0 %v2265
    %v2348 = vpop.f32.mrb[0].mxu0
    %v2349 = vadd.f32 %v2253, %v2348
    %v2350 = vpop.f32.mrb[0].mxu0
    %2351 = vdwg.mxu0
    %v2352 = vadd.f32 %v2334, %v1847
    %v2353 = vadd.f32 %v2339, %v1848
    %v2354 = vadd.f32 %v2344, %v1849
    %v2355 = vadd.f32 %v2349, %v1850
    %v2356 = vld [vmem:[#allocation18] sm:$0x1]
    %v2357 = vld [vmem:[#allocation20] sm:$0x1]
    %v2358 = vsel %vm366, %v2352, 0.0
    %2359 = vadd.xlane.f32.xlu0 %v2358
    %v2360 = vpop.xlane.xlu0 %2359
    %v2361 = vsel %vm366, %v2353, 0.0
    %2362 = vadd.xlane.f32.xlu0 %v2361
    %v2363 = vpop.xlane.xlu0 %2362
    %v2364 = vsel %vm366, %v2354, 0.0
    %2365 = vadd.xlane.f32.xlu0 %v2364
    %v2366 = vpop.xlane.xlu0 %2365
    %v2367 = vsel %vm366, %v2355, 0.0
    %2368 = vadd.xlane.f32.xlu0 %v2367
    %v2369 = vpop.xlane.xlu0 %2368
    %v2370 = vmul.f32 %v2360, %v1790
    %v2371 = vmul.f32 %v2363, %v1790
    %v2372 = vmul.f32 %v2366, %v1790
    %v2373 = vmul.f32 %v2369, %v1790
    %v2374 = vsub.f32 %v2352, %v2370
    %v2375 = vsub.f32 %v2353, %v2371
    %v2376 = vsub.f32 %v2354, %v2372
    %v2377 = vsub.f32 %v2355, %v2373
    %v2378 = vmul.f32 %v2374, %v2374
    %v2379 = vmul.f32 %v2375, %v2375
    %v2380 = vmul.f32 %v2376, %v2376
    %v2381 = vmul.f32 %v2377, %v2377
    %v2382 = vsel %vm366, %v2378, 0.0
    %2383 = vadd.xlane.f32.xlu0 %v2382
    %v2384 = vpop.xlane.xlu0 %2383
    %v2385 = vsel %vm366, %v2379, 0.0
    %2386 = vadd.xlane.f32.xlu0 %v2385
    %v2387 = vpop.xlane.xlu0 %2386
    %v2388 = vsel %vm366, %v2380, 0.0
    %2389 = vadd.xlane.f32.xlu0 %v2388
    %v2390 = vpop.xlane.xlu0 %2389
    %v2391 = vsel %vm366, %v2381, 0.0
    %2392 = vadd.xlane.f32.xlu0 %v2391
    %v2393 = vpop.xlane.xlu0 %2392
    %v2394 = vmul.f32 %v2384, %v1790
    %v2395 = vmul.f32 %v2387, %v1790
    %v2396 = vmul.f32 %v2390, %v1790
    %v2397 = vmul.f32 %v2393, %v1790
    %v2398 = vadd.f32 %v2394, 1e-05
    %v2399 = vadd.f32 %v2395, 1e-05
    %v2400 = vadd.f32 %v2396, 1e-05
    %v2401 = vadd.f32 %v2397, 1e-05
    %v2402 = vrsqrt.pop %v2398
    %v2403 = vrsqrt.pop %v2399
    %v2404 = vrsqrt.pop %v2400
    %v2405 = vrsqrt.pop %v2401
    %v2406 = vmul.f32 %v2374, %v2402
    %v2407 = vmul.f32 %v2375, %v2403
    %v2408 = vmul.f32 %v2376, %v2404
    %v2409 = vmul.f32 %v2377, %v2405
    %v2411 = vlaneseq
    %v2412 = vshrl.u32 %v2411, 7
    %v2413 = vsub.s32 0, %v2412
    %v2414 = vrot.slane %v2356, %v2413
    %v2416 = vmul.f32 %v2406, %v2414
    %v2417 = vmul.f32 %v2407, %v2414
    %v2418 = vmul.f32 %v2408, %v2414
    %v2419 = vmul.f32 %v2409, %v2414
    %v2421 = vlaneseq
    %v2422 = vshrl.u32 %v2421, 7
    %v2423 = vsub.s32 0, %v2422
    %v2424 = vrot.slane %v2357, %v2423
    %v2426 = vadd.f32 %v2416, %v2424
    %v2427 = vadd.f32 %v2417, %v2424
    %v2428 = vadd.f32 %v2418, %v2424
    %v2429 = vadd.f32 %v2419, %v2424
    %v2430 = vld [vmem:[%s41] sm:$0xff]
    %v2431 = vld [vmem:[%s41 + $0x8] sm:$0xff]
    %v2432 = vld [vmem:[%s41 + $0x10] sm:$0xff]
    %v2433 = vld [vmem:[%s41 + $0x18] sm:$0xff]
    %v2434 = vld [vmem:[%s43] sm:$0x1]
    %v2436 = vlaneseq
    %v2437 = vshrl.u32 %v2436, 7
    %v2438 = vsub.s32 0, %v2437
    %v2439 = vrot.slane %v2434, %v2438
    %v2442 = vsel %vm366, %v2426, 0
    %v2445 = vsel %vm366, %v2427, 0
    %v2448 = vsel %vm366, %v2428, 0
    %v2451 = vsel %vm366, %v2429, 0
    %2453 = vmatprep.subr.mxu0 0.0
    %2454 = vmatpush1.msra.mxu0 %v2430
    %2455 = vmatprep.subr.mxu0 0.0
    %2456 = vmatpush1.msra.mxu0 %v2431
    %2457 = vmatprep.subr.mxu0 0.0
    %2458 = vmatpush1.msra.mxu0 %v2432
    %2459 = vmatprep.subr.mxu0 0.0
    %2460 = vmatpush1.msra.mxu0 %v2433
    %2461 = vmatprep.subr.mxu0 0.0
    %2462 = vmatpush1.msra.mxu0 0.0
    %2463 = vmatprep.subr.mxu0 0.0
    %2464 = vmatpush1.msra.mxu0 0.0
    %2465 = vmatprep.subr.mxu0 0.0
    %2466 = vmatpush1.msra.mxu0 0.0
    %2467 = vmatprep.subr.mxu0 0.0
    %2468 = vmatpush1.msra.mxu0 0.0
    %2469 = vmatprep.subr.mxu0 0.0
    %2470 = vmatpush1.msra.mxu0 0.0
    %2471 = vmatprep.subr.mxu0 0.0
    %2472 = vmatpush1.msra.mxu0 0.0
    %2473 = vmatprep.subr.mxu0 0.0
    %2474 = vmatpush1.msra.mxu0 0.0
    %2475 = vmatprep.subr.mxu0 0.0
    %2476 = vmatpush1.msra.mxu0 0.0
    %2477 = vmatprep.subr.mxu0 0.0
    %2478 = vmatpush1.msra.mxu0 0.0
    %2479 = vmatprep.subr.mxu0 0.0
    %2480 = vmatpush1.msra.mxu0 0.0
    %2481 = vmatprep.subr.mxu0 0.0
    %2482 = vmatpush1.msra.mxu0 0.0
    %2483 = vmatprep.subr.mxu0 0.0
    %2484 = vmatpush1.msra.mxu0 0.0
    %2485 = vmatprep.subr.mxu0 0.0
    %2486 = vmatpush1.msra.mxu0 0.0
    %2487 = vmatprep.subr.mxu0 0.0
    %2488 = vmatpush1.msra.mxu0 0.0
    %2489 = vmatprep.subr.mxu0 0.0
    %2490 = vmatpush1.msra.mxu0 0.0
    %2491 = vmatprep.subr.mxu0 0.0
    %2492 = vmatpush1.msra.mxu0 0.0
    %2493 = vmatprep.subr.mxu0 0.0
    %2494 = vmatpush1.msra.mxu0 0.0
    %2495 = vmatprep.subr.mxu0 0.0
    %2496 = vmatpush1.msra.mxu0 0.0
    %2497 = vmatprep.subr.mxu0 0.0
    %2498 = vmatpush1.msra.mxu0 0.0
    %2499 = vmatprep.subr.mxu0 0.0
    %2500 = vmatpush1.msra.mxu0 0.0
    %2501 = vmatprep.subr.mxu0 0.0
    %2502 = vmatpush1.msra.mxu0 0.0
    %2503 = vmatprep.subr.mxu0 0.0
    %2504 = vmatpush1.msra.mxu0 0.0
    %2505 = vmatprep.subr.mxu0 0.0
    %2506 = vmatpush1.msra.mxu0 0.0
    %2507 = vmatprep.subr.mxu0 0.0
    %2508 = vmatpush1.msra.mxu0 0.0
    %2509 = vmatprep.subr.mxu0 0.0
    %2510 = vmatpush1.msra.mxu0 0.0
    %2511 = vmatprep.subr.mxu0 0.0
    %2512 = vmatpush1.msra.mxu0 0.0
    %2513 = vmatprep.subr.mxu0 0.0
    %2514 = vmatpush1.msra.mxu0 0.0
    %2515 = vmatprep.subr.mxu0 0.0
    %2516 = vmatpush1.msra.mxu0 0.0
    %2517 = vmatprep.mubr.f32.mxu0 0.0
    %2518 = vmatmul.mubr.f32.gmra.mrb[0].mxu0 %v2442
    %v2519 = vpop.f32.mrb[0].mxu0
    %v2520 = vadd.f32 %v2439, %v2519
    %v2521 = vpop.f32.mrb[0].mxu0
    %2522 = vmatprep.mubr.f32.mxu0 0.0
    %2523 = vmatmul.mubr.f32.gmra.mrb[0].mxu0 %v2445
    %v2524 = vpop.f32.mrb[0].mxu0
    %v2525 = vadd.f32 %v2439, %v2524
    %v2526 = vpop.f32.mrb[0].mxu0
    %2527 = vmatprep.mubr.f32.mxu0 0.0
    %2528 = vmatmul.mubr.f32.gmra.mrb[0].mxu0 %v2448
    %v2529 = vpop.f32.mrb[0].mxu0
    %v2530 = vadd.f32 %v2439, %v2529
    %v2531 = vpop.f32.mrb[0].mxu0
    %2532 = vmatprep.mubr.f32.mxu0 0.0
    %2533 = vmatmul.mubr.f32.gmra.mrb[0].mxu0 %v2451
    %v2534 = vpop.f32.mrb[0].mxu0
    %v2535 = vadd.f32 %v2439, %v2534
    %v2536 = vpop.f32.mrb[0].mxu0
    %2537 = vdwg.mxu0
    %2540 = vrot.lane.b32.xlu0 %v2520, 96
    %v2541 = vpop.permute.xlu0 %2540
    %2542 = vrot.lane.b32.xlu0 %v2525, 96
    %v2543 = vpop.permute.xlu0 %2542
    %v2544 = vsel %vm845, %v2520, 0
    %v2546 = vsel %vm845, %v2525, 0
    %v2548 = vsel %vm845, %v2541, 0
    %v2550 = vsel %vm845, %v2543, 0
    %2552 = vmatprep.subr.mxu0 0.0
    %2553 = vmatpush1.xpose.msra.mxu0 %v2548
    %2554 = vmatprep.subr.mxu0 0.0
    %2555 = vmatpush1.xpose.msra.mxu0 %v2550
    %2556 = vmatprep.subr.mxu0 0.0
    %2557 = vmatpush1.xpose.msra.mxu0 0.0
    %2558 = vmatprep.subr.mxu0 0.0
    %2559 = vmatpush1.xpose.msra.mxu0 0.0
    %2560 = vmatprep.subr.mxu0 0.0
    %2561 = vmatpush1.xpose.msra.mxu0 0.0
    %2562 = vmatprep.subr.mxu0 0.0
    %2563 = vmatpush1.xpose.msra.mxu0 0.0
    %2564 = vmatprep.subr.mxu0 0.0
    %2565 = vmatpush1.xpose.msra.mxu0 0.0
    %2566 = vmatprep.subr.mxu0 0.0
    %2567 = vmatpush1.xpose.msra.mxu0 0.0
    %2568 = vmatprep.subr.mxu0 0.0
    %2569 = vmatpush1.xpose.msra.mxu0 0.0
    %2570 = vmatprep.subr.mxu0 0.0
    %2571 = vmatpush1.xpose.msra.mxu0 0.0
    %2572 = vmatprep.subr.mxu0 0.0
    %2573 = vmatpush1.xpose.msra.mxu0 0.0
    %2574 = vmatprep.subr.mxu0 0.0
    %2575 = vmatpush1.xpose.msra.mxu0 0.0
    %2576 = vmatprep.subr.mxu0 0.0
    %2577 = vmatpush1.xpose.msra.mxu0 0.0
    %2578 = vmatprep.subr.mxu0 0.0
    %2579 = vmatpush1.xpose.msra.mxu0 0.0
    %2580 = vmatprep.subr.mxu0 0.0
    %2581 = vmatpush1.xpose.msra.mxu0 0.0
    %2582 = vmatprep.subr.mxu0 0.0
    %2583 = vmatpush1.xpose.msra.mxu0 0.0
    %2584 = vmatprep.subr.mxu0 0.0
    %2585 = vmatpush1.xpose.msra.mxu0 0.0
    %2586 = vmatprep.subr.mxu0 0.0
    %2587 = vmatpush1.xpose.msra.mxu0 0.0
    %2588 = vmatprep.subr.mxu0 0.0
    %2589 = vmatpush1.xpose.msra.mxu0 0.0
    %2590 = vmatprep.subr.mxu0 0.0
    %2591 = vmatpush1.xpose.msra.mxu0 0.0
    %2592 = vmatprep.subr.mxu0 0.0
    %2593 = vmatpush1.xpose.msra.mxu0 0.0
    %2594 = vmatprep.subr.mxu0 0.0
    %2595 = vmatpush1.xpose.msra.mxu0 0.0
    %2596 = vmatprep.subr.mxu0 0.0
    %2597 = vmatpush1.xpose.msra.mxu0 0.0
    %2598 = vmatprep.subr.mxu0 0.0
    %2599 = vmatpush1.xpose.msra.mxu0 0.0
    %2600 = vmatprep.subr.mxu0 0.0
    %2601 = vmatpush1.xpose.msra.mxu0 0.0
    %2602 = vmatprep.subr.mxu0 0.0
    %2603 = vmatpush1.xpose.msra.mxu0 0.0
    %2604 = vmatprep.subr.mxu0 0.0
    %2605 = vmatpush1.xpose.msra.mxu0 0.0
    %2606 = vmatprep.subr.mxu0 0.0
    %2607 = vmatpush1.xpose.msra.mxu0 0.0
    %2608 = vmatprep.subr.mxu0 0.0
    %2609 = vmatpush1.xpose.msra.mxu0 0.0
    %2610 = vmatprep.subr.mxu0 0.0
    %2611 = vmatpush1.xpose.msra.mxu0 0.0
    %2612 = vmatprep.subr.mxu0 0.0
    %2613 = vmatpush1.xpose.msra.mxu0 0.0
    %2614 = vmatprep.subr.mxu0 0.0
    %2615 = vmatpush1.xpose.msra.mxu0 0.0
    %2616 = vmatprep.mubr.f32.mxu0 0.0
    %2617 = vmatmul.mubr.f32.gmra.mrb[0].mxu0 %v2544
    %v2618 = vpop.f32.mrb[0].mxu0
    %v2619 = vadd.f32 0.0, %v2618
    %v2620 = vpop.f32.mrb[0].mxu0
    %2621 = vmatprep.mubr.f32.mxu0 0.0
    %2622 = vmatmul.mubr.f32.gmra.mrb[0].mxu0 %v2546
    %v2623 = vpop.f32.mrb[0].mxu0
    %v2624 = vadd.f32 0.0, %v2623
    %v2625 = vpop.f32.mrb[0].mxu0
    %2626 = vdwg.mxu0
    %v2627 = vmul.f32 %v2619, 0.25
    %v2628 = vmul.f32 %v2624, 0.25
    %v2629 = vsel %vm845, %v2627, -inf
    %2630 = vmax.xlane.f32.xlu0 %v2629
    %v2631 = vpop.xlane.xlu0 %2630
    %v2632 = vsel %vm845, %v2628, -inf
    %2633 = vmax.xlane.f32.xlu0 %v2632
    %v2634 = vpop.xlane.xlu0 %2633
    %v2635 = vsub.f32 %v2627, %v2631
    %v2636 = vsub.f32 %v2628, %v2634
    %v2637 = vmul.f32 %v2635, 1.442695
    %v2638 = vpow.pop %v2637
    %v2639 = vmul.f32 %v2636, 1.442695
    %v2640 = vpow.pop %v2639
    %v2641 = vsel %vm845, %v2638, 0.0
    %2642 = vadd.xlane.f32.xlu0 %v2641
    %v2643 = vpop.xlane.xlu0 %2642
    %v2644 = vsel %vm845, %v2640, 0.0
    %2645 = vadd.xlane.f32.xlu0 %v2644
    %v2646 = vpop.xlane.xlu0 %2645
    %v2647 = vrcp.pop %v2643
    %v2648 = vrcp.pop %v2646
    %v2649 = vmul.f32 %v2638, %v2647
    %v2650 = vmul.f32 %v2640, %v2648
    %2651 = vrot.lane.b32.xlu0 %v2520, 64
    %v2652 = vpop.permute.xlu0 %2651
    %2653 = vrot.lane.b32.xlu0 %v2525, 64
    %v2654 = vpop.permute.xlu0 %2653
    %v2658 = vsel %vm845, %v2649, 0
    %v2661 = vsel %vm845, %v2650, 0
    %2663 = vmatprep.subr.mxu0 0.0
    %2664 = vmatpush1.msra.mxu0 %v2652
    %2665 = vmatprep.subr.mxu0 0.0
    %2666 = vmatpush1.msra.mxu0 %v2654
    %2667 = vmatprep.subr.mxu0 0.0
    %2668 = vmatpush1.msra.mxu0 0.0
    %2669 = vmatprep.subr.mxu0 0.0
    %2670 = vmatpush1.msra.mxu0 0.0
    %2671 = vmatprep.subr.mxu0 0.0
    %2672 = vmatpush1.msra.mxu0 0.0
    %2673 = vmatprep.subr.mxu0 0.0
    %2674 = vmatpush1.msra.mxu0 0.0
    %2675 = vmatprep.subr.mxu0 0.0
    %2676 = vmatpush1.msra.mxu0 0.0
    %2677 = vmatprep.subr.mxu0 0.0
    %2678 = vmatpush1.msra.mxu0 0.0
    %2679 = vmatprep.subr.mxu0 0.0
    %2680 = vmatpush1.msra.mxu0 0.0
    %2681 = vmatprep.subr.mxu0 0.0
    %2682 = vmatpush1.msra.mxu0 0.0
    %2683 = vmatprep.subr.mxu0 0.0
    %2684 = vmatpush1.msra.mxu0 0.0
    %2685 = vmatprep.subr.mxu0 0.0
    %2686 = vmatpush1.msra.mxu0 0.0
    %2687 = vmatprep.subr.mxu0 0.0
    %2688 = vmatpush1.msra.mxu0 0.0
    %2689 = vmatprep.subr.mxu0 0.0
    %2690 = vmatpush1.msra.mxu0 0.0
    %2691 = vmatprep.subr.mxu0 0.0
    %2692 = vmatpush1.msra.mxu0 0.0
    %2693 = vmatprep.subr.mxu0 0.0
    %2694 = vmatpush1.msra.mxu0 0.0
    %2695 = vmatprep.subr.mxu0 0.0
    %2696 = vmatpush1.msra.mxu0 0.0
    %2697 = vmatprep.subr.mxu0 0.0
    %2698 = vmatpush1.msra.mxu0 0.0
    %2699 = vmatprep.subr.mxu0 0.0
    %2700 = vmatpush1.msra.mxu0 0.0
    %2701 = vmatprep.subr.mxu0 0.0
    %2702 = vmatpush1.msra.mxu0 0.0
    %2703 = vmatprep.subr.mxu0 0.0
    %2704 = vmatpush1.msra.mxu0 0.0
    %2705 = vmatprep.subr.mxu0 0.0
    %2706 = vmatpush1.msra.mxu0 0.0
    %2707 = vmatprep.subr.mxu0 0.0
    %2708 = vmatpush1.msra.mxu0 0.0
    %2709 = vmatprep.subr.mxu0 0.0
    %2710 = vmatpush1.msra.mxu0 0.0
    %2711 = vmatprep.subr.mxu0 0.0
    %2712 = vmatpush1.msra.mxu0 0.0
    %2713 = vmatprep.subr.mxu0 0.0
    %2714 = vmatpush1.msra.mxu0 0.0
    %2715 = vmatprep.subr.mxu0 0.0
    %2716 = vmatpush1.msra.mxu0 0.0
    %2717 = vmatprep.subr.mxu0 0.0
    %2718 = vmatpush1.msra.mxu0 0.0
    %2719 = vmatprep.subr.mxu0 0.0
    %2720 = vmatpush1.msra.mxu0 0.0
    %2721 = vmatprep.subr.mxu0 0.0
    %2722 = vmatpush1.msra.mxu0 0.0
    %2723 = vmatprep.subr.mxu0 0.0
    %2724 = vmatpush1.msra.mxu0 0.0
    %2725 = vmatprep.subr.mxu0 0.0
    %2726 = vmatpush1.msra.mxu0 0.0
    %2727 = vmatprep.mubr.f32.mxu0 0.0
    %2728 = vmatmul.mubr.f32.gmra.mrb[0].mxu0 %v2658
    %v2729 = vpop.f32.mrb[0].mxu0
    %v2730 = vadd.f32 0.0, %v2729
    %v2731 = vpop.f32.mrb[0].mxu0
    %2732 = vmatprep.mubr.f32.mxu0 0.0
    %2733 = vmatmul.mubr.f32.gmra.mrb[0].mxu0 %v2661
    %v2734 = vpop.f32.mrb[0].mxu0
    %v2735 = vadd.f32 0.0, %v2734
    %v2736 = vpop.f32.mrb[0].mxu0
    %2737 = vdwg.mxu0
    %2738 = vrot.lane.b32.xlu0 %v2520, 112
    %v2739 = vpop.permute.xlu0 %2738
    %2740 = vrot.lane.b32.xlu0 %v2525, 112
    %v2741 = vpop.permute.xlu0 %2740
    %2742 = vrot.lane.b32.xlu0 %v2520, 80
    %v2743 = vpop.permute.xlu0 %2742
    %2744 = vrot.lane.b32.xlu0 %v2525, 80
    %v2745 = vpop.permute.xlu0 %2744
    %v2746 = vsel %vm845, %v2739, 0
    %v2748 = vsel %vm845, %v2741, 0
    %v2750 = vsel %vm845, %v2743, 0
    %v2752 = vsel %vm845, %v2745, 0
    %2754 = vmatprep.subr.mxu0 0.0
    %2755 = vmatpush1.xpose.msra.mxu0 %v2750
    %2756 = vmatprep.subr.mxu0 0.0
    %2757 = vmatpush1.xpose.msra.mxu0 %v2752
    %2758 = vmatprep.subr.mxu0 0.0
    %2759 = vmatpush1.xpose.msra.mxu0 0.0
    %2760 = vmatprep.subr.mxu0 0.0
    %2761 = vmatpush1.xpose.msra.mxu0 0.0
    %2762 = vmatprep.subr.mxu0 0.0
    %2763 = vmatpush1.xpose.msra.mxu0 0.0
    %2764 = vmatprep.subr.mxu0 0.0
    %2765 = vmatpush1.xpose.msra.mxu0 0.0
    %2766 = vmatprep.subr.mxu0 0.0
    %2767 = vmatpush1.xpose.msra.mxu0 0.0
    %2768 = vmatprep.subr.mxu0 0.0
    %2769 = vmatpush1.xpose.msra.mxu0 0.0
    %2770 = vmatprep.subr.mxu0 0.0
    %2771 = vmatpush1.xpose.msra.mxu0 0.0
    %2772 = vmatprep.subr.mxu0 0.0
    %2773 = vmatpush1.xpose.msra.mxu0 0.0
    %2774 = vmatprep.subr.mxu0 0.0
    %2775 = vmatpush1.xpose.msra.mxu0 0.0
    %2776 = vmatprep.subr.mxu0 0.0
    %2777 = vmatpush1.xpose.msra.mxu0 0.0
    %2778 = vmatprep.subr.mxu0 0.0
    %2779 = vmatpush1.xpose.msra.mxu0 0.0
    %2780 = vmatprep.subr.mxu0 0.0
    %2781 = vmatpush1.xpose.msra.mxu0 0.0
    %2782 = vmatprep.subr.mxu0 0.0
    %2783 = vmatpush1.xpose.msra.mxu0 0.0
    %2784 = vmatprep.subr.mxu0 0.0
    %2785 = vmatpush1.xpose.msra.mxu0 0.0
    %2786 = vmatprep.subr.mxu0 0.0
    %2787 = vmatpush1.xpose.msra.mxu0 0.0
    %2788 = vmatprep.subr.mxu0 0.0
    %2789 = vmatpush1.xpose.msra.mxu0 0.0
    %2790 = vmatprep.subr.mxu0 0.0
    %2791 = vmatpush1.xpose.msra.mxu0 0.0
    %2792 = vmatprep.subr.mxu0 0.0
    %2793 = vmatpush1.xpose.msra.mxu0 0.0
    %2794 = vmatprep.subr.mxu0 0.0
    %2795 = vmatpush1.xpose.msra.mxu0 0.0
    %2796 = vmatprep.subr.mxu0 0.0
    %2797 = vmatpush1.xpose.msra.mxu0 0.0
    %2798 = vmatprep.subr.mxu0 0.0
    %2799 = vmatpush1.xpose.msra.mxu0 0.0
    %2800 = vmatprep.subr.mxu0 0.0
    %2801 = vmatpush1.xpose.msra.mxu0 0.0
    %2802 = vmatprep.subr.mxu0 0.0
    %2803 = vmatpush1.xpose.msra.mxu0 0.0
    %2804 = vmatprep.subr.mxu0 0.0
    %2805 = vmatpush1.xpose.msra.mxu0 0.0
    %2806 = vmatprep.subr.mxu0 0.0
    %2807 = vmatpush1.xpose.msra.mxu0 0.0
    %2808 = vmatprep.subr.mxu0 0.0
    %2809 = vmatpush1.xpose.msra.mxu0 0.0
    %2810 = vmatprep.subr.mxu0 0.0
    %2811 = vmatpush1.xpose.msra.mxu0 0.0
    %2812 = vmatprep.subr.mxu0 0.0
    %2813 = vmatpush1.xpose.msra.mxu0 0.0
    %2814 = vmatprep.subr.mxu0 0.0
    %2815 = vmatpush1.xpose.msra.mxu0 0.0
    %2816 = vmatprep.subr.mxu0 0.0
    %2817 = vmatpush1.xpose.msra.mxu0 0.0
    %2818 = vmatprep.mubr.f32.mxu0 0.0
    %2819 = vmatmul.mubr.f32.gmra.mrb[0].mxu0 %v2746
    %v2820 = vpop.f32.mrb[0].mxu0
    %v2821 = vadd.f32 0.0, %v2820
    %v2822 = vpop.f32.mrb[0].mxu0
    %2823 = vmatprep.mubr.f32.mxu0 0.0
    %2824 = vmatmul.mubr.f32.gmra.mrb[0].mxu0 %v2748
    %v2825 = vpop.f32.mrb[0].mxu0
    %v2826 = vadd.f32 0.0, %v2825
    %v2827 = vpop.f32.mrb[0].mxu0
    %2828 = vdwg.mxu0
    %v2829 = vmul.f32 %v2821, 0.25
    %v2830 = vmul.f32 %v2826, 0.25
    %v2831 = vsel %vm845, %v2829, -inf
    %2832 = vmax.xlane.f32.xlu0 %v2831
    %v2833 = vpop.xlane.xlu0 %2832
    %v2834 = vsel %vm845, %v2830, -inf
    %2835 = vmax.xlane.f32.xlu0 %v2834
    %v2836 = vpop.xlane.xlu0 %2835
    %v2837 = vsub.f32 %v2829, %v2833
    %v2838 = vsub.f32 %v2830, %v2836
    %v2839 = vmul.f32 %v2837, 1.442695
    %v2840 = vpow.pop %v2839
    %v2841 = vmul.f32 %v2838, 1.442695
    %v2842 = vpow.pop %v2841
    %v2843 = vsel %vm845, %v2840, 0.0
    %2844 = vadd.xlane.f32.xlu0 %v2843
    %v2845 = vpop.xlane.xlu0 %2844
    %v2846 = vsel %vm845, %v2842, 0.0
    %2847 = vadd.xlane.f32.xlu0 %v2846
    %v2848 = vpop.xlane.xlu0 %2847
    %v2849 = vrcp.pop %v2845
    %v2850 = vrcp.pop %v2848
    %v2851 = vmul.f32 %v2840, %v2849
    %v2852 = vmul.f32 %v2842, %v2850
    %2853 = vrot.lane.b32.xlu0 %v2520, 48
    %v2854 = vpop.permute.xlu0 %2853
    %2855 = vrot.lane.b32.xlu0 %v2525, 48
    %v2856 = vpop.permute.xlu0 %2855
    %v2860 = vsel %vm845, %v2851, 0
    %v2863 = vsel %vm845, %v2852, 0
    %2865 = vmatprep.subr.mxu0 0.0
    %2866 = vmatpush1.msra.mxu0 %v2854
    %2867 = vmatprep.subr.mxu0 0.0
    %2868 = vmatpush1.msra.mxu0 %v2856
    %2869 = vmatprep.subr.mxu0 0.0
    %2870 = vmatpush1.msra.mxu0 0.0
    %2871 = vmatprep.subr.mxu0 0.0
    %2872 = vmatpush1.msra.mxu0 0.0
    %2873 = vmatprep.subr.mxu0 0.0
    %2874 = vmatpush1.msra.mxu0 0.0
    %2875 = vmatprep.subr.mxu0 0.0
    %2876 = vmatpush1.msra.mxu0 0.0
    %2877 = vmatprep.subr.mxu0 0.0
    %2878 = vmatpush1.msra.mxu0 0.0
    %2879 = vmatprep.subr.mxu0 0.0
    %2880 = vmatpush1.msra.mxu0 0.0
    %2881 = vmatprep.subr.mxu0 0.0
    %2882 = vmatpush1.msra.mxu0 0.0
    %2883 = vmatprep.subr.mxu0 0.0
    %2884 = vmatpush1.msra.mxu0 0.0
    %2885 = vmatprep.subr.mxu0 0.0
    %2886 = vmatpush1.msra.mxu0 0.0
    %2887 = vmatprep.subr.mxu0 0.0
    %2888 = vmatpush1.msra.mxu0 0.0
    %2889 = vmatprep.subr.mxu0 0.0
    %2890 = vmatpush1.msra.mxu0 0.0
    %2891 = vmatprep.subr.mxu0 0.0
    %2892 = vmatpush1.msra.mxu0 0.0
    %2893 = vmatprep.subr.mxu0 0.0
    %2894 = vmatpush1.msra.mxu0 0.0
    %2895 = vmatprep.subr.mxu0 0.0
    %2896 = vmatpush1.msra.mxu0 0.0
    %2897 = vmatprep.subr.mxu0 0.0
    %2898 = vmatpush1.msra.mxu0 0.0
    %2899 = vmatprep.subr.mxu0 0.0
    %2900 = vmatpush1.msra.mxu0 0.0
    %2901 = vmatprep.subr.mxu0 0.0
    %2902 = vmatpush1.msra.mxu0 0.0
    %2903 = vmatprep.subr.mxu0 0.0
    %2904 = vmatpush1.msra.mxu0 0.0
    %2905 = vmatprep.subr.mxu0 0.0
    %2906 = vmatpush1.msra.mxu0 0.0
    %2907 = vmatprep.subr.mxu0 0.0
    %2908 = vmatpush1.msra.mxu0 0.0
    %2909 = vmatprep.subr.mxu0 0.0
    %2910 = vmatpush1.msra.mxu0 0.0
    %2911 = vmatprep.subr.mxu0 0.0
    %2912 = vmatpush1.msra.mxu0 0.0
    %2913 = vmatprep.subr.mxu0 0.0
    %2914 = vmatpush1.msra.mxu0 0.0
    %2915 = vmatprep.subr.mxu0 0.0
    %2916 = vmatpush1.msra.mxu0 0.0
    %2917 = vmatprep.subr.mxu0 0.0
    %2918 = vmatpush1.msra.mxu0 0.0
    %2919 = vmatprep.subr.mxu0 0.0
    %2920 = vmatpush1.msra.mxu0 0.0
    %2921 = vmatprep.subr.mxu0 0.0
    %2922 = vmatpush1.msra.mxu0 0.0
    %2923 = vmatprep.subr.mxu0 0.0
    %2924 = vmatpush1.msra.mxu0 0.0
    %2925 = vmatprep.subr.mxu0 0.0
    %2926 = vmatpush1.msra.mxu0 0.0
    %2927 = vmatprep.subr.mxu0 0.0
    %2928 = vmatpush1.msra.mxu0 0.0
    %2929 = vmatprep.mubr.f32.mxu0 0.0
    %2930 = vmatmul.mubr.f32.gmra.mrb[0].mxu0 %v2860
    %v2931 = vpop.f32.mrb[0].mxu0
    %v2932 = vadd.f32 0.0, %v2931
    %v2933 = vpop.f32.mrb[0].mxu0
    %2934 = vmatprep.mubr.f32.mxu0 0.0
    %2935 = vmatmul.mubr.f32.gmra.mrb[0].mxu0 %v2863
    %v2936 = vpop.f32.mrb[0].mxu0
    %v2937 = vadd.f32 0.0, %v2936
    %v2938 = vpop.f32.mrb[0].mxu0
    %2939 = vdwg.mxu0
    %2942 = vrot.lane.b32.xlu0 %v2932, 16
    %v2943 = vpop.permute.xlu0 %2942
    %2944 = vrot.lane.b32.xlu0 %v2937, 16
    %v2945 = vpop.permute.xlu0 %2944
    %v2948 = vsel %vm845, %v2730, %v2943
    %v2949 = vsel %vm845, %v2735, %v2945
    %2952 = vrot.lane.b32.xlu0 %v2530, 96
    %v2953 = vpop.permute.xlu0 %2952
    %2954 = vrot.lane.b32.xlu0 %v2535, 96
    %v2955 = vpop.permute.xlu0 %2954
    %v2956 = vsel %vm845, %v2530, 0
    %v2958 = vsel %vm845, %v2535, 0
    %v2960 = vsel %vm845, %v2953, 0
    %v2962 = vsel %vm845, %v2955, 0
    %2964 = vmatprep.subr.mxu0 0.0
    %2965 = vmatpush1.xpose.msra.mxu0 %v2960
    %2966 = vmatprep.subr.mxu0 0.0
    %2967 = vmatpush1.xpose.msra.mxu0 %v2962
    %2968 = vmatprep.subr.mxu0 0.0
    %2969 = vmatpush1.xpose.msra.mxu0 0.0
    %2970 = vmatprep.subr.mxu0 0.0
    %2971 = vmatpush1.xpose.msra.mxu0 0.0
    %2972 = vmatprep.subr.mxu0 0.0
    %2973 = vmatpush1.xpose.msra.mxu0 0.0
    %2974 = vmatprep.subr.mxu0 0.0
    %2975 = vmatpush1.xpose.msra.mxu0 0.0
    %2976 = vmatprep.subr.mxu0 0.0
    %2977 = vmatpush1.xpose.msra.mxu0 0.0
    %2978 = vmatprep.subr.mxu0 0.0
    %2979 = vmatpush1.xpose.msra.mxu0 0.0
    %2980 = vmatprep.subr.mxu0 0.0
    %2981 = vmatpush1.xpose.msra.mxu0 0.0
    %2982 = vmatprep.subr.mxu0 0.0
    %2983 = vmatpush1.xpose.msra.mxu0 0.0
    %2984 = vmatprep.subr.mxu0 0.0
    %2985 = vmatpush1.xpose.msra.mxu0 0.0
    %2986 = vmatprep.subr.mxu0 0.0
    %2987 = vmatpush1.xpose.msra.mxu0 0.0
    %2988 = vmatprep.subr.mxu0 0.0
    %2989 = vmatpush1.xpose.msra.mxu0 0.0
    %2990 = vmatprep.subr.mxu0 0.0
    %2991 = vmatpush1.xpose.msra.mxu0 0.0
    %2992 = vmatprep.subr.mxu0 0.0
    %2993 = vmatpush1.xpose.msra.mxu0 0.0
    %2994 = vmatprep.subr.mxu0 0.0
    %2995 = vmatpush1.xpose.msra.mxu0 0.0
    %2996 = vmatprep.subr.mxu0 0.0
    %2997 = vmatpush1.xpose.msra.mxu0 0.0
    %2998 = vmatprep.subr.mxu0 0.0
    %2999 = vmatpush1.xpose.msra.mxu0 0.0
    %3000 = vmatprep.subr.mxu0 0.0
    %3001 = vmatpush1.xpose.msra.mxu0 0.0
    %3002 = vmatprep.subr.mxu0 0.0
    %3003 = vmatpush1.xpose.msra.mxu0 0.0
    %3004 = vmatprep.subr.mxu0 0.0
    %3005 = vmatpush1.xpose.msra.mxu0 0.0
    %3006 = vmatprep.subr.mxu0 0.0
    %3007 = vmatpush1.xpose.msra.mxu0 0.0
    %3008 = vmatprep.subr.mxu0 0.0
    %3009 = vmatpush1.xpose.msra.mxu0 0.0
    %3010 = vmatprep.subr.mxu0 0.0
    %3011 = vmatpush1.xpose.msra.mxu0 0.0
    %3012 = vmatprep.subr.mxu0 0.0
    %3013 = vmatpush1.xpose.msra.mxu0 0.0
    %3014 = vmatprep.subr.mxu0 0.0
    %3015 = vmatpush1.xpose.msra.mxu0 0.0
    %3016 = vmatprep.subr.mxu0 0.0
    %3017 = vmatpush1.xpose.msra.mxu0 0.0
    %3018 = vmatprep.subr.mxu0 0.0
    %3019 = vmatpush1.xpose.msra.mxu0 0.0
    %3020 = vmatprep.subr.mxu0 0.0
    %3021 = vmatpush1.xpose.msra.mxu0 0.0
    %3022 = vmatprep.subr.mxu0 0.0
    %3023 = vmatpush1.xpose.msra.mxu0 0.0
    %3024 = vmatprep.subr.mxu0 0.0
    %3025 = vmatpush1.xpose.msra.mxu0 0.0
    %3026 = vmatprep.subr.mxu0 0.0
    %3027 = vmatpush1.xpose.msra.mxu0 0.0
    %3028 = vmatprep.mubr.f32.mxu0 0.0
    %3029 = vmatmul.mubr.f32.gmra.mrb[0].mxu0 %v2956
    %v3030 = vpop.f32.mrb[0].mxu0
    %v3031 = vadd.f32 0.0, %v3030
    %v3032 = vpop.f32.mrb[0].mxu0
    %3033 = vmatprep.mubr.f32.mxu0 0.0
    %3034 = vmatmul.mubr.f32.gmra.mrb[0].mxu0 %v2958
    %v3035 = vpop.f32.mrb[0].mxu0
    %v3036 = vadd.f32 0.0, %v3035
    %v3037 = vpop.f32.mrb[0].mxu0
    %3038 = vdwg.mxu0
    %v3039 = vmul.f32 %v3031, 0.25
    %v3040 = vmul.f32 %v3036, 0.25
    %v3041 = vsel %vm845, %v3039, -inf
    %3042 = vmax.xlane.f32.xlu0 %v3041
    %v3043 = vpop.xlane.xlu0 %3042
    %v3044 = vsel %vm845, %v3040, -inf
    %3045 = vmax.xlane.f32.xlu0 %v3044
    %v3046 = vpop.xlane.xlu0 %3045
    %v3047 = vsub.f32 %v3039, %v3043
    %v3048 = vsub.f32 %v3040, %v3046
    %v3049 = vmul.f32 %v3047, 1.442695
    %v3050 = vpow.pop %v3049
    %v3051 = vmul.f32 %v3048, 1.442695
    %v3052 = vpow.pop %v3051
    %v3053 = vsel %vm845, %v3050, 0.0
    %3054 = vadd.xlane.f32.xlu0 %v3053
    %v3055 = vpop.xlane.xlu0 %3054
    %v3056 = vsel %vm845, %v3052, 0.0
    %3057 = vadd.xlane.f32.xlu0 %v3056
    %v3058 = vpop.xlane.xlu0 %3057
    %v3059 = vrcp.pop %v3055
    %v3060 = vrcp.pop %v3058
    %v3061 = vmul.f32 %v3050, %v3059
    %v3062 = vmul.f32 %v3052, %v3060
    %3063 = vrot.lane.b32.xlu0 %v2530, 64
    %v3064 = vpop.permute.xlu0 %3063
    %3065 = vrot.lane.b32.xlu0 %v2535, 64
    %v3066 = vpop.permute.xlu0 %3065
    %v3070 = vsel %vm845, %v3061, 0
    %v3073 = vsel %vm845, %v3062, 0
    %3075 = vmatprep.subr.mxu0 0.0
    %3076 = vmatpush1.msra.mxu0 %v3064
    %3077 = vmatprep.subr.mxu0 0.0
    %3078 = vmatpush1.msra.mxu0 %v3066
    %3079 = vmatprep.subr.mxu0 0.0
    %3080 = vmatpush1.msra.mxu0 0.0
    %3081 = vmatprep.subr.mxu0 0.0
    %3082 = vmatpush1.msra.mxu0 0.0
    %3083 = vmatprep.subr.mxu0 0.0
    %3084 = vmatpush1.msra.mxu0 0.0
    %3085 = vmatprep.subr.mxu0 0.0
    %3086 = vmatpush1.msra.mxu0 0.0
    %3087 = vmatprep.subr.mxu0 0.0
    %3088 = vmatpush1.msra.mxu0 0.0
    %3089 = vmatprep.subr.mxu0 0.0
    %3090 = vmatpush1.msra.mxu0 0.0
    %3091 = vmatprep.subr.mxu0 0.0
    %3092 = vmatpush1.msra.mxu0 0.0
    %3093 = vmatprep.subr.mxu0 0.0
    %3094 = vmatpush1.msra.mxu0 0.0
    %3095 = vmatprep.subr.mxu0 0.0
    %3096 = vmatpush1.msra.mxu0 0.0
    %3097 = vmatprep.subr.mxu0 0.0
    %3098 = vmatpush1.msra.mxu0 0.0
    %3099 = vmatprep.subr.mxu0 0.0
    %3100 = vmatpush1.msra.mxu0 0.0
    %3101 = vmatprep.subr.mxu0 0.0
    %3102 = vmatpush1.msra.mxu0 0.0
    %3103 = vmatprep.subr.mxu0 0.0
    %3104 = vmatpush1.msra.mxu0 0.0
    %3105 = vmatprep.subr.mxu0 0.0
    %3106 = vmatpush1.msra.mxu0 0.0
    %3107 = vmatprep.subr.mxu0 0.0
    %3108 = vmatpush1.msra.mxu0 0.0
    %3109 = vmatprep.subr.mxu0 0.0
    %3110 = vmatpush1.msra.mxu0 0.0
    %3111 = vmatprep.subr.mxu0 0.0
    %3112 = vmatpush1.msra.mxu0 0.0
    %3113 = vmatprep.subr.mxu0 0.0
    %3114 = vmatpush1.msra.mxu0 0.0
    %3115 = vmatprep.subr.mxu0 0.0
    %3116 = vmatpush1.msra.mxu0 0.0
    %3117 = vmatprep.subr.mxu0 0.0
    %3118 = vmatpush1.msra.mxu0 0.0
    %3119 = vmatprep.subr.mxu0 0.0
    %3120 = vmatpush1.msra.mxu0 0.0
    %3121 = vmatprep.subr.mxu0 0.0
    %3122 = vmatpush1.msra.mxu0 0.0
    %3123 = vmatprep.subr.mxu0 0.0
    %3124 = vmatpush1.msra.mxu0 0.0
    %3125 = vmatprep.subr.mxu0 0.0
    %3126 = vmatpush1.msra.mxu0 0.0
    %3127 = vmatprep.subr.mxu0 0.0
    %3128 = vmatpush1.msra.mxu0 0.0
    %3129 = vmatprep.subr.mxu0 0.0
    %3130 = vmatpush1.msra.mxu0 0.0
    %3131 = vmatprep.subr.mxu0 0.0
    %3132 = vmatpush1.msra.mxu0 0.0
    %3133 = vmatprep.subr.mxu0 0.0
    %3134 = vmatpush1.msra.mxu0 0.0
    %3135 = vmatprep.subr.mxu0 0.0
    %3136 = vmatpush1.msra.mxu0 0.0
    %3137 = vmatprep.subr.mxu0 0.0
    %3138 = vmatpush1.msra.mxu0 0.0
    %3139 = vmatprep.mubr.f32.mxu0 0.0
    %3140 = vmatmul.mubr.f32.gmra.mrb[0].mxu0 %v3070
    %v3141 = vpop.f32.mrb[0].mxu0
    %v3142 = vadd.f32 0.0, %v3141
    %v3143 = vpop.f32.mrb[0].mxu0
    %3144 = vmatprep.mubr.f32.mxu0 0.0
    %3145 = vmatmul.mubr.f32.gmra.mrb[0].mxu0 %v3073
    %v3146 = vpop.f32.mrb[0].mxu0
    %v3147 = vadd.f32 0.0, %v3146
    %v3148 = vpop.f32.mrb[0].mxu0
    %3149 = vdwg.mxu0
    %3150 = vrot.lane.b32.xlu0 %v2530, 112
    %v3151 = vpop.permute.xlu0 %3150
    %3152 = vrot.lane.b32.xlu0 %v2535, 112
    %v3153 = vpop.permute.xlu0 %3152
    %3154 = vrot.lane.b32.xlu0 %v2530, 80
    %v3155 = vpop.permute.xlu0 %3154
    %3156 = vrot.lane.b32.xlu0 %v2535, 80
    %v3157 = vpop.permute.xlu0 %3156
    %v3158 = vsel %vm845, %v3151, 0
    %v3160 = vsel %vm845, %v3153, 0
    %v3162 = vsel %vm845, %v3155, 0
    %v3164 = vsel %vm845, %v3157, 0
    %3166 = vmatprep.subr.mxu0 0.0
    %3167 = vmatpush1.xpose.msra.mxu0 %v3162
    %3168 = vmatprep.subr.mxu0 0.0
    %3169 = vmatpush1.xpose.msra.mxu0 %v3164
    %3170 = vmatprep.subr.mxu0 0.0
    %3171 = vmatpush1.xpose.msra.mxu0 0.0
    %3172 = vmatprep.subr.mxu0 0.0
    %3173 = vmatpush1.xpose.msra.mxu0 0.0
    %3174 = vmatprep.subr.mxu0 0.0
    %3175 = vmatpush1.xpose.msra.mxu0 0.0
    %3176 = vmatprep.subr.mxu0 0.0
    %3177 = vmatpush1.xpose.msra.mxu0 0.0
    %3178 = vmatprep.subr.mxu0 0.0
    %3179 = vmatpush1.xpose.msra.mxu0 0.0
    %3180 = vmatprep.subr.mxu0 0.0
    %3181 = vmatpush1.xpose.msra.mxu0 0.0
    %3182 = vmatprep.subr.mxu0 0.0
    %3183 = vmatpush1.xpose.msra.mxu0 0.0
    %3184 = vmatprep.subr.mxu0 0.0
    %3185 = vmatpush1.xpose.msra.mxu0 0.0
    %3186 = vmatprep.subr.mxu0 0.0
    %3187 = vmatpush1.xpose.msra.mxu0 0.0
    %3188 = vmatprep.subr.mxu0 0.0
    %3189 = vmatpush1.xpose.msra.mxu0 0.0
    %3190 = vmatprep.subr.mxu0 0.0
    %3191 = vmatpush1.xpose.msra.mxu0 0.0
    %3192 = vmatprep.subr.mxu0 0.0
    %3193 = vmatpush1.xpose.msra.mxu0 0.0
    %3194 = vmatprep.subr.mxu0 0.0
    %3195 = vmatpush1.xpose.msra.mxu0 0.0
    %3196 = vmatprep.subr.mxu0 0.0
    %3197 = vmatpush1.xpose.msra.mxu0 0.0
    %3198 = vmatprep.subr.mxu0 0.0
    %3199 = vmatpush1.xpose.msra.mxu0 0.0
    %3200 = vmatprep.subr.mxu0 0.0
    %3201 = vmatpush1.xpose.msra.mxu0 0.0
    %3202 = vmatprep.subr.mxu0 0.0
    %3203 = vmatpush1.xpose.msra.mxu0 0.0
    %3204 = vmatprep.subr.mxu0 0.0
    %3205 = vmatpush1.xpose.msra.mxu0 0.0
    %3206 = vmatprep.subr.mxu0 0.0
    %3207 = vmatpush1.xpose.msra.mxu0 0.0
    %3208 = vmatprep.subr.mxu0 0.0
    %3209 = vmatpush1.xpose.msra.mxu0 0.0
    %3210 = vmatprep.subr.mxu0 0.0
    %3211 = vmatpush1.xpose.msra.mxu0 0.0
    %3212 = vmatprep.subr.mxu0 0.0
    %3213 = vmatpush1.xpose.msra.mxu0 0.0
    %3214 = vmatprep.subr.mxu0 0.0
    %3215 = vmatpush1.xpose.msra.mxu0 0.0
    %3216 = vmatprep.subr.mxu0 0.0
    %3217 = vmatpush1.xpose.msra.mxu0 0.0
    %3218 = vmatprep.subr.mxu0 0.0
    %3219 = vmatpush1.xpose.msra.mxu0 0.0
    %3220 = vmatprep.subr.mxu0 0.0
    %3221 = vmatpush1.xpose.msra.mxu0 0.0
    %3222 = vmatprep.subr.mxu0 0.0
    %3223 = vmatpush1.xpose.msra.mxu0 0.0
    %3224 = vmatprep.subr.mxu0 0.0
    %3225 = vmatpush1.xpose.msra.mxu0 0.0
    %3226 = vmatprep.subr.mxu0 0.0
    %3227 = vmatpush1.xpose.msra.mxu0 0.0
    %3228 = vmatprep.subr.mxu0 0.0
    %3229 = vmatpush1.xpose.msra.mxu0 0.0
    %3230 = vmatprep.mubr.f32.mxu0 0.0
    %3231 = vmatmul.mubr.f32.gmra.mrb[0].mxu0 %v3158
    %v3232 = vpop.f32.mrb[0].mxu0
    %v3233 = vadd.f32 0.0, %v3232
    %v3234 = vpop.f32.mrb[0].mxu0
    %3235 = vmatprep.mubr.f32.mxu0 0.0
    %3236 = vmatmul.mubr.f32.gmra.mrb[0].mxu0 %v3160
    %v3237 = vpop.f32.mrb[0].mxu0
    %v3238 = vadd.f32 0.0, %v3237
    %v3239 = vpop.f32.mrb[0].mxu0
    %3240 = vdwg.mxu0
    %v3241 = vmul.f32 %v3233, 0.25
    %v3242 = vmul.f32 %v3238, 0.25
    %v3243 = vsel %vm845, %v3241, -inf
    %3244 = vmax.xlane.f32.xlu0 %v3243
    %v3245 = vpop.xlane.xlu0 %3244
    %v3246 = vsel %vm845, %v3242, -inf
    %3247 = vmax.xlane.f32.xlu0 %v3246
    %v3248 = vpop.xlane.xlu0 %3247
    %v3249 = vsub.f32 %v3241, %v3245
    %v3250 = vsub.f32 %v3242, %v3248
    %v3251 = vmul.f32 %v3249, 1.442695
    %v3252 = vpow.pop %v3251
    %v3253 = vmul.f32 %v3250, 1.442695
    %v3254 = vpow.pop %v3253
    %v3255 = vsel %vm845, %v3252, 0.0
    %3256 = vadd.xlane.f32.xlu0 %v3255
    %v3257 = vpop.xlane.xlu0 %3256
    %v3258 = vsel %vm845, %v3254, 0.0
    %3259 = vadd.xlane.f32.xlu0 %v3258
    %v3260 = vpop.xlane.xlu0 %3259
    %v3261 = vrcp.pop %v3257
    %v3262 = vrcp.pop %v3260
    %v3263 = vmul.f32 %v3252, %v3261
    %v3264 = vmul.f32 %v3254, %v3262
    %3265 = vrot.lane.b32.xlu0 %v2530, 48
    %v3266 = vpop.permute.xlu0 %3265
    %3267 = vrot.lane.b32.xlu0 %v2535, 48
    %v3268 = vpop.permute.xlu0 %3267
    %v3272 = vsel %vm845, %v3263, 0
    %v3275 = vsel %vm845, %v3264, 0
    %3277 = vmatprep.subr.mxu0 0.0
    %3278 = vmatpush1.msra.mxu0 %v3266
    %3279 = vmatprep.subr.mxu0 0.0
    %3280 = vmatpush1.msra.mxu0 %v3268
    %3281 = vmatprep.subr.mxu0 0.0
    %3282 = vmatpush1.msra.mxu0 0.0
    %3283 = vmatprep.subr.mxu0 0.0
    %3284 = vmatpush1.msra.mxu0 0.0
    %3285 = vmatprep.subr.mxu0 0.0
    %3286 = vmatpush1.msra.mxu0 0.0
    %3287 = vmatprep.subr.mxu0 0.0
    %3288 = vmatpush1.msra.mxu0 0.0
    %3289 = vmatprep.subr.mxu0 0.0
    %3290 = vmatpush1.msra.mxu0 0.0
    %3291 = vmatprep.subr.mxu0 0.0
    %3292 = vmatpush1.msra.mxu0 0.0
    %3293 = vmatprep.subr.mxu0 0.0
    %3294 = vmatpush1.msra.mxu0 0.0
    %3295 = vmatprep.subr.mxu0 0.0
    %3296 = vmatpush1.msra.mxu0 0.0
    %3297 = vmatprep.subr.mxu0 0.0
    %3298 = vmatpush1.msra.mxu0 0.0
    %3299 = vmatprep.subr.mxu0 0.0
    %3300 = vmatpush1.msra.mxu0 0.0
    %3301 = vmatprep.subr.mxu0 0.0
    %3302 = vmatpush1.msra.mxu0 0.0
    %3303 = vmatprep.subr.mxu0 0.0
    %3304 = vmatpush1.msra.mxu0 0.0
    %3305 = vmatprep.subr.mxu0 0.0
    %3306 = vmatpush1.msra.mxu0 0.0
    %3307 = vmatprep.subr.mxu0 0.0
    %3308 = vmatpush1.msra.mxu0 0.0
    %3309 = vmatprep.subr.mxu0 0.0
    %3310 = vmatpush1.msra.mxu0 0.0
    %3311 = vmatprep.subr.mxu0 0.0
    %3312 = vmatpush1.msra.mxu0 0.0
    %3313 = vmatprep.subr.mxu0 0.0
    %3314 = vmatpush1.msra.mxu0 0.0
    %3315 = vmatprep.subr.mxu0 0.0
    %3316 = vmatpush1.msra.mxu0 0.0
    %3317 = vmatprep.subr.mxu0 0.0
    %3318 = vmatpush1.msra.mxu0 0.0
    %3319 = vmatprep.subr.mxu0 0.0
    %3320 = vmatpush1.msra.mxu0 0.0
    %3321 = vmatprep.subr.mxu0 0.0
    %3322 = vmatpush1.msra.mxu0 0.0
    %3323 = vmatprep.subr.mxu0 0.0
    %3324 = vmatpush1.msra.mxu0 0.0
    %3325 = vmatprep.subr.mxu0 0.0
    %3326 = vmatpush1.msra.mxu0 0.0
    %3327 = vmatprep.subr.mxu0 0.0
    %3328 = vmatpush1.msra.mxu0 0.0
    %3329 = vmatprep.subr.mxu0 0.0
    %3330 = vmatpush1.msra.mxu0 0.0
    %3331 = vmatprep.subr.mxu0 0.0
    %3332 = vmatpush1.msra.mxu0 0.0
    %3333 = vmatprep.subr.mxu0 0.0
    %3334 = vmatpush1.msra.mxu0 0.0
    %3335 = vmatprep.subr.mxu0 0.0
    %3336 = vmatpush1.msra.mxu0 0.0
    %3337 = vmatprep.subr.mxu0 0.0
    %3338 = vmatpush1.msra.mxu0 0.0
    %3339 = vmatprep.subr.mxu0 0.0
    %3340 = vmatpush1.msra.mxu0 0.0
    %3341 = vmatprep.mubr.f32.mxu0 0.0
    %3342 = vmatmul.mubr.f32.gmra.mrb[0].mxu0 %v3272
    %v3343 = vpop.f32.mrb[0].mxu0
    %v3344 = vadd.f32 0.0, %v3343
    %v3345 = vpop.f32.mrb[0].mxu0
    %3346 = vmatprep.mubr.f32.mxu0 0.0
    %3347 = vmatmul.mubr.f32.gmra.mrb[0].mxu0 %v3275
    %v3348 = vpop.f32.mrb[0].mxu0
    %v3349 = vadd.f32 0.0, %v3348
    %v3350 = vpop.f32.mrb[0].mxu0
    %3351 = vdwg.mxu0
    %3354 = vrot.lane.b32.xlu0 %v3344, 16
    %v3355 = vpop.permute.xlu0 %3354
    %3356 = vrot.lane.b32.xlu0 %v3349, 16
    %v3357 = vpop.permute.xlu0 %3356
    %v3360 = vsel %vm845, %v3142, %v3355
    %v3361 = vsel %vm845, %v3147, %v3357
    %v3362 = vld [vmem:[#allocation21] sm:$0xff]
    %v3363 = vld [vmem:[#allocation21 + $0x8] sm:$0xff]
    %v3364 = vld [vmem:[#allocation21 + $0x10] sm:$0xff]
    %v3365 = vld [vmem:[#allocation21 + $0x18] sm:$0xff]
    %v3366 = vld [vmem:[#allocation23] sm:$0x1]
    %v3368 = vlaneseq
    %v3369 = vshrl.u32 %v3368, 7
    %v3370 = vsub.s32 0, %v3369
    %v3371 = vrot.slane %v3366, %v3370
    %v3374 = vsel %vm366, %v2948, 0
    %v3377 = vsel %vm366, %v2949, 0
    %v3380 = vsel %vm366, %v3360, 0
    %v3383 = vsel %vm366, %v3361, 0
    %3385 = vmatprep.subr.mxu0 0.0
    %3386 = vmatpush1.msra.mxu0 %v3362
    %3387 = vmatprep.subr.mxu0 0.0
    %3388 = vmatpush1.msra.mxu0 %v3363
    %3389 = vmatprep.subr.mxu0 0.0
    %3390 = vmatpush1.msra.mxu0 %v3364
    %3391 = vmatprep.subr.mxu0 0.0
    %3392 = vmatpush1.msra.mxu0 %v3365
    %3393 = vmatprep.subr.mxu0 0.0
    %3394 = vmatpush1.msra.mxu0 0.0
    %3395 = vmatprep.subr.mxu0 0.0
    %3396 = vmatpush1.msra.mxu0 0.0
    %3397 = vmatprep.subr.mxu0 0.0
    %3398 = vmatpush1.msra.mxu0 0.0
    %3399 = vmatprep.subr.mxu0 0.0
    %3400 = vmatpush1.msra.mxu0 0.0
    %3401 = vmatprep.subr.mxu0 0.0
    %3402 = vmatpush1.msra.mxu0 0.0
    %3403 = vmatprep.subr.mxu0 0.0
    %3404 = vmatpush1.msra.mxu0 0.0
    %3405 = vmatprep.subr.mxu0 0.0
    %3406 = vmatpush1.msra.mxu0 0.0
    %3407 = vmatprep.subr.mxu0 0.0
    %3408 = vmatpush1.msra.mxu0 0.0
    %3409 = vmatprep.subr.mxu0 0.0
    %3410 = vmatpush1.msra.mxu0 0.0
    %3411 = vmatprep.subr.mxu0 0.0
    %3412 = vmatpush1.msra.mxu0 0.0
    %3413 = vmatprep.subr.mxu0 0.0
    %3414 = vmatpush1.msra.mxu0 0.0
    %3415 = vmatprep.subr.mxu0 0.0
    %3416 = vmatpush1.msra.mxu0 0.0
    %3417 = vmatprep.subr.mxu0 0.0
    %3418 = vmatpush1.msra.mxu0 0.0
    %3419 = vmatprep.subr.mxu0 0.0
    %3420 = vmatpush1.msra.mxu0 0.0
    %3421 = vmatprep.subr.mxu0 0.0
    %3422 = vmatpush1.msra.mxu0 0.0
    %3423 = vmatprep.subr.mxu0 0.0
    %3424 = vmatpush1.msra.mxu0 0.0
    %3425 = vmatprep.subr.mxu0 0.0
    %3426 = vmatpush1.msra.mxu0 0.0
    %3427 = vmatprep.subr.mxu0 0.0
    %3428 = vmatpush1.msra.mxu0 0.0
    %3429 = vmatprep.subr.mxu0 0.0
    %3430 = vmatpush1.msra.mxu0 0.0
    %3431 = vmatprep.subr.mxu0 0.0
    %3432 = vmatpush1.msra.mxu0 0.0
    %3433 = vmatprep.subr.mxu0 0.0
    %3434 = vmatpush1.msra.mxu0 0.0
    %3435 = vmatprep.subr.mxu0 0.0
    %3436 = vmatpush1.msra.mxu0 0.0
    %3437 = vmatprep.subr.mxu0 0.0
    %3438 = vmatpush1.msra.mxu0 0.0
    %3439 = vmatprep.subr.mxu0 0.0
    %3440 = vmatpush1.msra.mxu0 0.0
    %3441 = vmatprep.subr.mxu0 0.0
    %3442 = vmatpush1.msra.mxu0 0.0
    %3443 = vmatprep.subr.mxu0 0.0
    %3444 = vmatpush1.msra.mxu0 0.0
    %3445 = vmatprep.subr.mxu0 0.0
    %3446 = vmatpush1.msra.mxu0 0.0
    %3447 = vmatprep.subr.mxu0 0.0
    %3448 = vmatpush1.msra.mxu0 0.0
    %3449 = vmatprep.mubr.f32.mxu0 0.0
    %3450 = vmatmul.mubr.f32.gmra.mrb[0].mxu0 %v3374
    %v3451 = vpop.f32.mrb[0].mxu0
    %v3452 = vadd.f32 %v3371, %v3451
    %v3453 = vpop.f32.mrb[0].mxu0
    %3454 = vmatprep.mubr.f32.mxu0 0.0
    %3455 = vmatmul.mubr.f32.gmra.mrb[0].mxu0 %v3377
    %v3456 = vpop.f32.mrb[0].mxu0
    %v3457 = vadd.f32 %v3371, %v3456
    %v3458 = vpop.f32.mrb[0].mxu0
    %3459 = vmatprep.mubr.f32.mxu0 0.0
    %3460 = vmatmul.mubr.f32.gmra.mrb[0].mxu0 %v3380
    %v3461 = vpop.f32.mrb[0].mxu0
    %v3462 = vadd.f32 %v3371, %v3461
    %v3463 = vpop.f32.mrb[0].mxu0
    %3464 = vmatprep.mubr.f32.mxu0 0.0
    %3465 = vmatmul.mubr.f32.gmra.mrb[0].mxu0 %v3383
    %v3466 = vpop.f32.mrb[0].mxu0
    %v3467 = vadd.f32 %v3371, %v3466
    %v3468 = vpop.f32.mrb[0].mxu0
    %3469 = vdwg.mxu0
    %v3470 = vadd.f32 %v3452, %v2426
    %v3471 = vadd.f32 %v3457, %v2427
    %v3472 = vadd.f32 %v3462, %v2428
    %v3473 = vadd.f32 %v3467, %v2429
    %v3474 = vld [vmem:[#allocation24] sm:$0x1]
    %v3475 = vld [vmem:[#allocation26] sm:$0x1]
    %v3476 = vsel %vm366, %v3470, 0.0
    %3477 = vadd.xlane.f32.xlu0 %v3476
    %v3478 = vpop.xlane.xlu0 %3477
    %v3479 = vsel %vm366, %v3471, 0.0
    %3480 = vadd.xlane.f32.xlu0 %v3479
    %v3481 = vpop.xlane.xlu0 %3480
    %v3482 = vsel %vm366, %v3472, 0.0
    %3483 = vadd.xlane.f32.xlu0 %v3482
    %v3484 = vpop.xlane.xlu0 %3483
    %v3485 = vsel %vm366, %v3473, 0.0
    %3486 = vadd.xlane.f32.xlu0 %v3485
    %v3487 = vpop.xlane.xlu0 %3486
    %v3488 = vmul.f32 %v3478, %v1790
    %v3489 = vmul.f32 %v3481, %v1790
    %v3490 = vmul.f32 %v3484, %v1790
    %v3491 = vmul.f32 %v3487, %v1790
    %v3492 = vsub.f32 %v3470, %v3488
    %v3493 = vsub.f32 %v3471, %v3489
    %v3494 = vsub.f32 %v3472, %v3490
    %v3495 = vsub.f32 %v3473, %v3491
    %v3496 = vmul.f32 %v3492, %v3492
    %v3497 = vmul.f32 %v3493, %v3493
    %v3498 = vmul.f32 %v3494, %v3494
    %v3499 = vmul.f32 %v3495, %v3495
    %v3500 = vsel %vm366, %v3496, 0.0
    %3501 = vadd.xlane.f32.xlu0 %v3500
    %v3502 = vpop.xlane.xlu0 %3501
    %v3503 = vsel %vm366, %v3497, 0.0
    %3504 = vadd.xlane.f32.xlu0 %v3503
    %v3505 = vpop.xlane.xlu0 %3504
    %v3506 = vsel %vm366, %v3498, 0.0
    %3507 = vadd.xlane.f32.xlu0 %v3506
    %v3508 = vpop.xlane.xlu0 %3507
    %v3509 = vsel %vm366, %v3499, 0.0
    %3510 = vadd.xlane.f32.xlu0 %v3509
    %v3511 = vpop.xlane.xlu0 %3510
    %v3512 = vmul.f32 %v3502, %v1790
    %v3513 = vmul.f32 %v3505, %v1790
    %v3514 = vmul.f32 %v3508, %v1790
    %v3515 = vmul.f32 %v3511, %v1790
    %v3516 = vadd.f32 %v3512, 1e-05
    %v3517 = vadd.f32 %v3513, 1e-05
    %v3518 = vadd.f32 %v3514, 1e-05
    %v3519 = vadd.f32 %v3515, 1e-05
    %v3520 = vrsqrt.pop %v3516
    %v3521 = vrsqrt.pop %v3517
    %v3522 = vrsqrt.pop %v3518
    %v3523 = vrsqrt.pop %v3519
    %v3524 = vmul.f32 %v3492, %v3520
    %v3525 = vmul.f32 %v3493, %v3521
    %v3526 = vmul.f32 %v3494, %v3522
    %v3527 = vmul.f32 %v3495, %v3523
    %v3529 = vlaneseq
    %v3530 = vshrl.u32 %v3529, 7
    %v3531 = vsub.s32 0, %v3530
    %v3532 = vrot.slane %v3474, %v3531
    %v3534 = vmul.f32 %v3524, %v3532
    %v3535 = vmul.f32 %v3525, %v3532
    %v3536 = vmul.f32 %v3526, %v3532
    %v3537 = vmul.f32 %v3527, %v3532
    %v3539 = vlaneseq
    %v3540 = vshrl.u32 %v3539, 7
    %v3541 = vsub.s32 0, %v3540
    %v3542 = vrot.slane %v3475, %v3541
    %v3544 = vadd.f32 %v3534, %v3542
    %v3545 = vadd.f32 %v3535, %v3542
    %v3546 = vadd.f32 %v3536, %v3542
    %v3547 = vadd.f32 %v3537, %v3542
    %3548 = vst.msk [vmem:[#allocation2 + $0x8] sm:$0xff] %vm366, %v3544
    %3549 = vst.msk [vmem:[#allocation2 + $0x10] sm:$0xff] %vm366, %v3545
    %3550 = vst.msk [vmem:[#allocation2 + $0x28] sm:$0xff] %vm366, %v3546
    %3551 = vst.msk [vmem:[#allocation2 + $0x30] sm:$0xff] %vm366, %v3547
    %v3552 = vld [vmem:[#allocation2 + $0x4] sm:$0xff]
    %v3553 = vld [vmem:[#allocation2 + $0xc] sm:$0xff]
    %v3554 = vld [vmem:[#allocation2 + $0x5] sm:$0xff]
    %v3555 = vld [vmem:[#allocation2 + $0xd] sm:$0xff]
    %v3556 = vld [vmem:[#allocation2 + $0x6] sm:$0xff]
    %v3557 = vld [vmem:[#allocation2 + $0xe] sm:$0xff]
    %v3558 = vld [vmem:[#allocation2 + $0x7] sm:$0xff]
    %v3559 = vld [vmem:[#allocation2 + $0xf] sm:$0xff]
    %v3560 = vld [vmem:[#allocation2 + $0x8] sm:$0xff]
    %v3561 = vld [vmem:[#allocation2 + $0x10] sm:$0xff]
    %v3562 = vld [vmem:[#allocation2 + $0x9] sm:$0xff]
    %v3563 = vld [vmem:[#allocation2 + $0x11] sm:$0xff]
    %v3564 = vld [vmem:[#allocation2 + $0xa] sm:$0xff]
    %v3565 = vld [vmem:[#allocation2 + $0x12] sm:$0xff]
    %v3566 = vld [vmem:[#allocation2 + $0xb] sm:$0xff]
    %v3567 = vld [vmem:[#allocation2 + $0x13] sm:$0xff]
    %v3568 = vld [vmem:[#allocation2 + $0x14] sm:$0xff]
    %3571 = vrot.lane.b32.xlu0 %v3554, 32
    %v3572 = vpop.permute.xlu0 %3571
    %3573 = vrot.lane.b32.xlu0 %v3555, 32
    %v3574 = vpop.permute.xlu0 %3573
    %3579 = vrot.lane.b32.xlu0 %v3556, 64
    %v3580 = vpop.permute.xlu0 %3579
    %3581 = vrot.lane.b32.xlu0 %v3557, 64
    %v3582 = vpop.permute.xlu0 %3581
    %3587 = vrot.lane.b32.xlu0 %v3558, 96
    %v3588 = vpop.permute.xlu0 %3587
    %3589 = vrot.lane.b32.xlu0 %v3559, 96
    %v3590 = vpop.permute.xlu0 %3589
    %3595 = vrot.lane.b32.xlu0 %v3562, 32
    %v3596 = vpop.permute.xlu0 %3595
    %3597 = vrot.lane.b32.xlu0 %v3563, 32
    %v3598 = vpop.permute.xlu0 %3597
    %3603 = vrot.lane.b32.xlu0 %v3564, 64
    %v3604 = vpop.permute.xlu0 %3603
    %3605 = vrot.lane.b32.xlu0 %v3565, 64
    %v3606 = vpop.permute.xlu0 %3605
    %3611 = vrot.lane.b32.xlu0 %v3566, 96
    %v3612 = vpop.permute.xlu0 %3611
    %3613 = vrot.lane.b32.xlu0 %v3567, 96
    %v3614 = vpop.permute.xlu0 %3613
    %v3617 = vsel %vm366, %v3552, %v3572
    %v3618 = vsel %vm366, %v3553, %v3574
    %v3619 = vsel %vm1922, %v3617, %v3580
    %v3620 = vsel %vm1922, %v3618, %v3582
    %v3621 = vsel %vm1925, %v3619, %v3588
    %v3622 = vsel %vm1925, %v3620, %v3590
    %v3623 = vsel %vm366, %v3560, %v3596
    %v3624 = vsel %vm366, %v3561, %v3598
    %v3625 = vsel %vm1922, %v3623, %v3604
    %v3626 = vsel %vm1922, %v3624, %v3606
    %v3627 = vsel %vm1925, %v3625, %v3612
    %v3628 = vsel %vm1925, %v3626, %v3614
    %v3629 = vld [vmem:[#allocation2 + $0x24] sm:$0xff]
    %v3630 = vld [vmem:[#allocation2 + $0x2c] sm:$0xff]
    %v3631 = vld [vmem:[#allocation2 + $0x25] sm:$0xff]
    %v3632 = vld [vmem:[#allocation2 + $0x2d] sm:$0xff]
    %v3633 = vld [vmem:[#allocation2 + $0x26] sm:$0xff]
    %v3634 = vld [vmem:[#allocation2 + $0x2e] sm:$0xff]
    %v3635 = vld [vmem:[#allocation2 + $0x27] sm:$0xff]
    %v3636 = vld [vmem:[#allocation2 + $0x2f] sm:$0xff]
    %v3637 = vld [vmem:[#allocation2 + $0x28] sm:$0xff]
    %v3638 = vld [vmem:[#allocation2 + $0x30] sm:$0xff]
    %v3639 = vld [vmem:[#allocation2 + $0x29] sm:$0xff]
    %v3640 = vld [vmem:[#allocation2 + $0x31] sm:$0xff]
    %v3641 = vld [vmem:[#allocation2 + $0x2a] sm:$0xff]
    %v3642 = vld [vmem:[#allocation2 + $0x32] sm:$0xff]
    %v3643 = vld [vmem:[#allocation2 + $0x2b] sm:$0xff]
    %v3644 = vld [vmem:[#allocation2 + $0x33] sm:$0xff]
    %v3645 = vld [vmem:[#allocation2 + $0x34] sm:$0xff]
    %3648 = vrot.lane.b32.xlu0 %v3631, 32
    %v3649 = vpop.permute.xlu0 %3648
    %3650 = vrot.lane.b32.xlu0 %v3632, 32
    %v3651 = vpop.permute.xlu0 %3650
    %3656 = vrot.lane.b32.xlu0 %v3633, 64
    %v3657 = vpop.permute.xlu0 %3656
    %3658 = vrot.lane.b32.xlu0 %v3634, 64
    %v3659 = vpop.permute.xlu0 %3658
    %3664 = vrot.lane.b32.xlu0 %v3635, 96
    %v3665 = vpop.permute.xlu0 %3664
    %3666 = vrot.lane.b32.xlu0 %v3636, 96
    %v3667 = vpop.permute.xlu0 %3666
    %3672 = vrot.lane.b32.xlu0 %v3639, 32
    %v3673 = vpop.permute.xlu0 %3672
    %3674 = vrot.lane.b32.xlu0 %v3640, 32
    %v3675 = vpop.permute.xlu0 %3674
    %3680 = vrot.lane.b32.xlu0 %v3641, 64
    %v3681 = vpop.permute.xlu0 %3680
    %3682 = vrot.lane.b32.xlu0 %v3642, 64
    %v3683 = vpop.permute.xlu0 %3682
    %3688 = vrot.lane.b32.xlu0 %v3643, 96
    %v3689 = vpop.permute.xlu0 %3688
    %3690 = vrot.lane.b32.xlu0 %v3644, 96
    %v3691 = vpop.permute.xlu0 %3690
    %v3694 = vsel %vm366, %v3629, %v3649
    %v3695 = vsel %vm366, %v3630, %v3651
    %v3696 = vsel %vm1922, %v3694, %v3657
    %v3697 = vsel %vm1922, %v3695, %v3659
    %v3698 = vsel %vm1925, %v3696, %v3665
    %v3699 = vsel %vm1925, %v3697, %v3667
    %v3700 = vsel %vm366, %v3637, %v3673
    %v3701 = vsel %vm366, %v3638, %v3675
    %v3702 = vsel %vm1922, %v3700, %v3681
    %v3703 = vsel %vm1922, %v3701, %v3683
    %v3704 = vsel %vm1925, %v3702, %v3689
    %v3705 = vsel %vm1925, %v3703, %v3691
    %v3706 = vld [vmem:[%s53] sm:$0xff]
    %v3707 = vld [vmem:[%s53 + $0x8] sm:$0xff]
    %v3708 = vld [vmem:[%s53 + $0x10] sm:$0xff]
    %v3709 = vld [vmem:[%s53 + $0x18] sm:$0xff]
    %v3710 = vld [vmem:[%s53 + $0x20] sm:$0xff]
    %v3711 = vld [vmem:[%s53 + $0x28] sm:$0xff]
    %v3712 = vld [vmem:[%s53 + $0x30] sm:$0xff]
    %v3713 = vld [vmem:[%s53 + $0x38] sm:$0xff]
    %v3714 = vld [vmem:[%s53 + $0x40] sm:$0xff]
    %v3715 = vld [vmem:[%s53 + $0x48] sm:$0xff]
    %v3716 = vld [vmem:[%s53 + $0x50] sm:$0xff]
    %v3717 = vld [vmem:[%s53 + $0x58] sm:$0xff]
    %v3718 = vld [vmem:[%s53 + $0x60] sm:$0xff]
    %v3719 = vld [vmem:[%s53 + $0x68] sm:$0xff]
    %v3720 = vld [vmem:[%s53 + $0x70] sm:$0xff]
    %v3721 = vld [vmem:[%s53 + $0x78] sm:$0xff]
    %v3722 = vld [vmem:[%s53 + $0x80] sm:$0xff]
    %v3723 = vld [vmem:[%s53 + $0x88] sm:$0xff]
    %v3724 = vld [vmem:[%s53 + $0x90] sm:$0xff]
    %v3725 = vld [vmem:[%s53 + $0x98] sm:$0xff]
    %v3726 = vld [vmem:[%s53 + $0xa0] sm:$0xff]
    %v3727 = vld [vmem:[%s53 + $0xa8] sm:$0xff]
    %v3728 = vld [vmem:[%s53 + $0xb0] sm:$0xff]
    %v3729 = vld [vmem:[%s53 + $0xb8] sm:$0xff]
    %v3730 = vld [vmem:[%s53 + $0xc0] sm:$0xff]
    %v3731 = vld [vmem:[%s53 + $0xc8] sm:$0xff]
    %v3732 = vld [vmem:[%s53 + $0xd0] sm:$0xff]
    %v3733 = vld [vmem:[%s53 + $0xd8] sm:$0xff]
    %v3734 = vld [vmem:[%s53 + $0xe0] sm:$0xff]
    %v3735 = vld [vmem:[%s53 + $0xe8] sm:$0xff]
    %v3736 = vld [vmem:[%s53 + $0xf0] sm:$0xff]
    %v3737 = vld [vmem:[%s53 + $0xf8] sm:$0xff]
    %v3738 = vld [vmem:[%s53 + $0x100] sm:$0xff]
    %v3739 = vld [vmem:[%s53 + $0x108] sm:$0xff]
    %v3740 = vld [vmem:[%s53 + $0x110] sm:$0xff]
    %v3741 = vld [vmem:[%s53 + $0x118] sm:$0xff]
    %v3742 = vld [vmem:[#allocation27] sm:$0x1]
    %v3744 = vlaneseq
    %v3745 = vshrl.u32 %v3744, 7
    %v3746 = vsub.s32 0, %v3745
    %v3747 = vrot.slane %v3742, %v3746
    %v3750 = vsel %vm366, %v3553, 0
    %v3753 = vsel %vm366, %v3568, 0
    %v3756 = vsel %vm366, %v3630, 0
    %v3759 = vsel %vm366, %v3645, 0
    %3761 = vmatprep.subr.mxu0 0.0
    %3762 = vmatpush1.msra.mxu0 %v3706
    %3763 = vmatprep.subr.mxu0 0.0
    %3764 = vmatpush1.msra.mxu0 %v3707
    %3765 = vmatprep.subr.mxu0 0.0
    %3766 = vmatpush1.msra.mxu0 %v3708
    %3767 = vmatprep.subr.mxu0 0.0
    %3768 = vmatpush1.msra.mxu0 %v3709
    %3769 = vmatprep.subr.mxu0 0.0
    %3770 = vmatpush1.msra.mxu0 %v3710
    %3771 = vmatprep.subr.mxu0 0.0
    %3772 = vmatpush1.msra.mxu0 %v3711
    %3773 = vmatprep.subr.mxu0 0.0
    %3774 = vmatpush1.msra.mxu0 %v3712
    %3775 = vmatprep.subr.mxu0 0.0
    %3776 = vmatpush1.msra.mxu0 %v3713
    %3777 = vmatprep.subr.mxu0 0.0
    %3778 = vmatpush1.msra.mxu0 %v3714
    %3779 = vmatprep.subr.mxu0 0.0
    %3780 = vmatpush1.msra.mxu0 %v3715
    %3781 = vmatprep.subr.mxu0 0.0
    %3782 = vmatpush1.msra.mxu0 %v3716
    %3783 = vmatprep.subr.mxu0 0.0
    %3784 = vmatpush1.msra.mxu0 %v3717
    %3785 = vmatprep.subr.mxu0 0.0
    %3786 = vmatpush1.msra.mxu0 %v3718
    %3787 = vmatprep.subr.mxu0 0.0
    %3788 = vmatpush1.msra.mxu0 %v3719
    %3789 = vmatprep.subr.mxu0 0.0
    %3790 = vmatpush1.msra.mxu0 %v3720
    %3791 = vmatprep.subr.mxu0 0.0
    %3792 = vmatpush1.msra.mxu0 %v3721
    %3793 = vmatprep.subr.mxu0 0.0
    %3794 = vmatpush1.msra.mxu0 %v3722
    %3795 = vmatprep.subr.mxu0 0.0
    %3796 = vmatpush1.msra.mxu0 %v3723
    %3797 = vmatprep.subr.mxu0 0.0
    %3798 = vmatpush1.msra.mxu0 %v3724
    %3799 = vmatprep.subr.mxu0 0.0
    %3800 = vmatpush1.msra.mxu0 %v3725
    %3801 = vmatprep.subr.mxu0 0.0
    %3802 = vmatpush1.msra.mxu0 %v3726
    %3803 = vmatprep.subr.mxu0 0.0
    %3804 = vmatpush1.msra.mxu0 %v3727
    %3805 = vmatprep.subr.mxu0 0.0
    %3806 = vmatpush1.msra.mxu0 %v3728
    %3807 = vmatprep.subr.mxu0 0.0
    %3808 = vmatpush1.msra.mxu0 %v3729
    %3809 = vmatprep.subr.mxu0 0.0
    %3810 = vmatpush1.msra.mxu0 %v3730
    %3811 = vmatprep.subr.mxu0 0.0
    %3812 = vmatpush1.msra.mxu0 %v3731
    %3813 = vmatprep.subr.mxu0 0.0
    %3814 = vmatpush1.msra.mxu0 %v3732
    %3815 = vmatprep.subr.mxu0 0.0
    %3816 = vmatpush1.msra.mxu0 %v3733
    %3817 = vmatprep.subr.mxu0 0.0
    %3818 = vmatpush1.msra.mxu0 %v3734
    %3819 = vmatprep.subr.mxu0 0.0
    %3820 = vmatpush1.msra.mxu0 %v3735
    %3821 = vmatprep.subr.mxu0 0.0
    %3822 = vmatpush1.msra.mxu0 %v3736
    %3823 = vmatprep.subr.mxu0 0.0
    %3824 = vmatpush1.msra.mxu0 %v3737
    %3825 = vmatprep.mubr.f32.mxu0 %v3627
    %3826 = vmatmul.mubr.f32.gmra.mrb[0].mxu0 %v3621
    %v3827 = vpop.f32.mrb[0].mxu0
    %v3828 = vadd.f32 %v3747, %v3827
    %v3829 = vpop.f32.mrb[0].mxu0
    %3830 = vmatprep.mubr.f32.mxu0 %v3628
    %3831 = vmatmul.mubr.f32.gmra.mrb[0].mxu0 %v3622
    %v3832 = vpop.f32.mrb[0].mxu0
    %v3833 = vadd.f32 %v3747, %v3832
    %v3834 = vpop.f32.mrb[0].mxu0
    %3835 = vmatprep.mubr.f32.mxu0 %v3704
    %3836 = vmatmul.mubr.f32.gmra.mrb[0].mxu0 %v3698
    %v3837 = vpop.f32.mrb[0].mxu0
    %v3838 = vadd.f32 %v3747, %v3837
    %v3839 = vpop.f32.mrb[0].mxu0
    %3840 = vmatprep.mubr.f32.mxu0 %v3705
    %3841 = vmatmul.mubr.f32.gmra.mrb[0].mxu0 %v3699
    %v3842 = vpop.f32.mrb[0].mxu0
    %v3843 = vadd.f32 %v3747, %v3842
    %v3844 = vpop.f32.mrb[0].mxu0
    %3845 = vdwg.mxu0
    %3846 = vmatprep.subr.mxu0 0.0
    %3847 = vmatpush1.msra.mxu0 %v3738
    %3848 = vmatprep.subr.mxu0 0.0
    %3849 = vmatpush1.msra.mxu0 %v3739
    %3850 = vmatprep.subr.mxu0 0.0
    %3851 = vmatpush1.msra.mxu0 %v3740
    %3852 = vmatprep.subr.mxu0 0.0
    %3853 = vmatpush1.msra.mxu0 %v3741
    %3854 = vmatprep.subr.mxu0 0.0
    %3855 = vmatpush1.msra.mxu0 0.0
    %3856 = vmatprep.subr.mxu0 0.0
    %3857 = vmatpush1.msra.mxu0 0.0
    %3858 = vmatprep.subr.mxu0 0.0
    %3859 = vmatpush1.msra.mxu0 0.0
    %3860 = vmatprep.subr.mxu0 0.0
    %3861 = vmatpush1.msra.mxu0 0.0
    %3862 = vmatprep.subr.mxu0 0.0
    %3863 = vmatpush1.msra.mxu0 0.0
    %3864 = vmatprep.subr.mxu0 0.0
    %3865 = vmatpush1.msra.mxu0 0.0
    %3866 = vmatprep.subr.mxu0 0.0
    %3867 = vmatpush1.msra.mxu0 0.0
    %3868 = vmatprep.subr.mxu0 0.0
    %3869 = vmatpush1.msra.mxu0 0.0
    %3870 = vmatprep.subr.mxu0 0.0
    %3871 = vmatpush1.msra.mxu0 0.0
    %3872 = vmatprep.subr.mxu0 0.0
    %3873 = vmatpush1.msra.mxu0 0.0
    %3874 = vmatprep.subr.mxu0 0.0
    %3875 = vmatpush1.msra.mxu0 0.0
    %3876 = vmatprep.subr.mxu0 0.0
    %3877 = vmatpush1.msra.mxu0 0.0
    %3878 = vmatprep.subr.mxu0 0.0
    %3879 = vmatpush1.msra.mxu0 0.0
    %3880 = vmatprep.subr.mxu0 0.0
    %3881 = vmatpush1.msra.mxu0 0.0
    %3882 = vmatprep.subr.mxu0 0.0
    %3883 = vmatpush1.msra.mxu0 0.0
    %3884 = vmatprep.subr.mxu0 0.0
    %3885 = vmatpush1.msra.mxu0 0.0
    %3886 = vmatprep.subr.mxu0 0.0
    %3887 = vmatpush1.msra.mxu0 0.0
    %3888 = vmatprep.subr.mxu0 0.0
    %3889 = vmatpush1.msra.mxu0 0.0
    %3890 = vmatprep.subr.mxu0 0.0
    %3891 = vmatpush1.msra.mxu0 0.0
    %3892 = vmatprep.subr.mxu0 0.0
    %3893 = vmatpush1.msra.mxu0 0.0
    %3894 = vmatprep.subr.mxu0 0.0
    %3895 = vmatpush1.msra.mxu0 0.0
    %3896 = vmatprep.subr.mxu0 0.0
    %3897 = vmatpush1.msra.mxu0 0.0
    %3898 = vmatprep.subr.mxu0 0.0
    %3899 = vmatpush1.msra.mxu0 0.0
    %3900 = vmatprep.subr.mxu0 0.0
    %3901 = vmatpush1.msra.mxu0 0.0
    %3902 = vmatprep.subr.mxu0 0.0
    %3903 = vmatpush1.msra.mxu0 0.0
    %3904 = vmatprep.subr.mxu0 0.0
    %3905 = vmatpush1.msra.mxu0 0.0
    %3906 = vmatprep.subr.mxu0 0.0
    %3907 = vmatpush1.msra.mxu0 0.0
    %3908 = vmatprep.subr.mxu0 0.0
    %3909 = vmatpush1.msra.mxu0 0.0
    %3910 = vmatprep.mubr.f32.mxu0 0.0
    %3911 = vmatmul.mubr.f32.gmra.mrb[0].mxu0 %v3750
    %v3912 = vpop.f32.mrb[0].mxu0
    %v3913 = vadd.f32 %v3828, %v3912
    %v3914 = vpop.f32.mrb[0].mxu0
    %3915 = vmatprep.mubr.f32.mxu0 0.0
    %3916 = vmatmul.mubr.f32.gmra.mrb[0].mxu0 %v3753
    %v3917 = vpop.f32.mrb[0].mxu0
    %v3918 = vadd.f32 %v3833, %v3917
    %v3919 = vpop.f32.mrb[0].mxu0
    %3920 = vmatprep.mubr.f32.mxu0 0.0
    %3921 = vmatmul.mubr.f32.gmra.mrb[0].mxu0 %v3756
    %v3922 = vpop.f32.mrb[0].mxu0
    %v3923 = vadd.f32 %v3838, %v3922
    %v3924 = vpop.f32.mrb[0].mxu0
    %3925 = vmatprep.mubr.f32.mxu0 0.0
    %3926 = vmatmul.mubr.f32.gmra.mrb[0].mxu0 %v3759
    %v3927 = vpop.f32.mrb[0].mxu0
    %v3928 = vadd.f32 %v3843, %v3927
    %v3929 = vpop.f32.mrb[0].mxu0
    %3930 = vdwg.mxu0
    %v3931 = vmax.f32 %v3913, 0.0
    %v3932 = vmax.f32 %v3918, 0.0
    %v3933 = vmax.f32 %v3923, 0.0
    %v3934 = vmax.f32 %v3928, 0.0
    %v3935 = vld [vmem:[%s57] sm:$0xff]
    %v3936 = vld [vmem:[%s57 + $0x8] sm:$0xff]
    %v3937 = vld [vmem:[%s57 + $0x10] sm:$0xff]
    %v3938 = vld [vmem:[%s57 + $0x18] sm:$0xff]
    %v3939 = vld [vmem:[%s57 + $0x20] sm:$0xff]
    %v3940 = vld [vmem:[%s57 + $0x28] sm:$0xff]
    %v3941 = vld [vmem:[%s57 + $0x30] sm:$0xff]
    %v3942 = vld [vmem:[%s57 + $0x38] sm:$0xff]
    %v3943 = vld [vmem:[#allocation29] sm:$0x1]
    %v3945 = vlaneseq
    %v3946 = vshrl.u32 %v3945, 7
    %v3947 = vsub.s32 0, %v3946
    %v3948 = vrot.slane %v3943, %v3947
    %v3951 = vsel %vm1922, %v3931, 0
    %v3954 = vsel %vm1922, %v3932, 0
    %v3957 = vsel %vm1922, %v3933, 0
    %v3960 = vsel %vm1922, %v3934, 0
    %3962 = vmatprep.subr.mxu0 0.0
    %3963 = vmatpush1.msra.mxu0 %v3935
    %3964 = vmatprep.subr.mxu0 0.0
    %3965 = vmatpush1.msra.mxu0 %v3936
    %3966 = vmatprep.subr.mxu0 0.0
    %3967 = vmatpush1.msra.mxu0 %v3937
    %3968 = vmatprep.subr.mxu0 0.0
    %3969 = vmatpush1.msra.mxu0 %v3938
    %3970 = vmatprep.subr.mxu0 0.0
    %3971 = vmatpush1.msra.mxu0 %v3939
    %3972 = vmatprep.subr.mxu0 0.0
    %3973 = vmatpush1.msra.mxu0 %v3940
    %3974 = vmatprep.subr.mxu0 0.0
    %3975 = vmatpush1.msra.mxu0 %v3941
    %3976 = vmatprep.subr.mxu0 0.0
    %3977 = vmatpush1.msra.mxu0 %v3942
    %3978 = vmatprep.subr.mxu0 0.0
    %3979 = vmatpush1.msra.mxu0 0.0
    %3980 = vmatprep.subr.mxu0 0.0
    %3981 = vmatpush1.msra.mxu0 0.0
    %3982 = vmatprep.subr.mxu0 0.0
    %3983 = vmatpush1.msra.mxu0 0.0
    %3984 = vmatprep.subr.mxu0 0.0
    %3985 = vmatpush1.msra.mxu0 0.0
    %3986 = vmatprep.subr.mxu0 0.0
    %3987 = vmatpush1.msra.mxu0 0.0
    %3988 = vmatprep.subr.mxu0 0.0
    %3989 = vmatpush1.msra.mxu0 0.0
    %3990 = vmatprep.subr.mxu0 0.0
    %3991 = vmatpush1.msra.mxu0 0.0
    %3992 = vmatprep.subr.mxu0 0.0
    %3993 = vmatpush1.msra.mxu0 0.0
    %3994 = vmatprep.subr.mxu0 0.0
    %3995 = vmatpush1.msra.mxu0 0.0
    %3996 = vmatprep.subr.mxu0 0.0
    %3997 = vmatpush1.msra.mxu0 0.0
    %3998 = vmatprep.subr.mxu0 0.0
    %3999 = vmatpush1.msra.mxu0 0.0
    %4000 = vmatprep.subr.mxu0 0.0
    %4001 = vmatpush1.msra.mxu0 0.0
    %4002 = vmatprep.subr.mxu0 0.0
    %4003 = vmatpush1.msra.mxu0 0.0
    %4004 = vmatprep.subr.mxu0 0.0
    %4005 = vmatpush1.msra.mxu0 0.0
    %4006 = vmatprep.subr.mxu0 0.0
    %4007 = vmatpush1.msra.mxu0 0.0
    %4008 = vmatprep.subr.mxu0 0.0
    %4009 = vmatpush1.msra.mxu0 0.0
    %4010 = vmatprep.subr.mxu0 0.0
    %4011 = vmatpush1.msra.mxu0 0.0
    %4012 = vmatprep.subr.mxu0 0.0
    %4013 = vmatpush1.msra.mxu0 0.0
    %4014 = vmatprep.subr.mxu0 0.0
    %4015 = vmatpush1.msra.mxu0 0.0
    %4016 = vmatprep.subr.mxu0 0.0
    %4017 = vmatpush1.msra.mxu0 0.0
    %4018 = vmatprep.subr.mxu0 0.0
    %4019 = vmatpush1.msra.mxu0 0.0
    %4020 = vmatprep.subr.mxu0 0.0
    %4021 = vmatpush1.msra.mxu0 0.0
    %4022 = vmatprep.subr.mxu0 0.0
    %4023 = vmatpush1.msra.mxu0 0.0
    %4024 = vmatprep.subr.mxu0 0.0
    %4025 = vmatpush1.msra.mxu0 0.0
    %4026 = vmatprep.mubr.f32.mxu0 0.0
    %4027 = vmatmul.mubr.f32.gmra.mrb[0].mxu0 %v3951
    %v4028 = vpop.f32.mrb[0].mxu0
    %v4029 = vadd.f32 %v3948, %v4028
    %v4030 = vpop.f32.mrb[0].mxu0
    %4031 = vmatprep.mubr.f32.mxu0 0.0
    %4032 = vmatmul.mubr.f32.gmra.mrb[0].mxu0 %v3954
    %v4033 = vpop.f32.mrb[0].mxu0
    %v4034 = vadd.f32 %v3948, %v4033
    %v4035 = vpop.f32.mrb[0].mxu0
    %4036 = vmatprep.mubr.f32.mxu0 0.0
    %4037 = vmatmul.mubr.f32.gmra.mrb[0].mxu0 %v3957
    %v4038 = vpop.f32.mrb[0].mxu0
    %v4039 = vadd.f32 %v3948, %v4038
    %v4040 = vpop.f32.mrb[0].mxu0
    %4041 = vmatprep.mubr.f32.mxu0 0.0
    %4042 = vmatmul.mubr.f32.gmra.mrb[0].mxu0 %v3960
    %v4043 = vpop.f32.mrb[0].mxu0
    %v4044 = vadd.f32 %v3948, %v4043
    %v4045 = vpop.f32.mrb[0].mxu0
    %4046 = vdwg.mxu0
    %v4047 = vadd.f32 %v4029, %v3544
    %v4048 = vadd.f32 %v4034, %v3545
    %v4049 = vadd.f32 %v4039, %v3546
    %v4050 = vadd.f32 %v4044, %v3547
    %v4051 = vld [vmem:[#allocation30] sm:$0x1]
    %v4052 = vld [vmem:[#allocation32] sm:$0x1]
    %v4053 = vsel %vm366, %v4047, 0.0
    %4054 = vadd.xlane.f32.xlu0 %v4053
    %v4055 = vpop.xlane.xlu0 %4054
    %v4056 = vsel %vm366, %v4048, 0.0
    %4057 = vadd.xlane.f32.xlu0 %v4056
    %v4058 = vpop.xlane.xlu0 %4057
    %v4059 = vsel %vm366, %v4049, 0.0
    %4060 = vadd.xlane.f32.xlu0 %v4059
    %v4061 = vpop.xlane.xlu0 %4060
    %v4062 = vsel %vm366, %v4050, 0.0
    %4063 = vadd.xlane.f32.xlu0 %v4062
    %v4064 = vpop.xlane.xlu0 %4063
    %v4065 = vmul.f32 %v4055, %v1790
    %v4066 = vmul.f32 %v4058, %v1790
    %v4067 = vmul.f32 %v4061, %v1790
    %v4068 = vmul.f32 %v4064, %v1790
    %v4069 = vsub.f32 %v4047, %v4065
    %v4070 = vsub.f32 %v4048, %v4066
    %v4071 = vsub.f32 %v4049, %v4067
    %v4072 = vsub.f32 %v4050, %v4068
    %v4073 = vmul.f32 %v4069, %v4069
    %v4074 = vmul.f32 %v4070, %v4070
    %v4075 = vmul.f32 %v4071, %v4071
    %v4076 = vmul.f32 %v4072, %v4072
    %v4077 = vsel %vm366, %v4073, 0.0
    %4078 = vadd.xlane.f32.xlu0 %v4077
    %v4079 = vpop.xlane.xlu0 %4078
    %v4080 = vsel %vm366, %v4074, 0.0
    %4081 = vadd.xlane.f32.xlu0 %v4080
    %v4082 = vpop.xlane.xlu0 %4081
    %v4083 = vsel %vm366, %v4075, 0.0
    %4084 = vadd.xlane.f32.xlu0 %v4083
    %v4085 = vpop.xlane.xlu0 %4084
    %v4086 = vsel %vm366, %v4076, 0.0
    %4087 = vadd.xlane.f32.xlu0 %v4086
    %v4088 = vpop.xlane.xlu0 %4087
    %v4089 = vmul.f32 %v4079, %v1790
    %v4090 = vmul.f32 %v4082, %v1790
    %v4091 = vmul.f32 %v4085, %v1790
    %v4092 = vmul.f32 %v4088, %v1790
    %v4093 = vadd.f32 %v4089, 1e-05
    %v4094 = vadd.f32 %v4090, 1e-05
    %v4095 = vadd.f32 %v4091, 1e-05
    %v4096 = vadd.f32 %v4092, 1e-05
    %v4097 = vrsqrt.pop %v4093
    %v4098 = vrsqrt.pop %v4094
    %v4099 = vrsqrt.pop %v4095
    %v4100 = vrsqrt.pop %v4096
    %v4101 = vmul.f32 %v4069, %v4097
    %v4102 = vmul.f32 %v4070, %v4098
    %v4103 = vmul.f32 %v4071, %v4099
    %v4104 = vmul.f32 %v4072, %v4100
    %v4106 = vlaneseq
    %v4107 = vshrl.u32 %v4106, 7
    %v4108 = vsub.s32 0, %v4107
    %v4109 = vrot.slane %v4051, %v4108
    %v4111 = vmul.f32 %v4101, %v4109
    %v4112 = vmul.f32 %v4102, %v4109
    %v4113 = vmul.f32 %v4103, %v4109
    %v4114 = vmul.f32 %v4104, %v4109
    %v4116 = vlaneseq
    %v4117 = vshrl.u32 %v4116, 7
    %v4118 = vsub.s32 0, %v4117
    %v4119 = vrot.slane %v4052, %v4118
    %v4121 = vadd.f32 %v4111, %v4119
    %v4122 = vadd.f32 %v4112, %v4119
    %v4123 = vadd.f32 %v4113, %v4119
    %v4124 = vadd.f32 %v4114, %v4119
    %4125 = vst.msk [vmem:[#allocation34] sm:$0xff] %vm366, %v4121
    %4126 = vst.msk [vmem:[#allocation34 + $0x8] sm:$0xff] %vm366, %v4122
    %4127 = vst.msk [vmem:[#allocation34 + $0x10] sm:$0xff] %vm366, %v4123
    %4128 = vst.msk [vmem:[#allocation34 + $0x18] sm:$0xff] %vm366, %v4124
    // Predicated region
    $region206: #{encoder_forward.1} parent=1 // pred_check
      _
    $region207: #{encoder_forward.1} parent=1 // pred_check_branch
      %4130 = sbr.rel (0) target = $region209
    $region208: #{encoder_forward.1} parent=1 // pred_region
      %s4132 = ssub.s32 512, 512
      %4133 = vsyncadd [#allocation5], %s4132
      %s4134 = sshll.u32 [#allocation33], 4
      %s4135 = int_to_ptr.vmem [resolvable:$true] %s4134
      %4140 = dma.vmem_to_hbm [thread:$0]  %s4135, 512, %s65, [#allocation5], 128, 128, 8
    $region209: #{encoder_forward.1} parent=1 // pred_fallthru
      _
    // Predicated region
    $region210: #{encoder_forward.1} parent=1 // pred_check
      _
    $region211: #{encoder_forward.1} parent=1 // pred_check_branch
      %4142 = sbr.rel (0) target = $region213
    $region212: #{encoder_forward.1} parent=1 // pred_region
      %s4144 = ssub.s32 512, 512
      %4145 = vsyncadd [#allocation35], %s4144
      %s4146 = sshll.u32 [#allocation34], 4
      %s4147 = int_to_ptr.vmem [resolvable:$true] %s4146
      %4152 = dma.vmem_to_hbm [thread:$0]  %s4147, 512, %s67, [#allocation35], 128, 128, 8
    $region213: #{encoder_forward.1} parent=1 // pred_fallthru
      _
    // Predicated region
    $region214: #{encoder_forward.1} parent=1 // pred_check
      _
    $region215: #{encoder_forward.1} parent=1 // pred_check_branch
      %4154 = sbr.rel (0) target = $region217
    $region216: #{encoder_forward.1} parent=1 // pred_region
      %4155 = dma.done [#allocation5], 512
    $region217: #{encoder_forward.1} parent=1 // pred_fallthru
      _
    // Predicated region
    $region218: #{encoder_forward.1} parent=1 // pred_check
      _
    $region219: #{encoder_forward.1} parent=1 // pred_check_branch
      %4157 = sbr.rel (0) target = $region221
    $region220: #{encoder_forward.1} parent=1 // pred_region
      %4158 = dma.done [#allocation35], 512
    $region221: #{encoder_forward.1} parent=1 // pred_fallthru
      _
    %4159 = vsyncpa [#allocation4], 1
    %4160 = vsyncpa [#allocation7], 1
    %4161 = vsyncpa [#allocation10], 1
    %4162 = vsyncpa [#allocation13], 1
    %4163 = vsyncpa [#allocation16], 1
    %4164 = vsyncpa [#allocation19], 1
    %4165 = vsyncpa [#allocation22], 1
    %4166 = vsyncpa [#allocation25], 1
    %4167 = vsyncpa [#allocation28], 1
    %4168 = vsyncpa [#allocation31], 1
    %4169 = vsyncpa [#allocation5], 1
    %4170 = vsyncpa [#allocation35], 1

</llo_original>
